<compile_context>
chip_gen: v7x
topology: tpu7x:2x2x1
jax: 0.10.0
libtpu: 0.0.40
codegen_flags: <defaults>
</compile_context>

<pallas_src>
import functools
import math

import numpy as np
import jax
import jax.numpy as jnp
from jax.experimental import pallas as pl
from jax.experimental.pallas import tpu as pltpu


VMEM_LIMIT_BYTES = 32 * 1024 * 1024   # explicit scoped-VMEM limit, safe on v5e/v6e/v7x


def _pick_tile(dim, target, quantum):
    """Largest multiple of `quantum` <= target that divides dim, else full dim."""
    if dim <= target:
        return dim
    t = (target // quantum) * quantum
    while t >= quantum:
        if dim % t == 0:
            return t
        t -= quantum
    return dim


# -----------------------------------------------------------------------------
# Tiled matmul + bias (+ReLU) kernel  (bf16 operands, f32 accumulation)
# -----------------------------------------------------------------------------
def _matmul_kernel(x_ref, w_ref, b_ref, o_ref, acc_ref, *, activation):
    @pl.when(pl.program_id(2) == 0)
    def _():
        acc_ref[...] = jnp.zeros_like(acc_ref)

    acc_ref[...] += jnp.dot(x_ref[...], w_ref[...],
                            preferred_element_type=jnp.float32)

    @pl.when(pl.program_id(2) == pl.num_programs(2) - 1)
    def _():
        y = acc_ref[...] + b_ref[...]
        if activation == "relu":
            y = jnp.maximum(y, 0.0)
        o_ref[...] = y.astype(o_ref.dtype)


def pallas_linear(x, w, b, activation=None):
    """y = x @ w + b (+ optional ReLU). x:(M,K) w:(K,N) b:(N,). Output f32."""
    M, K = x.shape
    N = w.shape[1]
    x = x.astype(jnp.bfloat16)
    w = w.astype(jnp.bfloat16)
    b = b.astype(jnp.float32).reshape(1, N)

    tm = _pick_tile(M, 256, 8)
    tn = _pick_tile(N, 512, 128)
    tk = _pick_tile(K, 512, 128)
    grid = (M // tm, N // tn, K // tk)

    return pl.pallas_call(
        functools.partial(_matmul_kernel, activation=activation),
        out_shape=jax.ShapeDtypeStruct((M, N), jnp.float32),
        grid_spec=pltpu.PrefetchScalarGridSpec(
            num_scalar_prefetch=0,
            grid=grid,
            in_specs=[
                pl.BlockSpec((tm, tk), lambda i, j, k: (i, k)),
                pl.BlockSpec((tk, tn), lambda i, j, k: (k, j)),
                pl.BlockSpec((1, tn), lambda i, j, k: (0, j)),
            ],
            out_specs=pl.BlockSpec((tm, tn), lambda i, j, k: (i, j)),
            scratch_shapes=[pltpu.VMEM((tm, tn), jnp.float32)],
        ),
        compiler_params=pltpu.CompilerParams(
            dimension_semantics=("parallel", "parallel", "arbitrary"),
            vmem_limit_bytes=VMEM_LIMIT_BYTES),
    )(x, w, b)


# -----------------------------------------------------------------------------
# Attention kernel: all heads of one batch element per grid step.
# In-kernel causal mask (iota), no k.T (batched contraction), approx reciprocal.
# -----------------------------------------------------------------------------
def _attention_kernel(q_ref, k_ref, v_ref, o_ref, *, scale, causal):
    q = q_ref[0]                      # (H, Lq, Dh) bf16
    k = k_ref[0]                      # (H, Lk, Dh) bf16
    v = v_ref[0]                      # (H, Lk, Dh) bf16
    s = jnp.einsum('hqd,hkd->hqk', q, k,
                   preferred_element_type=jnp.float32) * scale
    if causal:
        row = jax.lax.broadcasted_iota(jnp.int32, s.shape, 1)
        col = jax.lax.broadcasted_iota(jnp.int32, s.shape, 2)
        s = jnp.where(col <= row, s, -1e30)
    m = jnp.max(s, axis=-1, keepdims=True)
    p = jnp.exp(s - m)
    denom = jnp.sum(p, axis=-1, keepdims=True)
    p = p * pl.reciprocal(denom, approx=True)
    o = jnp.einsum('hqk,hkd->hqd', p.astype(v.dtype), v,
                   preferred_element_type=jnp.float32)
    o_ref[0] = o


def pallas_attention(q, k, v, scale, causal):
    """q,k,v: (B, H, L, Dh). Returns (B, H, Lq, Dh) f32."""
    B, H, Lq, Dh = q.shape
    Lk = k.shape[2]
    q = q.astype(jnp.bfloat16)
    k = k.astype(jnp.bfloat16)
    v = v.astype(jnp.bfloat16)
    kernel = functools.partial(_attention_kernel, scale=scale, causal=causal)
    return pl.pallas_call(
        kernel,
        out_shape=jax.ShapeDtypeStruct((B, H, Lq, Dh), jnp.float32),
        grid=(B,),
        in_specs=[
            pl.BlockSpec((1, H, Lq, Dh), lambda b: (b, 0, 0, 0)),
            pl.BlockSpec((1, H, Lk, Dh), lambda b: (b, 0, 0, 0)),
            pl.BlockSpec((1, H, Lk, Dh), lambda b: (b, 0, 0, 0)),
        ],
        out_specs=pl.BlockSpec((1, H, Lq, Dh), lambda b: (b, 0, 0, 0)),
        compiler_params=pltpu.CompilerParams(
            dimension_semantics=("parallel",),
            vmem_limit_bytes=VMEM_LIMIT_BYTES),
    )(q, k, v)


# -----------------------------------------------------------------------------
# LayerNorm kernels (row-tiled; one variant fuses the residual add)
# -----------------------------------------------------------------------------
def _ln_math(z, g, b, eps):
    mu = jnp.mean(z, axis=-1, keepdims=True)
    var = jnp.mean(jnp.square(z - mu), axis=-1, keepdims=True)
    return (z - mu) * jax.lax.rsqrt(var + eps) * g + b


def _ln_kernel(x_ref, g_ref, b_ref, o_ref, *, eps):
    o_ref[...] = _ln_math(x_ref[...], g_ref[...], b_ref[...], eps)


def _add_ln_kernel(x_ref, y_ref, g_ref, b_ref, o_ref, *, eps):
    o_ref[...] = _ln_math(x_ref[...] + y_ref[...], g_ref[...], b_ref[...], eps)


def _ln_call(kernel, row_inputs, p, eps, S, B, E):
    R = S * B
    tm = _pick_tile(R, 512, 8)
    in_specs = [pl.BlockSpec((tm, E), lambda i: (i, 0)) for _ in row_inputs]
    in_specs += [pl.BlockSpec((1, E), lambda i: (0, 0)),
                 pl.BlockSpec((1, E), lambda i: (0, 0))]
    out = pl.pallas_call(
        functools.partial(kernel, eps=eps),
        out_shape=jax.ShapeDtypeStruct((R, E), jnp.float32),
        grid=(R // tm,),
        in_specs=in_specs,
        out_specs=pl.BlockSpec((tm, E), lambda i: (i, 0)),
        compiler_params=pltpu.CompilerParams(
            dimension_semantics=("parallel",),
            vmem_limit_bytes=VMEM_LIMIT_BYTES),
    )(*row_inputs, p["gamma"].reshape(1, E), p["beta"].reshape(1, E))
    return out.reshape(S, B, E)


def pallas_layernorm(x3d, p, eps=1e-5):
    S, B, E = x3d.shape
    return _ln_call(_ln_kernel, [x3d.reshape(S * B, E)], p, eps, S, B, E)


def pallas_add_layernorm(x3d, y3d, p, eps=1e-5):
    """LayerNorm(x + y) fused (residual add inside the kernel)."""
    S, B, E = x3d.shape
    return _ln_call(_add_ln_kernel,
                    [x3d.reshape(S * B, E), y3d.reshape(S * B, E)],
                    p, eps, S, B, E)


# -----------------------------------------------------------------------------
# Embedding scale/trunc + positional encoding
# -----------------------------------------------------------------------------
def _embed_pe_kernel(e_ref, pe_ref, o_ref, *, scale):
    # reproduces: embedding(x).long() * sqrt(emb) + positional_encoding
    o_ref[...] = jnp.trunc(e_ref[...]) * scale + pe_ref[...]


def pallas_embed_pe(e, pe, scale):
    """e: (B, S, E) raw embedding lookups; pe: (1, S, E)."""
    B, S, E = e.shape
    return pl.pallas_call(
        functools.partial(_embed_pe_kernel, scale=scale),
        out_shape=jax.ShapeDtypeStruct((B, S, E), jnp.float32),
        grid=(B,),
        in_specs=[
            pl.BlockSpec((1, S, E), lambda b: (b, 0, 0)),
            pl.BlockSpec((1, S, E), lambda b: (0, 0, 0)),
        ],
        out_specs=pl.BlockSpec((1, S, E), lambda b: (b, 0, 0)),
        compiler_params=pltpu.CompilerParams(
            dimension_semantics=("parallel",),
            vmem_limit_bytes=VMEM_LIMIT_BYTES),
    )(e, pe)


# -----------------------------------------------------------------------------
# Transformer building blocks (matmuls / attention / LN are Pallas kernels)
# -----------------------------------------------------------------------------
def mha_self(p, x, nhead, causal):
    """Self-attention with fused QKV projection. x: (L, B, E)."""
    L, B, E = x.shape
    Dh = E // nhead
    qkv = pallas_linear(x.reshape(L * B, E), p["w_qkv"], p["b_qkv"])   # (L*B, 3E)
    qkv = qkv.reshape(L, B, 3, nhead, Dh).transpose(2, 1, 3, 0, 4)     # (3,B,H,L,Dh)
    q, k, v = qkv[0], qkv[1], qkv[2]
    o = pallas_attention(q, k, v, 1.0 / math.sqrt(Dh), causal)         # (B,H,L,Dh)
    o = o.transpose(2, 0, 1, 3).reshape(L * B, E)
    o = pallas_linear(o, p["wo"], p["bo"])
    return o.reshape(L, B, E)


def mha_cross(p, q_in, kv_in, nhead):
    """Cross-attention (memory_mask=None). q_in:(Lq,B,E), kv_in:(Lk,B,E)."""
    Lq, B, E = q_in.shape
    Lk = kv_in.shape[0]
    Dh = E // nhead
    wq, bq = p["w_qkv"][:, :E], p["b_qkv"][:E]
    wkv, bkv = p["w_qkv"][:, E:], p["b_qkv"][E:]

    q = pallas_linear(q_in.reshape(Lq * B, E), wq, bq)
    q = q.reshape(Lq, B, nhead, Dh).transpose(1, 2, 0, 3)              # (B,H,Lq,Dh)
    kv = pallas_linear(kv_in.reshape(Lk * B, E), wkv, bkv)             # (Lk*B, 2E)
    kv = kv.reshape(Lk, B, 2, nhead, Dh).transpose(2, 1, 3, 0, 4)      # (2,B,H,Lk,Dh)
    k, v = kv[0], kv[1]

    o = pallas_attention(q, k, v, 1.0 / math.sqrt(Dh), causal=False)   # (B,H,Lq,Dh)
    o = o.transpose(2, 0, 1, 3).reshape(Lq * B, E)
    o = pallas_linear(o, p["wo"], p["bo"])
    return o.reshape(Lq, B, E)


def encoder_layer(p, x, nhead):
    S, B, E = x.shape
    sa = mha_self(p["self_attn"], x, nhead, causal=True)   # src_mask == causal mask
    x = pallas_add_layernorm(x, sa, p["ln1"])
    h = pallas_linear(x.reshape(S * B, E), p["ff1_w"], p["ff1_b"], activation="relu")
    h = pallas_linear(h, p["ff2_w"], p["ff2_b"]).reshape(S, B, E)
    x = pallas_add_layernorm(x, h, p["ln2"])
    return x


def decoder_layer(p, x, memory, nhead):
    S, B, E = x.shape
    sa = mha_self(p["self_attn"], x, nhead, causal=True)   # tgt_mask == causal mask
    x = pallas_add_layernorm(x, sa, p["ln1"])
    ca = mha_cross(p["cross_attn"], x, memory, nhead)      # memory_mask = None
    x = pallas_add_layernorm(x, ca, p["ln2"])
    h = pallas_linear(x.reshape(S * B, E), p["ff1_w"], p["ff1_b"], activation="relu")
    h = pallas_linear(h, p["ff2_w"], p["ff2_b"]).reshape(S, B, E)
    x = pallas_add_layernorm(x, h, p["ln3"])
    return x


def seq2seq_forward(params, input_ids, target_ids, *, nhead):
    E = params["embedding"].shape[1]
    B, S = input_ids.shape
    scale_emb = math.sqrt(E)
    pe = params["pe"][:, :S, :]                       # (1, S, E)

    def embed(ids):
        e = jnp.take(params["embedding"], ids, axis=0)  # (B, S, E)
        return pallas_embed_pe(e, pe, scale_emb)

    src = embed(input_ids)                            # (B, S, E)
    trg = embed(target_ids)
    src = jnp.transpose(src, (1, 0, 2))               # (S, B, E) batch_first=False
    trg = jnp.transpose(trg, (1, 0, 2))

    mem = src
    for lp in params["encoder_layers"]:
        mem = encoder_layer(lp, mem, nhead)
    mem = pallas_layernorm(mem, params["enc_norm"])

    out = trg
    for lp in params["decoder_layers"]:
        out = decoder_layer(lp, out, mem, nhead)
    out = pallas_layernorm(out, params["dec_norm"])   # (S, B, E)

    # torch.argmax(out, -1): taken over the embedding dim, faithful to the spec.
    preds = jnp.argmax(out, axis=-1)                  # (S, B)

    logits = pallas_linear(out.reshape(S * B, E), params["out_w"], params["out_b"])
    V = params["out_w"].shape[1]
    logits = logits.reshape(S, B, V).transpose(1, 0, 2)  # .permute(1,0,2) -> (B, S, V)
    return preds, logits


# -----------------------------------------------------------------------------
# Deterministic parameter init (shapes follow the PyTorch module __init__)
# -----------------------------------------------------------------------------
def init_params(key, vocab_size, emb_size, max_seq_len, nhead, n_enc, n_dec, ffn_dim):
    keys = iter(jax.random.split(key, 512))

    def nk():
        return next(keys)

    def lin(fan_in, fan_out):
        bound = 1.0 / math.sqrt(fan_in)
        w = jax.random.uniform(nk(), (fan_in, fan_out), jnp.float32, -bound, bound)
        b = jax.random.uniform(nk(), (fan_out,), jnp.float32, -bound, bound)
        return w, b

    def ln():
        return {"gamma": jnp.ones((emb_size,), jnp.float32),
                "beta": jnp.zeros((emb_size,), jnp.float32)}

    def mha_p():
        w_qkv, b_qkv = lin(emb_size, 3 * emb_size)    # fused [Q|K|V] projection
        wo, bo = lin(emb_size, emb_size)
        return dict(w_qkv=w_qkv, b_qkv=b_qkv, wo=wo, bo=bo)

    def enc_layer():
        f1w, f1b = lin(emb_size, ffn_dim)
        f2w, f2b = lin(ffn_dim, emb_size)
        return dict(self_attn=mha_p(), ln1=ln(),
                    ff1_w=f1w, ff1_b=f1b, ff2_w=f2w, ff2_b=f2b, ln2=ln())

    def dec_layer():
        f1w, f1b = lin(emb_size, ffn_dim)
        f2w, f2b = lin(ffn_dim, emb_size)
        return dict(self_attn=mha_p(), ln1=ln(), cross_attn=mha_p(), ln2=ln(),
                    ff1_w=f1w, ff1_b=f1b, ff2_w=f2w, ff2_b=f2b, ln3=ln())

    # sinusoidal positional encoding table, shape (1, max_seq_len, emb)
    pe = np.zeros((max_seq_len, emb_size), dtype=np.float32)
    pos = np.arange(max_seq_len, dtype=np.float32)[:, None]
    div = np.exp(np.arange(0, emb_size, 2, dtype=np.float32)
                 * (-math.log(10000.0) / emb_size))
    pe[:, 0::2] = np.sin(pos * div)
    pe[:, 1::2] = np.cos(pos * div)

    out_w, out_b = lin(emb_size, vocab_size)

    return dict(
        embedding=jax.random.normal(nk(), (vocab_size, emb_size), jnp.float32),
        pe=jnp.asarray(pe)[None, :, :],
        encoder_layers=[enc_layer() for _ in range(n_enc)],
        decoder_layers=[dec_layer() for _ in range(n_dec)],
        enc_norm=ln(),
        dec_norm=ln(),
        out_w=out_w,
        out_b=out_b,
    )


# -----------------------------------------------------------------------------
if __name__ == "__main__":
    B, S = 2, 8                    # batch, sequence length
    VOCAB, EMB, MAXLEN = 64, 32, 16
    NHEAD, N_ENC, N_DEC, FFN = 4, 2, 2, 64   # small transformer_params

    key = jax.random.PRNGKey(0)
    pkey, ikey, tkey = jax.random.split(key, 3)

    params = init_params(pkey, VOCAB, EMB, MAXLEN, NHEAD, N_ENC, N_DEC, FFN)
    input_ids = jax.random.randint(ikey, (B, S), 0, VOCAB, dtype=jnp.int32)
    target_ids = jax.random.randint(tkey, (B, S), 0, VOCAB, dtype=jnp.int32)

    fwd = jax.jit(functools.partial(seq2seq_forward, nhead=NHEAD))
    preds, logits = fwd(params, input_ids, target_ids)
    jax.block_until_ready((preds, logits))

    assert preds.shape == (S, B)             # torch.argmax(out, -1) on (S, B, E)
    assert logits.shape == (B, S, VOCAB)     # decoder(out).permute(1, 0, 2)
    assert jnp.all(jnp.isfinite(logits))
    print("KERNEL_OK")
</pallas_src>

<mosaic_0001>
module attributes {stable_mosaic.version = 11 : i64} {
  func.func @_embed_pe_kernel(%arg0: i32, %arg1: memref<1x8x32xf32, #tpu.memory_space<vmem>>, %arg2: memref<1x8x32xf32, #tpu.memory_space<vmem>>, %arg3: memref<1x8x32xf32, #tpu.memory_space<vmem>>) attributes {dimension_semantics = [#tpu.dimension_semantics<parallel>], iteration_bounds = array<i64: 2>, scalar_prefetch = 0 : i64, scratch_operands = 0 : i64, tpu.core_type = #tpu.core_type<tc>, window_params = [{transform_indices = @transform_0, window_bounds = array<i64: 1, 8, 32>}, {pipeline_mode = #tpu.pipeline_mode<synchronous>, transform_indices = @transform_1, window_bounds = array<i64: 1, 8, 32>}, {transform_indices = @transform_2, window_bounds = array<i64: 1, 8, 32>}]} {
    %c0 = arith.constant 0 : index
    %c0_0 = arith.constant 0 : index
    %c0_1 = arith.constant 0 : index
    %0 = vector.load %arg1[%c0, %c0_0, %c0_1] : memref<1x8x32xf32, #tpu.memory_space<vmem>>, vector<1x8x32xf32>
    %cst = arith.constant 0.000000e+00 : f32
    %1 = vector.broadcast %cst : f32 to vector<1x8x32xf32>
    %2 = arith.cmpf olt, %0, %1 : vector<1x8x32xf32>
    %3 = math.ceil %0 : vector<1x8x32xf32>
    %4 = math.floor %0 : vector<1x8x32xf32>
    %5 = arith.select %2, %3, %4 : vector<1x8x32xi1>, vector<1x8x32xf32>
    %cst_2 = arith.constant 5.65685415 : f32
    %6 = vector.broadcast %cst_2 : f32 to vector<1x8x32xf32>
    %7 = arith.mulf %5, %6 : vector<1x8x32xf32>
    %c0_3 = arith.constant 0 : index
    %c0_4 = arith.constant 0 : index
    %c0_5 = arith.constant 0 : index
    %8 = vector.load %arg2[%c0_3, %c0_4, %c0_5] : memref<1x8x32xf32, #tpu.memory_space<vmem>>, vector<1x8x32xf32>
    %9 = arith.addf %7, %8 : vector<1x8x32xf32>
    %c0_6 = arith.constant 0 : index
    %c0_7 = arith.constant 0 : index
    %c0_8 = arith.constant 0 : index
    %10 = vector.load %arg3[%c0_6, %c0_7, %c0_8] : memref<1x8x32xf32, #tpu.memory_space<vmem>>, vector<1x8x32xf32>
    tpu.vector_store %arg3[%c0_6, %c0_7, %c0_8], %9 {strides = array<i32>} : memref<1x8x32xf32, #tpu.memory_space<vmem>>, vector<1x8x32xf32>,
    return
  }
  func.func @transform_0(%arg0: i32) -> (i32, i32, i32) {
    %c0_i32 = arith.constant 0 : i32
    %c0_i32_0 = arith.constant 0 : i32
    %c0_i32_1 = arith.constant 0 : i32
    return %arg0, %c0_i32, %c0_i32_0 : i32, i32, i32
  }
  func.func @transform_1(%arg0: i32) -> (i32, i32, i32) {
    %c0_i32 = arith.constant 0 : i32
    %c0_i32_0 = arith.constant 0 : i32
    %c0_i32_1 = arith.constant 0 : i32
    %c0_i32_2 = arith.constant 0 : i32
    return %c0_i32, %c0_i32_0, %c0_i32_1 : i32, i32, i32
  }
  func.func @transform_2(%arg0: i32) -> (i32, i32, i32) {
    %c0_i32 = arith.constant 0 : i32
    %c0_i32_0 = arith.constant 0 : i32
    %c0_i32_1 = arith.constant 0 : i32
    return %arg0, %c0_i32, %c0_i32_0 : i32, i32, i32
  }
}

module attributes {stable_mosaic.version = 11 : i64} {
  func.func @_matmul_kernel(%arg0: i32, %arg1: i32, %arg2: i32, %arg3: memref<16x32xbf16, #tpu.memory_space<vmem>>, %arg4: memref<32x96xbf16, #tpu.memory_space<vmem>>, %arg5: memref<1x96xf32, #tpu.memory_space<vmem>>, %arg6: memref<16x96xf32, #tpu.memory_space<vmem>>, %arg7: memref<16x96xf32, #tpu.memory_space<vmem>>) attributes {dimension_semantics = [#tpu.dimension_semantics<parallel>, #tpu.dimension_semantics<parallel>, #tpu.dimension_semantics<arbitrary>], iteration_bounds = array<i64: 1, 1, 1>, scalar_prefetch = 0 : i64, scratch_operands = 1 : i64, tpu.core_type = #tpu.core_type<tc>, window_params = [{transform_indices = @transform_0, window_bounds = array<i64: 16, 32>}, {transform_indices = @transform_1, window_bounds = array<i64: 32, 96>}, {transform_indices = @transform_2, window_bounds = array<i64: 1, 96>}, {transform_indices = @transform_3, window_bounds = array<i64: 16, 96>}]} {
    %c0_i32 = arith.constant 0 : i32
    %0 = arith.cmpi eq, %arg2, %c0_i32 : i32
    %1 = arith.extui %0 : i1 to i32
    %c0_i32_0 = arith.constant 0 : i32
    %2 = arith.cmpi ne, %1, %c0_i32_0 : i32
    scf.if %2 {
      %cst_10 = arith.constant 0.000000e+00 : f32
      %12 = vector.broadcast %cst_10 : f32 to vector<16x96xf32>
      %c0_11 = arith.constant 0 : index
      %c0_12 = arith.constant 0 : index
      %13 = vector.load %arg7[%c0_11, %c0_12] : memref<16x96xf32, #tpu.memory_space<vmem>>, vector<16x96xf32>
      tpu.vector_store %arg7[%c0_11, %c0_12], %12 {strides = array<i32>} : memref<16x96xf32, #tpu.memory_space<vmem>>, vector<16x96xf32>,
    } else {
    }
    %c0 = arith.constant 0 : index
    %c0_1 = arith.constant 0 : index
    %3 = vector.load %arg7[%c0, %c0_1] : memref<16x96xf32, #tpu.memory_space<vmem>>, vector<16x96xf32>
    %c0_2 = arith.constant 0 : index
    %c0_3 = arith.constant 0 : index
    %4 = vector.load %arg3[%c0_2, %c0_3] : memref<16x32xbf16, #tpu.memory_space<vmem>>, vector<16x32xbf16>
    %c0_4 = arith.constant 0 : index
    %c0_5 = arith.constant 0 : index
    %5 = vector.load %arg4[%c0_4, %c0_5] : memref<32x96xbf16, #tpu.memory_space<vmem>>, vector<32x96xbf16>
    %cst = arith.constant dense<0.000000e+00> : vector<16x96xf32>
    %6 = tpu.matmul %4, %5, %cst {dimension_numbers = #tpu.dot_dimension_numbers<[1], [0], [0], [1], [0, 0, 1, 1], [], []>} : vector<16x32xbf16>, vector<32x96xbf16>, vector<16x96xf32> -> vector<16x96xf32>
    %7 = arith.addf %3, %6 : vector<16x96xf32>
    %c0_6 = arith.constant 0 : index
    %c0_7 = arith.constant 0 : index
    %8 = vector.load %arg7[%c0_6, %c0_7] : memref<16x96xf32, #tpu.memory_space<vmem>>, vector<16x96xf32>
    tpu.vector_store %arg7[%c0_6, %c0_7], %7 {strides = array<i32>} : memref<16x96xf32, #tpu.memory_space<vmem>>, vector<16x96xf32>,
    %c0_i32_8 = arith.constant 0 : i32
    %9 = arith.cmpi eq, %arg2, %c0_i32_8 : i32
    %10 = arith.extui %9 : i1 to i32
    %c0_i32_9 = arith.constant 0 : i32
    %11 = arith.cmpi ne, %10, %c0_i32_9 : i32
    scf.if %11 {
      %c0_10 = arith.constant 0 : index
      %c0_11 = arith.constant 0 : index
      %12 = vector.load %arg7[%c0_10, %c0_11] : memref<16x96xf32, #tpu.memory_space<vmem>>, vector<16x96xf32>
      %c0_12 = arith.constant 0 : index
      %c0_13 = arith.constant 0 : index
      %13 = vector.load %arg5[%c0_12, %c0_13] : memref<1x96xf32, #tpu.memory_space<vmem>>, vector<1x96xf32>
      %14 = vector.broadcast %13 : vector<1x96xf32> to vector<16x96xf32>
      %15 = arith.addf %12, %14 : vector<16x96xf32>
      %c0_14 = arith.constant 0 : index
      %c0_15 = arith.constant 0 : index
      %16 = vector.load %arg6[%c0_14, %c0_15] : memref<16x96xf32, #tpu.memory_space<vmem>>, vector<16x96xf32>
      tpu.vector_store %arg6[%c0_14, %c0_15], %15 {strides = array<i32>} : memref<16x96xf32, #tpu.memory_space<vmem>>, vector<16x96xf32>,
    } else {
    }
    return
  }
  func.func @transform_0(%arg0: i32, %arg1: i32, %arg2: i32) -> (i32, i32) {
    %c0_i32 = arith.constant 0 : i32
    return %arg0, %arg2 : i32, i32
  }
  func.func @transform_1(%arg0: i32, %arg1: i32, %arg2: i32) -> (i32, i32) {
    %c0_i32 = arith.constant 0 : i32
    return %arg2, %arg1 : i32, i32
  }
  func.func @transform_2(%arg0: i32, %arg1: i32, %arg2: i32) -> (i32, i32) {
    %c0_i32 = arith.constant 0 : i32
    %c0_i32_0 = arith.constant 0 : i32
    return %c0_i32, %arg1 : i32, i32
  }
  func.func @transform_3(%arg0: i32, %arg1: i32, %arg2: i32) -> (i32, i32) {
    %c0_i32 = arith.constant 0 : i32
    return %arg0, %arg1 : i32, i32
  }
}

module attributes {stable_mosaic.version = 11 : i64} {
  func.func @_attention_kernel(%arg0: i32, %arg1: memref<1x4x8x8xbf16, #tpu.memory_space<vmem>>, %arg2: memref<1x4x8x8xbf16, #tpu.memory_space<vmem>>, %arg3: memref<1x4x8x8xbf16, #tpu.memory_space<vmem>>, %arg4: memref<1x4x8x8xf32, #tpu.memory_space<vmem>>) attributes {dimension_semantics = [#tpu.dimension_semantics<parallel>], iteration_bounds = array<i64: 2>, scalar_prefetch = 0 : i64, scratch_operands = 0 : i64, tpu.core_type = #tpu.core_type<tc>, window_params = [{transform_indices = @transform_0, window_bounds = array<i64: 1, 4, 8, 8>}, {transform_indices = @transform_1, window_bounds = array<i64: 1, 4, 8, 8>}, {transform_indices = @transform_2, window_bounds = array<i64: 1, 4, 8, 8>}, {transform_indices = @transform_3, window_bounds = array<i64: 1, 4, 8, 8>}]} {
    %c0 = arith.constant 0 : index
    %c0_0 = arith.constant 0 : index
    %c0_1 = arith.constant 0 : index
    %c0_2 = arith.constant 0 : index
    %0 = vector.load %arg1[%c0, %c0_0, %c0_1, %c0_2] : memref<1x4x8x8xbf16, #tpu.memory_space<vmem>>, vector<1x4x8x8xbf16>
    %1 = vector.shape_cast %0 : vector<1x4x8x8xbf16> to vector<4x8x8xbf16>
    %c0_3 = arith.constant 0 : index
    %c0_4 = arith.constant 0 : index
    %c0_5 = arith.constant 0 : index
    %c0_6 = arith.constant 0 : index
    %2 = vector.load %arg2[%c0_3, %c0_4, %c0_5, %c0_6] : memref<1x4x8x8xbf16, #tpu.memory_space<vmem>>, vector<1x4x8x8xbf16>
    %3 = vector.shape_cast %2 : vector<1x4x8x8xbf16> to vector<4x8x8xbf16>
    %c0_7 = arith.constant 0 : index
    %c0_8 = arith.constant 0 : index
    %c0_9 = arith.constant 0 : index
    %c0_10 = arith.constant 0 : index
    %4 = vector.load %arg3[%c0_7, %c0_8, %c0_9, %c0_10] : memref<1x4x8x8xbf16, #tpu.memory_space<vmem>>, vector<1x4x8x8xbf16>
    %5 = vector.shape_cast %4 : vector<1x4x8x8xbf16> to vector<4x8x8xbf16>
    "tpu.trace_start"() <{level = 10 : i32, message = "hqd,hkd->hqk"}> : () -> ()
    %cst = arith.constant dense<0.000000e+00> : vector<4x8x8xf32>
    %6 = tpu.matmul %1, %3, %cst {dimension_numbers = #tpu.dot_dimension_numbers<[2], [2], [1], [1], [0, 0, 0, 1, 1, 1], [0], [0]>} : vector<4x8x8xbf16>, vector<4x8x8xbf16>, vector<4x8x8xf32> -> vector<4x8x8xf32>
    "tpu.trace_stop"() : () -> ()
    %cst_11 = arith.constant 0.353553385 : f32
    %7 = vector.broadcast %cst_11 : f32 to vector<4x8x8xf32>
    %8 = arith.mulf %6, %7 : vector<4x8x8xf32>
    %9 = tpu.iota {dimensions = array<i32: 1>} : vector<4x8x8xi32>
    %10 = tpu.iota {dimensions = array<i32: 2>} : vector<4x8x8xi32>
    %11 = arith.cmpi sle, %10, %9 : vector<4x8x8xi32>
    %cst_12 = arith.constant -1.000000e+30 : f32
    %12 = vector.broadcast %cst_12 : f32 to vector<4x8x8xf32>
    %13 = arith.select %11, %8, %12 : vector<4x8x8xi1>, vector<4x8x8xf32>
    %cst_13 = arith.constant dense<0xFF800000> : vector<4x8xf32>
    %14 = vector.multi_reduction <maximumf>, %13, %cst_13 [2] : vector<4x8x8xf32> to vector<4x8xf32>
    %15 = vector.shape_cast %14 : vector<4x8xf32> to vector<4x8x1xf32>
    %16 = vector.broadcast %15 : vector<4x8x1xf32> to vector<4x8x8xf32>
    %17 = arith.subf %13, %16 : vector<4x8x8xf32>
    %18 = math.exp %17 : vector<4x8x8xf32>
    %cst_14 = arith.constant dense<0.000000e+00> : vector<4x8xf32>
    %19 = vector.multi_reduction <add>, %18, %cst_14 [2] : vector<4x8x8xf32> to vector<4x8xf32>
    %20 = vector.shape_cast %19 : vector<4x8xf32> to vector<4x8x1xf32>
    %21 = tpu.reciprocal %20 {approx = true} : vector<4x8x1xf32> -> vector<4x8x1xf32>
    %22 = vector.broadcast %21 : vector<4x8x1xf32> to vector<4x8x8xf32>
    %23 = arith.mulf %18, %22 : vector<4x8x8xf32>
    %24 = arith.truncf %23 : vector<4x8x8xf32> to vector<4x8x8xbf16>
    "tpu.trace_start"() <{level = 10 : i32, message = "hqk,hkd->hqd"}> : () -> ()
    %cst_15 = arith.constant dense<0.000000e+00> : vector<4x8x8xf32>
    %25 = tpu.matmul %24, %5, %cst_15 {dimension_numbers = #tpu.dot_dimension_numbers<[2], [1], [1], [2], [0, 0, 0, 1, 1, 2], [0], [0]>} : vector<4x8x8xbf16>, vector<4x8x8xbf16>, vector<4x8x8xf32> -> vector<4x8x8xf32>
    "tpu.trace_stop"() : () -> ()
    %c0_16 = arith.constant 0 : index
    %c0_17 = arith.constant 0 : index
    %c0_18 = arith.constant 0 : index
    %c0_19 = arith.constant 0 : index
    %26 = vector.load %arg4[%c0_16, %c0_17, %c0_18, %c0_19] : memref<1x4x8x8xf32, #tpu.memory_space<vmem>>, vector<1x4x8x8xf32>
    %27 = vector.shape_cast %26 : vector<1x4x8x8xf32> to vector<4x8x8xf32>
    %28 = vector.shape_cast %25 : vector<4x8x8xf32> to vector<1x4x8x8xf32>
    tpu.vector_store %arg4[%c0_16, %c0_17, %c0_18, %c0_19], %28 {strides = array<i32>} : memref<1x4x8x8xf32, #tpu.memory_space<vmem>>, vector<1x4x8x8xf32>,
    return
  }
  func.func @transform_0(%arg0: i32) -> (i32, i32, i32, i32) {
    %c0_i32 = arith.constant 0 : i32
    %c0_i32_0 = arith.constant 0 : i32
    %c0_i32_1 = arith.constant 0 : i32
    %c0_i32_2 = arith.constant 0 : i32
    return %arg0, %c0_i32, %c0_i32_0, %c0_i32_1 : i32, i32, i32, i32
  }
  func.func @transform_1(%arg0: i32) -> (i32, i32, i32, i32) {
    %c0_i32 = arith.constant 0 : i32
    %c0_i32_0 = arith.constant 0 : i32
    %c0_i32_1 = arith.constant 0 : i32
    %c0_i32_2 = arith.constant 0 : i32
    return %arg0, %c0_i32, %c0_i32_0, %c0_i32_1 : i32, i32, i32, i32
  }
  func.func @transform_2(%arg0: i32) -> (i32, i32, i32, i32) {
    %c0_i32 = arith.constant 0 : i32
    %c0_i32_0 = arith.constant 0 : i32
    %c0_i32_1 = arith.constant 0 : i32
    %c0_i32_2 = arith.constant 0 : i32
    return %arg0, %c0_i32, %c0_i32_0, %c0_i32_1 : i32, i32, i32, i32
  }
  func.func @transform_3(%arg0: i32) -> (i32, i32, i32, i32) {
    %c0_i32 = arith.constant 0 : i32
    %c0_i32_0 = arith.constant 0 : i32
    %c0_i32_1 = arith.constant 0 : i32
    %c0_i32_2 = arith.constant 0 : i32
    return %arg0, %c0_i32, %c0_i32_0, %c0_i32_1 : i32, i32, i32, i32
  }
}

module attributes {stable_mosaic.version = 11 : i64} {
  func.func @_matmul_kernel(%arg0: i32, %arg1: i32, %arg2: i32, %arg3: memref<16x32xbf16, #tpu.memory_space<vmem>>, %arg4: memref<32x32xbf16, #tpu.memory_space<vmem>>, %arg5: memref<1x32xf32, #tpu.memory_space<vmem>>, %arg6: memref<16x32xf32, #tpu.memory_space<vmem>>, %arg7: memref<16x32xf32, #tpu.memory_space<vmem>>) attributes {dimension_semantics = [#tpu.dimension_semantics<parallel>, #tpu.dimension_semantics<parallel>, #tpu.dimension_semantics<arbitrary>], iteration_bounds = array<i64: 1, 1, 1>, scalar_prefetch = 0 : i64, scratch_operands = 1 : i64, tpu.core_type = #tpu.core_type<tc>, window_params = [{transform_indices = @transform_0, window_bounds = array<i64: 16, 32>}, {transform_indices = @transform_1, window_bounds = array<i64: 32, 32>}, {transform_indices = @transform_2, window_bounds = array<i64: 1, 32>}, {transform_indices = @transform_3, window_bounds = array<i64: 16, 32>}]} {
    %c0_i32 = arith.constant 0 : i32
    %0 = arith.cmpi eq, %arg2, %c0_i32 : i32
    %1 = arith.extui %0 : i1 to i32
    %c0_i32_0 = arith.constant 0 : i32
    %2 = arith.cmpi ne, %1, %c0_i32_0 : i32
    scf.if %2 {
      %cst_10 = arith.constant 0.000000e+00 : f32
      %12 = vector.broadcast %cst_10 : f32 to vector<16x32xf32>
      %c0_11 = arith.constant 0 : index
      %c0_12 = arith.constant 0 : index
      %13 = vector.load %arg7[%c0_11, %c0_12] : memref<16x32xf32, #tpu.memory_space<vmem>>, vector<16x32xf32>
      tpu.vector_store %arg7[%c0_11, %c0_12], %12 {strides = array<i32>} : memref<16x32xf32, #tpu.memory_space<vmem>>, vector<16x32xf32>,
    } else {
    }
    %c0 = arith.constant 0 : index
    %c0_1 = arith.constant 0 : index
    %3 = vector.load %arg7[%c0, %c0_1] : memref<16x32xf32, #tpu.memory_space<vmem>>, vector<16x32xf32>
    %c0_2 = arith.constant 0 : index
    %c0_3 = arith.constant 0 : index
    %4 = vector.load %arg3[%c0_2, %c0_3] : memref<16x32xbf16, #tpu.memory_space<vmem>>, vector<16x32xbf16>
    %c0_4 = arith.constant 0 : index
    %c0_5 = arith.constant 0 : index
    %5 = vector.load %arg4[%c0_4, %c0_5] : memref<32x32xbf16, #tpu.memory_space<vmem>>, vector<32x32xbf16>
    %cst = arith.constant dense<0.000000e+00> : vector<16x32xf32>
    %6 = tpu.matmul %4, %5, %cst {dimension_numbers = #tpu.dot_dimension_numbers<[1], [0], [0], [1], [0, 0, 1, 1], [], []>} : vector<16x32xbf16>, vector<32x32xbf16>, vector<16x32xf32> -> vector<16x32xf32>
    %7 = arith.addf %3, %6 : vector<16x32xf32>
    %c0_6 = arith.constant 0 : index
    %c0_7 = arith.constant 0 : index
    %8 = vector.load %arg7[%c0_6, %c0_7] : memref<16x32xf32, #tpu.memory_space<vmem>>, vector<16x32xf32>
    tpu.vector_store %arg7[%c0_6, %c0_7], %7 {strides = array<i32>} : memref<16x32xf32, #tpu.memory_space<vmem>>, vector<16x32xf32>,
    %c0_i32_8 = arith.constant 0 : i32
    %9 = arith.cmpi eq, %arg2, %c0_i32_8 : i32
    %10 = arith.extui %9 : i1 to i32
    %c0_i32_9 = arith.constant 0 : i32
    %11 = arith.cmpi ne, %10, %c0_i32_9 : i32
    scf.if %11 {
      %c0_10 = arith.constant 0 : index
      %c0_11 = arith.constant 0 : index
      %12 = vector.load %arg7[%c0_10, %c0_11] : memref<16x32xf32, #tpu.memory_space<vmem>>, vector<16x32xf32>
      %c0_12 = arith.constant 0 : index
      %c0_13 = arith.constant 0 : index
      %13 = vector.load %arg5[%c0_12, %c0_13] : memref<1x32xf32, #tpu.memory_space<vmem>>, vector<1x32xf32>
      %14 = vector.broadcast %13 : vector<1x32xf32> to vector<16x32xf32>
      %15 = arith.addf %12, %14 : vector<16x32xf32>
      %c0_14 = arith.constant 0 : index
      %c0_15 = arith.constant 0 : index
      %16 = vector.load %arg6[%c0_14, %c0_15] : memref<16x32xf32, #tpu.memory_space<vmem>>, vector<16x32xf32>
      tpu.vector_store %arg6[%c0_14, %c0_15], %15 {strides = array<i32>} : memref<16x32xf32, #tpu.memory_space<vmem>>, vector<16x32xf32>,
    } else {
    }
    return
  }
  func.func @transform_0(%arg0: i32, %arg1: i32, %arg2: i32) -> (i32, i32) {
    %c0_i32 = arith.constant 0 : i32
    return %arg0, %arg2 : i32, i32
  }
  func.func @transform_1(%arg0: i32, %arg1: i32, %arg2: i32) -> (i32, i32) {
    %c0_i32 = arith.constant 0 : i32
    return %arg2, %arg1 : i32, i32
  }
  func.func @transform_2(%arg0: i32, %arg1: i32, %arg2: i32) -> (i32, i32) {
    %c0_i32 = arith.constant 0 : i32
    %c0_i32_0 = arith.constant 0 : i32
    return %c0_i32, %arg1 : i32, i32
  }
  func.func @transform_3(%arg0: i32, %arg1: i32, %arg2: i32) -> (i32, i32) {
    %c0_i32 = arith.constant 0 : i32
    return %arg0, %arg1 : i32, i32
  }
}

module attributes {stable_mosaic.version = 11 : i64} {
  func.func @_add_ln_kernel(%arg0: i32, %arg1: memref<16x32xf32, #tpu.memory_space<vmem>>, %arg2: memref<16x32xf32, #tpu.memory_space<vmem>>, %arg3: memref<1x32xf32, #tpu.memory_space<vmem>>, %arg4: memref<1x32xf32, #tpu.memory_space<vmem>>, %arg5: memref<16x32xf32, #tpu.memory_space<vmem>>) attributes {dimension_semantics = [#tpu.dimension_semantics<parallel>], iteration_bounds = array<i64: 1>, scalar_prefetch = 0 : i64, scratch_operands = 0 : i64, tpu.core_type = #tpu.core_type<tc>, window_params = [{transform_indices = @transform_0, window_bounds = array<i64: 16, 32>}, {transform_indices = @transform_1, window_bounds = array<i64: 16, 32>}, {pipeline_mode = #tpu.pipeline_mode<synchronous>, transform_indices = @transform_2, window_bounds = array<i64: 1, 32>}, {pipeline_mode = #tpu.pipeline_mode<synchronous>, transform_indices = @transform_3, window_bounds = array<i64: 1, 32>}, {transform_indices = @transform_4, window_bounds = array<i64: 16, 32>}]} {
    %c0 = arith.constant 0 : index
    %c0_0 = arith.constant 0 : index
    %0 = vector.load %arg1[%c0, %c0_0] : memref<16x32xf32, #tpu.memory_space<vmem>>, vector<16x32xf32>
    %c0_1 = arith.constant 0 : index
    %c0_2 = arith.constant 0 : index
    %1 = vector.load %arg2[%c0_1, %c0_2] : memref<16x32xf32, #tpu.memory_space<vmem>>, vector<16x32xf32>
    %2 = arith.addf %0, %1 : vector<16x32xf32>
    %c0_3 = arith.constant 0 : index
    %c0_4 = arith.constant 0 : index
    %3 = vector.load %arg3[%c0_3, %c0_4] : memref<1x32xf32, #tpu.memory_space<vmem>>, vector<1x32xf32>
    %c0_5 = arith.constant 0 : index
    %c0_6 = arith.constant 0 : index
    %4 = vector.load %arg4[%c0_5, %c0_6] : memref<1x32xf32, #tpu.memory_space<vmem>>, vector<1x32xf32>
    %cst = arith.constant dense<0.000000e+00> : vector<16xf32>
    %5 = vector.multi_reduction <add>, %2, %cst [1] : vector<16x32xf32> to vector<16xf32>
    %6 = vector.shape_cast %5 : vector<16xf32> to vector<16x1xf32>
    %cst_7 = arith.constant 3.200000e+01 : f32
    %7 = vector.broadcast %cst_7 : f32 to vector<16x1xf32>
    %8 = arith.divf %6, %7 : vector<16x1xf32>
    %9 = vector.broadcast %8 : vector<16x1xf32> to vector<16x32xf32>
    %10 = arith.subf %2, %9 : vector<16x32xf32>
    %11 = arith.mulf %10, %10 : vector<16x32xf32>
    %cst_8 = arith.constant dense<0.000000e+00> : vector<16xf32>
    %12 = vector.multi_reduction <add>, %11, %cst_8 [1] : vector<16x32xf32> to vector<16xf32>
    %13 = vector.shape_cast %12 : vector<16xf32> to vector<16x1xf32>
    %cst_9 = arith.constant 3.200000e+01 : f32
    %14 = vector.broadcast %cst_9 : f32 to vector<16x1xf32>
    %15 = arith.divf %13, %14 : vector<16x1xf32>
    %16 = vector.broadcast %8 : vector<16x1xf32> to vector<16x32xf32>
    %17 = arith.subf %2, %16 : vector<16x32xf32>
    %cst_10 = arith.constant 9.99999974E-6 : f32
    %18 = vector.broadcast %cst_10 : f32 to vector<16x1xf32>
    %19 = arith.addf %15, %18 : vector<16x1xf32>
    %20 = math.rsqrt %19 : vector<16x1xf32>
    %21 = vector.broadcast %20 : vector<16x1xf32> to vector<16x32xf32>
    %22 = arith.mulf %17, %21 : vector<16x32xf32>
    %23 = vector.broadcast %3 : vector<1x32xf32> to vector<16x32xf32>
    %24 = arith.mulf %22, %23 : vector<16x32xf32>
    %25 = vector.broadcast %4 : vector<1x32xf32> to vector<16x32xf32>
    %26 = arith.addf %24, %25 : vector<16x32xf32>
    %c0_11 = arith.constant 0 : index
    %c0_12 = arith.constant 0 : index
    %27 = vector.load %arg5[%c0_11, %c0_12] : memref<16x32xf32, #tpu.memory_space<vmem>>, vector<16x32xf32>
    tpu.vector_store %arg5[%c0_11, %c0_12], %26 {strides = array<i32>} : memref<16x32xf32, #tpu.memory_space<vmem>>, vector<16x32xf32>,
    return
  }
  func.func @transform_0(%arg0: i32) -> (i32, i32) {
    %c0_i32 = arith.constant 0 : i32
    %c0_i32_0 = arith.constant 0 : i32
    return %arg0, %c0_i32 : i32, i32
  }
  func.func @transform_1(%arg0: i32) -> (i32, i32) {
    %c0_i32 = arith.constant 0 : i32
    %c0_i32_0 = arith.constant 0 : i32
    return %arg0, %c0_i32 : i32, i32
  }
  func.func @transform_2(%arg0: i32) -> (i32, i32) {
    %c0_i32 = arith.constant 0 : i32
    %c0_i32_0 = arith.constant 0 : i32
    %c0_i32_1 = arith.constant 0 : i32
    return %c0_i32, %c0_i32_0 : i32, i32
  }
  func.func @transform_3(%arg0: i32) -> (i32, i32) {
    %c0_i32 = arith.constant 0 : i32
    %c0_i32_0 = arith.constant 0 : i32
    %c0_i32_1 = arith.constant 0 : i32
    return %c0_i32, %c0_i32_0 : i32, i32
  }
  func.func @transform_4(%arg0: i32) -> (i32, i32) {
    %c0_i32 = arith.constant 0 : i32
    %c0_i32_0 = arith.constant 0 : i32
    return %arg0, %c0_i32 : i32, i32
  }
}

module attributes {stable_mosaic.version = 11 : i64} {
  func.func @_matmul_kernel(%arg0: i32, %arg1: i32, %arg2: i32, %arg3: memref<16x32xbf16, #tpu.memory_space<vmem>>, %arg4: memref<32x64xbf16, #tpu.memory_space<vmem>>, %arg5: memref<1x64xf32, #tpu.memory_space<vmem>>, %arg6: memref<16x64xf32, #tpu.memory_space<vmem>>, %arg7: memref<16x64xf32, #tpu.memory_space<vmem>>) attributes {dimension_semantics = [#tpu.dimension_semantics<parallel>, #tpu.dimension_semantics<parallel>, #tpu.dimension_semantics<arbitrary>], iteration_bounds = array<i64: 1, 1, 1>, scalar_prefetch = 0 : i64, scratch_operands = 1 : i64, tpu.core_type = #tpu.core_type<tc>, window_params = [{transform_indices = @transform_0, window_bounds = array<i64: 16, 32>}, {transform_indices = @transform_1, window_bounds = array<i64: 32, 64>}, {transform_indices = @transform_2, window_bounds = array<i64: 1, 64>}, {transform_indices = @transform_3, window_bounds = array<i64: 16, 64>}]} {
    %c0_i32 = arith.constant 0 : i32
    %0 = arith.cmpi eq, %arg2, %c0_i32 : i32
    %1 = arith.extui %0 : i1 to i32
    %c0_i32_0 = arith.constant 0 : i32
    %2 = arith.cmpi ne, %1, %c0_i32_0 : i32
    scf.if %2 {
      %cst_10 = arith.constant 0.000000e+00 : f32
      %12 = vector.broadcast %cst_10 : f32 to vector<16x64xf32>
      %c0_11 = arith.constant 0 : index
      %c0_12 = arith.constant 0 : index
      %13 = vector.load %arg7[%c0_11, %c0_12] : memref<16x64xf32, #tpu.memory_space<vmem>>, vector<16x64xf32>
      tpu.vector_store %arg7[%c0_11, %c0_12], %12 {strides = array<i32>} : memref<16x64xf32, #tpu.memory_space<vmem>>, vector<16x64xf32>,
    } else {
    }
    %c0 = arith.constant 0 : index
    %c0_1 = arith.constant 0 : index
    %3 = vector.load %arg7[%c0, %c0_1] : memref<16x64xf32, #tpu.memory_space<vmem>>, vector<16x64xf32>
    %c0_2 = arith.constant 0 : index
    %c0_3 = arith.constant 0 : index
    %4 = vector.load %arg3[%c0_2, %c0_3] : memref<16x32xbf16, #tpu.memory_space<vmem>>, vector<16x32xbf16>
    %c0_4 = arith.constant 0 : index
    %c0_5 = arith.constant 0 : index
    %5 = vector.load %arg4[%c0_4, %c0_5] : memref<32x64xbf16, #tpu.memory_space<vmem>>, vector<32x64xbf16>
    %cst = arith.constant dense<0.000000e+00> : vector<16x64xf32>
    %6 = tpu.matmul %4, %5, %cst {dimension_numbers = #tpu.dot_dimension_numbers<[1], [0], [0], [1], [0, 0, 1, 1], [], []>} : vector<16x32xbf16>, vector<32x64xbf16>, vector<16x64xf32> -> vector<16x64xf32>
    %7 = arith.addf %3, %6 : vector<16x64xf32>
    %c0_6 = arith.constant 0 : index
    %c0_7 = arith.constant 0 : index
    %8 = vector.load %arg7[%c0_6, %c0_7] : memref<16x64xf32, #tpu.memory_space<vmem>>, vector<16x64xf32>
    tpu.vector_store %arg7[%c0_6, %c0_7], %7 {strides = array<i32>} : memref<16x64xf32, #tpu.memory_space<vmem>>, vector<16x64xf32>,
    %c0_i32_8 = arith.constant 0 : i32
    %9 = arith.cmpi eq, %arg2, %c0_i32_8 : i32
    %10 = arith.extui %9 : i1 to i32
    %c0_i32_9 = arith.constant 0 : i32
    %11 = arith.cmpi ne, %10, %c0_i32_9 : i32
    scf.if %11 {
      %c0_10 = arith.constant 0 : index
      %c0_11 = arith.constant 0 : index
      %12 = vector.load %arg7[%c0_10, %c0_11] : memref<16x64xf32, #tpu.memory_space<vmem>>, vector<16x64xf32>
      %c0_12 = arith.constant 0 : index
      %c0_13 = arith.constant 0 : index
      %13 = vector.load %arg5[%c0_12, %c0_13] : memref<1x64xf32, #tpu.memory_space<vmem>>, vector<1x64xf32>
      %14 = vector.broadcast %13 : vector<1x64xf32> to vector<16x64xf32>
      %15 = arith.addf %12, %14 : vector<16x64xf32>
      %cst_14 = arith.constant 0.000000e+00 : f32
      %16 = vector.broadcast %cst_14 : f32 to vector<16x64xf32>
      %17 = arith.maximumf %15, %16 : vector<16x64xf32>
      %c0_15 = arith.constant 0 : index
      %c0_16 = arith.constant 0 : index
      %18 = vector.load %arg6[%c0_15, %c0_16] : memref<16x64xf32, #tpu.memory_space<vmem>>, vector<16x64xf32>
      tpu.vector_store %arg6[%c0_15, %c0_16], %17 {strides = array<i32>} : memref<16x64xf32, #tpu.memory_space<vmem>>, vector<16x64xf32>,
    } else {
    }
    return
  }
  func.func @transform_0(%arg0: i32, %arg1: i32, %arg2: i32) -> (i32, i32) {
    %c0_i32 = arith.constant 0 : i32
    return %arg0, %arg2 : i32, i32
  }
  func.func @transform_1(%arg0: i32, %arg1: i32, %arg2: i32) -> (i32, i32) {
    %c0_i32 = arith.constant 0 : i32
    return %arg2, %arg1 : i32, i32
  }
  func.func @transform_2(%arg0: i32, %arg1: i32, %arg2: i32) -> (i32, i32) {
    %c0_i32 = arith.constant 0 : i32
    %c0_i32_0 = arith.constant 0 : i32
    return %c0_i32, %arg1 : i32, i32
  }
  func.func @transform_3(%arg0: i32, %arg1: i32, %arg2: i32) -> (i32, i32) {
    %c0_i32 = arith.constant 0 : i32
    return %arg0, %arg1 : i32, i32
  }
}

module attributes {stable_mosaic.version = 11 : i64} {
  func.func @_matmul_kernel(%arg0: i32, %arg1: i32, %arg2: i32, %arg3: memref<16x64xbf16, #tpu.memory_space<vmem>>, %arg4: memref<64x32xbf16, #tpu.memory_space<vmem>>, %arg5: memref<1x32xf32, #tpu.memory_space<vmem>>, %arg6: memref<16x32xf32, #tpu.memory_space<vmem>>, %arg7: memref<16x32xf32, #tpu.memory_space<vmem>>) attributes {dimension_semantics = [#tpu.dimension_semantics<parallel>, #tpu.dimension_semantics<parallel>, #tpu.dimension_semantics<arbitrary>], iteration_bounds = array<i64: 1, 1, 1>, scalar_prefetch = 0 : i64, scratch_operands = 1 : i64, tpu.core_type = #tpu.core_type<tc>, window_params = [{transform_indices = @transform_0, window_bounds = array<i64: 16, 64>}, {transform_indices = @transform_1, window_bounds = array<i64: 64, 32>}, {transform_indices = @transform_2, window_bounds = array<i64: 1, 32>}, {transform_indices = @transform_3, window_bounds = array<i64: 16, 32>}]} {
    %c0_i32 = arith.constant 0 : i32
    %0 = arith.cmpi eq, %arg2, %c0_i32 : i32
    %1 = arith.extui %0 : i1 to i32
    %c0_i32_0 = arith.constant 0 : i32
    %2 = arith.cmpi ne, %1, %c0_i32_0 : i32
    scf.if %2 {
      %cst_10 = arith.constant 0.000000e+00 : f32
      %12 = vector.broadcast %cst_10 : f32 to vector<16x32xf32>
      %c0_11 = arith.constant 0 : index
      %c0_12 = arith.constant 0 : index
      %13 = vector.load %arg7[%c0_11, %c0_12] : memref<16x32xf32, #tpu.memory_space<vmem>>, vector<16x32xf32>
      tpu.vector_store %arg7[%c0_11, %c0_12], %12 {strides = array<i32>} : memref<16x32xf32, #tpu.memory_space<vmem>>, vector<16x32xf32>,
    } else {
    }
    %c0 = arith.constant 0 : index
    %c0_1 = arith.constant 0 : index
    %3 = vector.load %arg7[%c0, %c0_1] : memref<16x32xf32, #tpu.memory_space<vmem>>, vector<16x32xf32>
    %c0_2 = arith.constant 0 : index
    %c0_3 = arith.constant 0 : index
    %4 = vector.load %arg3[%c0_2, %c0_3] : memref<16x64xbf16, #tpu.memory_space<vmem>>, vector<16x64xbf16>
    %c0_4 = arith.constant 0 : index
    %c0_5 = arith.constant 0 : index
    %5 = vector.load %arg4[%c0_4, %c0_5] : memref<64x32xbf16, #tpu.memory_space<vmem>>, vector<64x32xbf16>
    %cst = arith.constant dense<0.000000e+00> : vector<16x32xf32>
    %6 = tpu.matmul %4, %5, %cst {dimension_numbers = #tpu.dot_dimension_numbers<[1], [0], [0], [1], [0, 0, 1, 1], [], []>} : vector<16x64xbf16>, vector<64x32xbf16>, vector<16x32xf32> -> vector<16x32xf32>
    %7 = arith.addf %3, %6 : vector<16x32xf32>
    %c0_6 = arith.constant 0 : index
    %c0_7 = arith.constant 0 : index
    %8 = vector.load %arg7[%c0_6, %c0_7] : memref<16x32xf32, #tpu.memory_space<vmem>>, vector<16x32xf32>
    tpu.vector_store %arg7[%c0_6, %c0_7], %7 {strides = array<i32>} : memref<16x32xf32, #tpu.memory_space<vmem>>, vector<16x32xf32>,
    %c0_i32_8 = arith.constant 0 : i32
    %9 = arith.cmpi eq, %arg2, %c0_i32_8 : i32
    %10 = arith.extui %9 : i1 to i32
    %c0_i32_9 = arith.constant 0 : i32
    %11 = arith.cmpi ne, %10, %c0_i32_9 : i32
    scf.if %11 {
      %c0_10 = arith.constant 0 : index
      %c0_11 = arith.constant 0 : index
      %12 = vector.load %arg7[%c0_10, %c0_11] : memref<16x32xf32, #tpu.memory_space<vmem>>, vector<16x32xf32>
      %c0_12 = arith.constant 0 : index
      %c0_13 = arith.constant 0 : index
      %13 = vector.load %arg5[%c0_12, %c0_13] : memref<1x32xf32, #tpu.memory_space<vmem>>, vector<1x32xf32>
      %14 = vector.broadcast %13 : vector<1x32xf32> to vector<16x32xf32>
      %15 = arith.addf %12, %14 : vector<16x32xf32>
      %c0_14 = arith.constant 0 : index
      %c0_15 = arith.constant 0 : index
      %16 = vector.load %arg6[%c0_14, %c0_15] : memref<16x32xf32, #tpu.memory_space<vmem>>, vector<16x32xf32>
      tpu.vector_store %arg6[%c0_14, %c0_15], %15 {strides = array<i32>} : memref<16x32xf32, #tpu.memory_space<vmem>>, vector<16x32xf32>,
    } else {
    }
    return
  }
  func.func @transform_0(%arg0: i32, %arg1: i32, %arg2: i32) -> (i32, i32) {
    %c0_i32 = arith.constant 0 : i32
    return %arg0, %arg2 : i32, i32
  }
  func.func @transform_1(%arg0: i32, %arg1: i32, %arg2: i32) -> (i32, i32) {
    %c0_i32 = arith.constant 0 : i32
    return %arg2, %arg1 : i32, i32
  }
  func.func @transform_2(%arg0: i32, %arg1: i32, %arg2: i32) -> (i32, i32) {
    %c0_i32 = arith.constant 0 : i32
    %c0_i32_0 = arith.constant 0 : i32
    return %c0_i32, %arg1 : i32, i32
  }
  func.func @transform_3(%arg0: i32, %arg1: i32, %arg2: i32) -> (i32, i32) {
    %c0_i32 = arith.constant 0 : i32
    return %arg0, %arg1 : i32, i32
  }
}

module attributes {stable_mosaic.version = 11 : i64} {
  func.func @_ln_kernel(%arg0: i32, %arg1: memref<16x32xf32, #tpu.memory_space<vmem>>, %arg2: memref<1x32xf32, #tpu.memory_space<vmem>>, %arg3: memref<1x32xf32, #tpu.memory_space<vmem>>, %arg4: memref<16x32xf32, #tpu.memory_space<vmem>>) attributes {dimension_semantics = [#tpu.dimension_semantics<parallel>], iteration_bounds = array<i64: 1>, scalar_prefetch = 0 : i64, scratch_operands = 0 : i64, tpu.core_type = #tpu.core_type<tc>, window_params = [{transform_indices = @transform_0, window_bounds = array<i64: 16, 32>}, {pipeline_mode = #tpu.pipeline_mode<synchronous>, transform_indices = @transform_1, window_bounds = array<i64: 1, 32>}, {pipeline_mode = #tpu.pipeline_mode<synchronous>, transform_indices = @transform_2, window_bounds = array<i64: 1, 32>}, {transform_indices = @transform_3, window_bounds = array<i64: 16, 32>}]} {
    %c0 = arith.constant 0 : index
    %c0_0 = arith.constant 0 : index
    %0 = vector.load %arg1[%c0, %c0_0] : memref<16x32xf32, #tpu.memory_space<vmem>>, vector<16x32xf32>
    %c0_1 = arith.constant 0 : index
    %c0_2 = arith.constant 0 : index
    %1 = vector.load %arg2[%c0_1, %c0_2] : memref<1x32xf32, #tpu.memory_space<vmem>>, vector<1x32xf32>
    %c0_3 = arith.constant 0 : index
    %c0_4 = arith.constant 0 : index
    %2 = vector.load %arg3[%c0_3, %c0_4] : memref<1x32xf32, #tpu.memory_space<vmem>>, vector<1x32xf32>
    %cst = arith.constant dense<0.000000e+00> : vector<16xf32>
    %3 = vector.multi_reduction <add>, %0, %cst [1] : vector<16x32xf32> to vector<16xf32>
    %4 = vector.shape_cast %3 : vector<16xf32> to vector<16x1xf32>
    %cst_5 = arith.constant 3.200000e+01 : f32
    %5 = vector.broadcast %cst_5 : f32 to vector<16x1xf32>
    %6 = arith.divf %4, %5 : vector<16x1xf32>
    %7 = vector.broadcast %6 : vector<16x1xf32> to vector<16x32xf32>
    %8 = arith.subf %0, %7 : vector<16x32xf32>
    %9 = arith.mulf %8, %8 : vector<16x32xf32>
    %cst_6 = arith.constant dense<0.000000e+00> : vector<16xf32>
    %10 = vector.multi_reduction <add>, %9, %cst_6 [1] : vector<16x32xf32> to vector<16xf32>
    %11 = vector.shape_cast %10 : vector<16xf32> to vector<16x1xf32>
    %cst_7 = arith.constant 3.200000e+01 : f32
    %12 = vector.broadcast %cst_7 : f32 to vector<16x1xf32>
    %13 = arith.divf %11, %12 : vector<16x1xf32>
    %14 = vector.broadcast %6 : vector<16x1xf32> to vector<16x32xf32>
    %15 = arith.subf %0, %14 : vector<16x32xf32>
    %cst_8 = arith.constant 9.99999974E-6 : f32
    %16 = vector.broadcast %cst_8 : f32 to vector<16x1xf32>
    %17 = arith.addf %13, %16 : vector<16x1xf32>
    %18 = math.rsqrt %17 : vector<16x1xf32>
    %19 = vector.broadcast %18 : vector<16x1xf32> to vector<16x32xf32>
    %20 = arith.mulf %15, %19 : vector<16x32xf32>
    %21 = vector.broadcast %1 : vector<1x32xf32> to vector<16x32xf32>
    %22 = arith.mulf %20, %21 : vector<16x32xf32>
    %23 = vector.broadcast %2 : vector<1x32xf32> to vector<16x32xf32>
    %24 = arith.addf %22, %23 : vector<16x32xf32>
    %c0_9 = arith.constant 0 : index
    %c0_10 = arith.constant 0 : index
    %25 = vector.load %arg4[%c0_9, %c0_10] : memref<16x32xf32, #tpu.memory_space<vmem>>, vector<16x32xf32>
    tpu.vector_store %arg4[%c0_9, %c0_10], %24 {strides = array<i32>} : memref<16x32xf32, #tpu.memory_space<vmem>>, vector<16x32xf32>,
    return
  }
  func.func @transform_0(%arg0: i32) -> (i32, i32) {
    %c0_i32 = arith.constant 0 : i32
    %c0_i32_0 = arith.constant 0 : i32
    return %arg0, %c0_i32 : i32, i32
  }
  func.func @transform_1(%arg0: i32) -> (i32, i32) {
    %c0_i32 = arith.constant 0 : i32
    %c0_i32_0 = arith.constant 0 : i32
    %c0_i32_1 = arith.constant 0 : i32
    return %c0_i32, %c0_i32_0 : i32, i32
  }
  func.func @transform_2(%arg0: i32) -> (i32, i32) {
    %c0_i32 = arith.constant 0 : i32
    %c0_i32_0 = arith.constant 0 : i32
    %c0_i32_1 = arith.constant 0 : i32
    return %c0_i32, %c0_i32_0 : i32, i32
  }
  func.func @transform_3(%arg0: i32) -> (i32, i32) {
    %c0_i32 = arith.constant 0 : i32
    %c0_i32_0 = arith.constant 0 : i32
    return %arg0, %c0_i32 : i32, i32
  }
}

module attributes {stable_mosaic.version = 11 : i64} {
  func.func @_matmul_kernel(%arg0: i32, %arg1: i32, %arg2: i32, %arg3: memref<16x32xbf16, #tpu.memory_space<vmem>>, %arg4: memref<32x64xbf16, #tpu.memory_space<vmem>>, %arg5: memref<1x64xf32, #tpu.memory_space<vmem>>, %arg6: memref<16x64xf32, #tpu.memory_space<vmem>>, %arg7: memref<16x64xf32, #tpu.memory_space<vmem>>) attributes {dimension_semantics = [#tpu.dimension_semantics<parallel>, #tpu.dimension_semantics<parallel>, #tpu.dimension_semantics<arbitrary>], iteration_bounds = array<i64: 1, 1, 1>, scalar_prefetch = 0 : i64, scratch_operands = 1 : i64, tpu.core_type = #tpu.core_type<tc>, window_params = [{transform_indices = @transform_0, window_bounds = array<i64: 16, 32>}, {transform_indices = @transform_1, window_bounds = array<i64: 32, 64>}, {transform_indices = @transform_2, window_bounds = array<i64: 1, 64>}, {transform_indices = @transform_3, window_bounds = array<i64: 16, 64>}]} {
    %c0_i32 = arith.constant 0 : i32
    %0 = arith.cmpi eq, %arg2, %c0_i32 : i32
    %1 = arith.extui %0 : i1 to i32
    %c0_i32_0 = arith.constant 0 : i32
    %2 = arith.cmpi ne, %1, %c0_i32_0 : i32
    scf.if %2 {
      %cst_10 = arith.constant 0.000000e+00 : f32
      %12 = vector.broadcast %cst_10 : f32 to vector<16x64xf32>
      %c0_11 = arith.constant 0 : index
      %c0_12 = arith.constant 0 : index
      %13 = vector.load %arg7[%c0_11, %c0_12] : memref<16x64xf32, #tpu.memory_space<vmem>>, vector<16x64xf32>
      tpu.vector_store %arg7[%c0_11, %c0_12], %12 {strides = array<i32>} : memref<16x64xf32, #tpu.memory_space<vmem>>, vector<16x64xf32>,
    } else {
    }
    %c0 = arith.constant 0 : index
    %c0_1 = arith.constant 0 : index
    %3 = vector.load %arg7[%c0, %c0_1] : memref<16x64xf32, #tpu.memory_space<vmem>>, vector<16x64xf32>
    %c0_2 = arith.constant 0 : index
    %c0_3 = arith.constant 0 : index
    %4 = vector.load %arg3[%c0_2, %c0_3] : memref<16x32xbf16, #tpu.memory_space<vmem>>, vector<16x32xbf16>
    %c0_4 = arith.constant 0 : index
    %c0_5 = arith.constant 0 : index
    %5 = vector.load %arg4[%c0_4, %c0_5] : memref<32x64xbf16, #tpu.memory_space<vmem>>, vector<32x64xbf16>
    %cst = arith.constant dense<0.000000e+00> : vector<16x64xf32>
    %6 = tpu.matmul %4, %5, %cst {dimension_numbers = #tpu.dot_dimension_numbers<[1], [0], [0], [1], [0, 0, 1, 1], [], []>} : vector<16x32xbf16>, vector<32x64xbf16>, vector<16x64xf32> -> vector<16x64xf32>
    %7 = arith.addf %3, %6 : vector<16x64xf32>
    %c0_6 = arith.constant 0 : index
    %c0_7 = arith.constant 0 : index
    %8 = vector.load %arg7[%c0_6, %c0_7] : memref<16x64xf32, #tpu.memory_space<vmem>>, vector<16x64xf32>
    tpu.vector_store %arg7[%c0_6, %c0_7], %7 {strides = array<i32>} : memref<16x64xf32, #tpu.memory_space<vmem>>, vector<16x64xf32>,
    %c0_i32_8 = arith.constant 0 : i32
    %9 = arith.cmpi eq, %arg2, %c0_i32_8 : i32
    %10 = arith.extui %9 : i1 to i32
    %c0_i32_9 = arith.constant 0 : i32
    %11 = arith.cmpi ne, %10, %c0_i32_9 : i32
    scf.if %11 {
      %c0_10 = arith.constant 0 : index
      %c0_11 = arith.constant 0 : index
      %12 = vector.load %arg7[%c0_10, %c0_11] : memref<16x64xf32, #tpu.memory_space<vmem>>, vector<16x64xf32>
      %c0_12 = arith.constant 0 : index
      %c0_13 = arith.constant 0 : index
      %13 = vector.load %arg5[%c0_12, %c0_13] : memref<1x64xf32, #tpu.memory_space<vmem>>, vector<1x64xf32>
      %14 = vector.broadcast %13 : vector<1x64xf32> to vector<16x64xf32>
      %15 = arith.addf %12, %14 : vector<16x64xf32>
      %c0_14 = arith.constant 0 : index
      %c0_15 = arith.constant 0 : index
      %16 = vector.load %arg6[%c0_14, %c0_15] : memref<16x64xf32, #tpu.memory_space<vmem>>, vector<16x64xf32>
      tpu.vector_store %arg6[%c0_14, %c0_15], %15 {strides = array<i32>} : memref<16x64xf32, #tpu.memory_space<vmem>>, vector<16x64xf32>,
    } else {
    }
    return
  }
  func.func @transform_0(%arg0: i32, %arg1: i32, %arg2: i32) -> (i32, i32) {
    %c0_i32 = arith.constant 0 : i32
    return %arg0, %arg2 : i32, i32
  }
  func.func @transform_1(%arg0: i32, %arg1: i32, %arg2: i32) -> (i32, i32) {
    %c0_i32 = arith.constant 0 : i32
    return %arg2, %arg1 : i32, i32
  }
  func.func @transform_2(%arg0: i32, %arg1: i32, %arg2: i32) -> (i32, i32) {
    %c0_i32 = arith.constant 0 : i32
    %c0_i32_0 = arith.constant 0 : i32
    return %c0_i32, %arg1 : i32, i32
  }
  func.func @transform_3(%arg0: i32, %arg1: i32, %arg2: i32) -> (i32, i32) {
    %c0_i32 = arith.constant 0 : i32
    return %arg0, %arg1 : i32, i32
  }
}

module attributes {stable_mosaic.version = 11 : i64} {
  func.func @_attention_kernel(%arg0: i32, %arg1: memref<1x4x8x8xbf16, #tpu.memory_space<vmem>>, %arg2: memref<1x4x8x8xbf16, #tpu.memory_space<vmem>>, %arg3: memref<1x4x8x8xbf16, #tpu.memory_space<vmem>>, %arg4: memref<1x4x8x8xf32, #tpu.memory_space<vmem>>) attributes {dimension_semantics = [#tpu.dimension_semantics<parallel>], iteration_bounds = array<i64: 2>, scalar_prefetch = 0 : i64, scratch_operands = 0 : i64, tpu.core_type = #tpu.core_type<tc>, window_params = [{transform_indices = @transform_0, window_bounds = array<i64: 1, 4, 8, 8>}, {transform_indices = @transform_1, window_bounds = array<i64: 1, 4, 8, 8>}, {transform_indices = @transform_2, window_bounds = array<i64: 1, 4, 8, 8>}, {transform_indices = @transform_3, window_bounds = array<i64: 1, 4, 8, 8>}]} {
    %c0 = arith.constant 0 : index
    %c0_0 = arith.constant 0 : index
    %c0_1 = arith.constant 0 : index
    %c0_2 = arith.constant 0 : index
    %0 = vector.load %arg1[%c0, %c0_0, %c0_1, %c0_2] : memref<1x4x8x8xbf16, #tpu.memory_space<vmem>>, vector<1x4x8x8xbf16>
    %1 = vector.shape_cast %0 : vector<1x4x8x8xbf16> to vector<4x8x8xbf16>
    %c0_3 = arith.constant 0 : index
    %c0_4 = arith.constant 0 : index
    %c0_5 = arith.constant 0 : index
    %c0_6 = arith.constant 0 : index
    %2 = vector.load %arg2[%c0_3, %c0_4, %c0_5, %c0_6] : memref<1x4x8x8xbf16, #tpu.memory_space<vmem>>, vector<1x4x8x8xbf16>
    %3 = vector.shape_cast %2 : vector<1x4x8x8xbf16> to vector<4x8x8xbf16>
    %c0_7 = arith.constant 0 : index
    %c0_8 = arith.constant 0 : index
    %c0_9 = arith.constant 0 : index
    %c0_10 = arith.constant 0 : index
    %4 = vector.load %arg3[%c0_7, %c0_8, %c0_9, %c0_10] : memref<1x4x8x8xbf16, #tpu.memory_space<vmem>>, vector<1x4x8x8xbf16>
    %5 = vector.shape_cast %4 : vector<1x4x8x8xbf16> to vector<4x8x8xbf16>
    "tpu.trace_start"() <{level = 10 : i32, message = "hqd,hkd->hqk"}> : () -> ()
    %cst = arith.constant dense<0.000000e+00> : vector<4x8x8xf32>
    %6 = tpu.matmul %1, %3, %cst {dimension_numbers = #tpu.dot_dimension_numbers<[2], [2], [1], [1], [0, 0, 0, 1, 1, 1], [0], [0]>} : vector<4x8x8xbf16>, vector<4x8x8xbf16>, vector<4x8x8xf32> -> vector<4x8x8xf32>
    "tpu.trace_stop"() : () -> ()
    %cst_11 = arith.constant 0.353553385 : f32
    %7 = vector.broadcast %cst_11 : f32 to vector<4x8x8xf32>
    %8 = arith.mulf %6, %7 : vector<4x8x8xf32>
    %cst_12 = arith.constant dense<0xFF800000> : vector<4x8xf32>
    %9 = vector.multi_reduction <maximumf>, %8, %cst_12 [2] : vector<4x8x8xf32> to vector<4x8xf32>
    %10 = vector.shape_cast %9 : vector<4x8xf32> to vector<4x8x1xf32>
    %11 = vector.broadcast %10 : vector<4x8x1xf32> to vector<4x8x8xf32>
    %12 = arith.subf %8, %11 : vector<4x8x8xf32>
    %13 = math.exp %12 : vector<4x8x8xf32>
    %cst_13 = arith.constant dense<0.000000e+00> : vector<4x8xf32>
    %14 = vector.multi_reduction <add>, %13, %cst_13 [2] : vector<4x8x8xf32> to vector<4x8xf32>
    %15 = vector.shape_cast %14 : vector<4x8xf32> to vector<4x8x1xf32>
    %16 = tpu.reciprocal %15 {approx = true} : vector<4x8x1xf32> -> vector<4x8x1xf32>
    %17 = vector.broadcast %16 : vector<4x8x1xf32> to vector<4x8x8xf32>
    %18 = arith.mulf %13, %17 : vector<4x8x8xf32>
    %19 = arith.truncf %18 : vector<4x8x8xf32> to vector<4x8x8xbf16>
    "tpu.trace_start"() <{level = 10 : i32, message = "hqk,hkd->hqd"}> : () -> ()
    %cst_14 = arith.constant dense<0.000000e+00> : vector<4x8x8xf32>
    %20 = tpu.matmul %19, %5, %cst_14 {dimension_numbers = #tpu.dot_dimension_numbers<[2], [1], [1], [2], [0, 0, 0, 1, 1, 2], [0], [0]>} : vector<4x8x8xbf16>, vector<4x8x8xbf16>, vector<4x8x8xf32> -> vector<4x8x8xf32>
    "tpu.trace_stop"() : () -> ()
    %c0_15 = arith.constant 0 : index
    %c0_16 = arith.constant 0 : index
    %c0_17 = arith.constant 0 : index
    %c0_18 = arith.constant 0 : index
    %21 = vector.load %arg4[%c0_15, %c0_16, %c0_17, %c0_18] : memref<1x4x8x8xf32, #tpu.memory_space<vmem>>, vector<1x4x8x8xf32>
    %22 = vector.shape_cast %21 : vector<1x4x8x8xf32> to vector<4x8x8xf32>
    %23 = vector.shape_cast %20 : vector<4x8x8xf32> to vector<1x4x8x8xf32>
    tpu.vector_store %arg4[%c0_15, %c0_16, %c0_17, %c0_18], %23 {strides = array<i32>} : memref<1x4x8x8xf32, #tpu.memory_space<vmem>>, vector<1x4x8x8xf32>,
    return
  }
  func.func @transform_0(%arg0: i32) -> (i32, i32, i32, i32) {
    %c0_i32 = arith.constant 0 : i32
    %c0_i32_0 = arith.constant 0 : i32
    %c0_i32_1 = arith.constant 0 : i32
    %c0_i32_2 = arith.constant 0 : i32
    return %arg0, %c0_i32, %c0_i32_0, %c0_i32_1 : i32, i32, i32, i32
  }
  func.func @transform_1(%arg0: i32) -> (i32, i32, i32, i32) {
    %c0_i32 = arith.constant 0 : i32
    %c0_i32_0 = arith.constant 0 : i32
    %c0_i32_1 = arith.constant 0 : i32
    %c0_i32_2 = arith.constant 0 : i32
    return %arg0, %c0_i32, %c0_i32_0, %c0_i32_1 : i32, i32, i32, i32
  }
  func.func @transform_2(%arg0: i32) -> (i32, i32, i32, i32) {
    %c0_i32 = arith.constant 0 : i32
    %c0_i32_0 = arith.constant 0 : i32
    %c0_i32_1 = arith.constant 0 : i32
    %c0_i32_2 = arith.constant 0 : i32
    return %arg0, %c0_i32, %c0_i32_0, %c0_i32_1 : i32, i32, i32, i32
  }
  func.func @transform_3(%arg0: i32) -> (i32, i32, i32, i32) {
    %c0_i32 = arith.constant 0 : i32
    %c0_i32_0 = arith.constant 0 : i32
    %c0_i32_1 = arith.constant 0 : i32
    %c0_i32_2 = arith.constant 0 : i32
    return %arg0, %c0_i32, %c0_i32_0, %c0_i32_1 : i32, i32, i32, i32
  }
}

</mosaic_0001>

<llo_original>
// kernel: seq2seq_forward.44
$region0: #{seq2seq_forward.44}
  #allocation0 [shape = 'u32[]', space=smem, size = 0x4, offset = 0x4, fixed_abs, tag = 'smem constant byte address 0x4 - core index']
  #allocation1 [shape = 'u32[144,128]{1,0:T(1,128)}', space=vmem, size = 0x12000, scoped, tag = 'internal scratch']
  %s0 = inlined_call_operand.vmem [shape: f32[2,8,32], index: 0, kind: input, shape index: {}]
  %s1 = inlined_call_operand.vmem [shape: f32[1,8,32], index: 1, kind: input, shape index: {}]
  %s2 = inlined_call_operand.vmem [shape: f32[2,8,32], index: 2, kind: output, shape index: {}]
  %s3 = sld [smem:[#allocation0]]
  $region41: #{seq2seq_forward.44} parent=0
    _
  %s5 = ssub.s32 1, %s3
  %s6 = scalar_select 0, %s5, %s3
  loop: start=0, step=1, limit=4
  $region2: #{seq2seq_forward.44} parent=0 // loop_pre_header
    _
  $region3: #{seq2seq_forward.44} parent=0 // loop_header
    %s8 = sphi 0, %s12
    %p9 = scmp.ge.s32.totalorder %s8, 4
    %s18 = sphi 0, %s20
    %s21 = sphi 0, %s18
    %s22 = sphi 0, %s21
    %s38 = sphi 0, %s22
    %s42 = sphi 0, %s42
    %s44 = sphi 0, %s42
    %s45 = sphi 0, %s44
    %s59 = sphi 0, %s45
    %s65 = sphi 0, %s67
    %s68 = sphi 0, %s65
    %s69 = sphi 0, %s68
    %s85 = sphi 0, %s69
  $region4: #{seq2seq_forward.44} parent=0 // loop_header_branch
    %11 = sbr.rel (%p9) target = $region8
  $region5: #{seq2seq_forward.44} parent=0 // loop_body
    %s13 = ssub.s32 %s8, 1
    %s14 = ssub.s32 %s8, 2
    %s15 = sadd.s32 %s8, 1
    %s16 = ssub.s32 %s8, %s15
    %p17 = scmp.eq.s32.totalorder %s16, 0
    %s19 = sadd.s32 %s18, 1
    %s20 = scalar_select %p17, %s18, %s19
    %p23 = pneg %p17
    %p24 = scmp.eq.s32.totalorder %s8, 1
    %p25 = por %p23, %p24
    %p26 = scmp.ne.s32.totalorder %s18, %s21
    %p27 = scmp.eq.s32.totalorder %s8, 0
    %p28 = por %p26, %p27
    %p29 = scmp.ne.s32.totalorder %s18, %s21
    %p30 = scmp.eq.s32.totalorder %s13, 1
    %p31 = por %p29, %p30
    %p32 = scmp.ne.s32.totalorder %s21, %s22
    %p33 = scmp.eq.s32.totalorder %s13, 0
    %p34 = por %p32, %p33
    %p35 = scmp.ne.s32.totalorder %s21, %s22
    %p36 = scmp.eq.s32.totalorder %s14, 1
    %p37 = por %p35, %p36
    %p39 = scmp.ne.s32.totalorder %s22, %s38
    %p40 = scmp.eq.s32.totalorder %s14, 0
    %p41 = por %p39, %p40
    %s43 = sadd.s32 %s42, 1
    %p46 = scmp.eq.s32.totalorder %s8, 1
    %p47 = scmp.ne.s32.totalorder %s42, %s44
    %p48 = scmp.eq.s32.totalorder %s8, 0
    %p49 = por %p47, %p48
    %p50 = scmp.ne.s32.totalorder %s42, %s44
    %p51 = scmp.eq.s32.totalorder %s13, 1
    %p52 = por %p50, %p51
    %p53 = scmp.ne.s32.totalorder %s44, %s45
    %p54 = scmp.eq.s32.totalorder %s13, 0
    %p55 = por %p53, %p54
    %p56 = scmp.ne.s32.totalorder %s44, %s45
    %p57 = scmp.eq.s32.totalorder %s14, 1
    %p58 = por %p56, %p57
    %p60 = scmp.ne.s32.totalorder %s45, %s59
    %p61 = scmp.eq.s32.totalorder %s14, 0
    %p62 = por %p60, %p61
    %s63 = ssub.s32 %s8, %s15
    %p64 = scmp.eq.s32.totalorder %s63, 0
    %s66 = sadd.s32 %s65, 1
    %s67 = scalar_select %p64, %s65, %s66
    %p70 = pneg %p64
    %p71 = scmp.eq.s32.totalorder %s8, 1
    %p72 = por %p70, %p71
    %p73 = scmp.ne.s32.totalorder %s65, %s68
    %p74 = scmp.eq.s32.totalorder %s8, 0
    %p75 = por %p73, %p74
    %p76 = scmp.ne.s32.totalorder %s65, %s68
    %p77 = scmp.eq.s32.totalorder %s13, 1
    %p78 = por %p76, %p77
    %p79 = scmp.ne.s32.totalorder %s68, %s69
    %p80 = scmp.eq.s32.totalorder %s13, 0
    %p81 = por %p79, %p80
    %p82 = scmp.ne.s32.totalorder %s68, %s69
    %p83 = scmp.eq.s32.totalorder %s14, 1
    %p84 = por %p82, %p83
    %p86 = scmp.ne.s32.totalorder %s69, %s85
    %p87 = scmp.eq.s32.totalorder %s14, 0
    %p88 = por %p86, %p87
    %p89 = scmp.le.s32.totalorder 1, %s8
    %p90 = scmp.lt.s32.totalorder %s8, 3
    %p91 = pnand %p89, %p90
    %p92 = pneg %p91
    // Predicated region
    $region9: #{seq2seq_forward.44} parent=5 // pred_check
      _
    $region10: #{seq2seq_forward.44} parent=5 // pred_check_branch
      %94 = sbr.rel (%p91) target = $region12
    $region11: #{seq2seq_forward.44} parent=5 // pred_region
      %s95 = ssub.s32 %s8, 1
      // Predicated region
      $region13: #{seq2seq_forward.44} parent=11 // pred_check
        %p96 = pneg %p55
      $region14: #{seq2seq_forward.44} parent=11 // pred_check_branch
        %98 = sbr.rel (%p96) target = $region16
      $region15: #{seq2seq_forward.44} parent=11 // pred_region
        _
      $region16: #{seq2seq_forward.44} parent=11 // pred_fallthru
        _
    $region12: #{seq2seq_forward.44} parent=5 // pred_fallthru
      _
    %p99 = scmp.lt.s32.totalorder %s8, 2
    // Predicated region
    $region17: #{seq2seq_forward.44} parent=5 // pred_check
      %p100 = pneg %p99
    $region18: #{seq2seq_forward.44} parent=5 // pred_check_branch
      %102 = sbr.rel (%p100) target = $region20
    $region19: #{seq2seq_forward.44} parent=5 // pred_region
      // Predicated region
      $region21: #{seq2seq_forward.44} parent=19 // pred_check
        %p103 = pneg %p28
      $region22: #{seq2seq_forward.44} parent=19 // pred_check_branch
        %105 = sbr.rel (%p103) target = $region24
      $region23: #{seq2seq_forward.44} parent=19 // pred_region
        %p106 = scmp.lt.s32.totalorder %s8, 1
        %s107 = scalar_select %p106, %s8, 1
        %s108 = smul.addr %s107, 8
        %s109 = scalar_lea.vmem %s0, %s108
      $region24: #{seq2seq_forward.44} parent=19 // pred_fallthru
        _
    $region20: #{seq2seq_forward.44} parent=5 // pred_fallthru
      _
    %p110 = scmp.le.s32.totalorder 1, %s8
    %p111 = scmp.lt.s32.totalorder %s8, 3
    %p112 = pnand %p110, %p111
    %p113 = pneg %p112
    // Predicated region
    $region25: #{seq2seq_forward.44} parent=5 // pred_check
      _
    $region26: #{seq2seq_forward.44} parent=5 // pred_check_branch
      %115 = sbr.rel (%p112) target = $region28
    $region27: #{seq2seq_forward.44} parent=5 // pred_region
      %s116 = ssub.s32 %s8, 1
      %p117 = scmp.lt.s32.totalorder %s13, 1
      %s118 = scalar_select %p117, %s13, 1
      %s119 = smul.addr %s118, 8
      %s120 = scalar_lea.vmem %s0, %s119
      %p121 = pneg %p34
      %p122 = pneg %p31
      %p123 = pneg %p55
      %p124 = pneg %p52
      %p125 = pneg %p81
      %p126 = pneg %p78
      %p127 = scmp.lt.s32.totalorder %s13, 1
      %s128 = scalar_select %p127, %s13, 1
      %s129 = smul.addr %s128, 8
      %s130 = scalar_lea.vmem %s2, %s129
      %p131 = scmp.lt.s32.totalorder %s13, 1
      %s132 = scalar_select %p131, %s13, 1
      %s133 = smul.addr %s132, 8
      %s134 = scalar_lea.vmem %s0, %s133
      %p135 = scmp.lt.s32.totalorder %s13, 1
      %s136 = scalar_select %p135, %s13, 1
      %s137 = smul.addr %s136, 8
      %s138 = scalar_lea.vmem %s2, %s137
      %v139 = vld [vmem:[%s134] sm:$0xff]
      %vm140 = vcmp.lt.f32.partialorder %v139, 0.0
      %v141 = vceil.f32 %v139
      %v142 = vfloor.f32 %v139
      %v143 = vsel %vm140, %v141, %v142
      %v144 = vmul.f32 %v143, 5.656854
      %v145 = vld [vmem:[%s1] sm:$0xff]
      %v146 = vadd.f32 %v144, %v145
      %vm147 = vcmask 261120
      %148 = vst.msk [vmem:[%s138] sm:$0xff] %vm147, %v146
      %p149 = scmp.lt.s32.totalorder %s13, 1
      %s150 = scalar_select %p149, %s13, 1
      %s151 = smul.addr %s150, 8
      %s152 = scalar_lea.vmem %s2, %s151
      // Predicated region
      $region29: #{seq2seq_forward.44} parent=27 // pred_check
        %p153 = pneg %p78
      $region30: #{seq2seq_forward.44} parent=27 // pred_check_branch
        %155 = sbr.rel (%p153) target = $region32
      $region31: #{seq2seq_forward.44} parent=27 // pred_region
        _
      $region32: #{seq2seq_forward.44} parent=27 // pred_fallthru
        _
    $region28: #{seq2seq_forward.44} parent=5 // pred_fallthru
      _
    %p156 = scmp.le.s32.totalorder 2, %s8
    // Predicated region
    $region33: #{seq2seq_forward.44} parent=5 // pred_check
      %p157 = pneg %p156
    $region34: #{seq2seq_forward.44} parent=5 // pred_check_branch
      %159 = sbr.rel (%p157) target = $region36
    $region35: #{seq2seq_forward.44} parent=5 // pred_region
      %s160 = ssub.s32 %s8, 2
      // Predicated region
      $region37: #{seq2seq_forward.44} parent=35 // pred_check
        %p161 = pneg %p84
      $region38: #{seq2seq_forward.44} parent=35 // pred_check_branch
        %163 = sbr.rel (%p161) target = $region40
      $region39: #{seq2seq_forward.44} parent=35 // pred_region
        %p164 = scmp.lt.s32.totalorder %s14, 1
        %s165 = scalar_select %p164, %s14, 1
        %s166 = smul.addr %s165, 8
        %s167 = scalar_lea.vmem %s2, %s166
      $region40: #{seq2seq_forward.44} parent=35 // pred_fallthru
        _
    $region36: #{seq2seq_forward.44} parent=5 // pred_fallthru
      _
  $region6: #{seq2seq_forward.44} parent=0 // loop_footer
    %s12 = sadd.s32 1, %s8
  $region7: #{seq2seq_forward.44} parent=0 // loop_footer_branch
    %7 = sbr.rel target = $region3
  $region8: #{seq2seq_forward.44} parent=0 // loop_exit
    _

// kernel: seq2seq_forward.60
$region0: #{seq2seq_forward.60}
  #allocation0 [shape = 'u32[]', space=smem, size = 0x4, offset = 0x4, fixed_abs, tag = 'smem constant byte address 0x4 - core index']
  #allocation1 [shape = 'u32[144,128]{1,0:T(1,128)}', space=vmem, size = 0x12000, scoped, tag = 'internal scratch']
  #allocation2 [shape = 'f32[16,96]{1,0:T(8,128)}', space=vmem, size = 0x2000, scoped, tag = 'scratch operand']
  %s0 = inlined_call_operand.vmem [shape: bf16[16,32], index: 0, kind: input, shape index: {}]
  %s1 = inlined_call_operand.vmem [shape: bf16[32,96], index: 1, kind: input, shape index: {}]
  %s2 = inlined_call_operand.vmem [shape: f32[1,96], index: 2, kind: input, shape index: {}]
  %s3 = inlined_call_operand.vmem [shape: f32[16,96], index: 3, kind: output, shape index: {}]
  %s4 = sld [smem:[#allocation0]]
  $region30: #{seq2seq_forward.60} parent=0
    _
  %s6 = ssub.s32 1, %s4
  %s7 = scalar_select 0, %s6, %s4
  // Predicated region
  $region2: #{seq2seq_forward.60} parent=0 // pred_check
    _
  $region3: #{seq2seq_forward.60} parent=0 // pred_check_branch
    %9 = sbr.rel (0) target = $region5
  $region4: #{seq2seq_forward.60} parent=0 // pred_region
    _
  $region5: #{seq2seq_forward.60} parent=0 // pred_fallthru
    _
  // Predicated region
  $region6: #{seq2seq_forward.60} parent=0 // pred_check
    _
  $region7: #{seq2seq_forward.60} parent=0 // pred_check_branch
    %11 = sbr.rel (0) target = $region9
  $region8: #{seq2seq_forward.60} parent=0 // pred_region
    _
  $region9: #{seq2seq_forward.60} parent=0 // pred_fallthru
    _
  // Predicated region
  $region10: #{seq2seq_forward.60} parent=0 // pred_check
    _
  $region11: #{seq2seq_forward.60} parent=0 // pred_check_branch
    %13 = sbr.rel (0) target = $region13
  $region12: #{seq2seq_forward.60} parent=0 // pred_region
    _
  $region13: #{seq2seq_forward.60} parent=0 // pred_fallthru
    _
  %p15 = scmp.eq.s32.totalorder 0, 0
  // Predicated region
  $region14: #{seq2seq_forward.60} parent=0 // pred_check
    %p16 = pneg %p15
  $region15: #{seq2seq_forward.60} parent=0 // pred_check_branch
    %18 = sbr.rel (%p16) target = $region17
  $region16: #{seq2seq_forward.60} parent=0 // pred_region
    %vm19 = vcmask 785408
    %20 = vst.msk [vmem:[#allocation2] sm:$0xff] %vm19, 0.0
    %21 = vst.msk [vmem:[#allocation2 + $0x8] sm:$0xff] %vm19, 0.0
  $region17: #{seq2seq_forward.60} parent=0 // pred_fallthru
    _
  %v22 = vld [vmem:[#allocation2] sm:$0xff]
  %v23 = vld [vmem:[#allocation2 + $0x8] sm:$0xff]
  %v24 = vld [vmem:[%s0] sm:$0xf]
  %v25 = vld [vmem:[%s0 + $0x4] sm:$0xf]
  %v26 = vld [vmem:[%s1] sm:$0xf]
  %v27 = vld [vmem:[%s1 + $0x4] sm:$0xf]
  %v28 = vld [vmem:[%s1 + $0x8] sm:$0xf]
  %v29 = vld [vmem:[%s1 + $0xc] sm:$0xf]
  %v32 = vunpack.c.l.b16 %v24
  %v33 = vunpack.c.l.b16 %v25
  %v34 = vpack.c.b16 %v33, %v32
  %v39 = vunpack.c.l.b16 %v26
  %v40 = vunpack.c.l.b16 %v27
  %v41 = vunpack.c.l.b16 %v28
  %v42 = vunpack.c.l.b16 %v29
  %v43 = vpack.c.b16 %v40, %v39
  %v44 = vpack.c.b16 %v42, %v41
  %vm47 = vcmask 261120
  %v49 = vsel %vm47, %v34, 0
  %51 = vmatprep.subr.bf16.mxu0 0
  %52 = vmatpush1.bf16.msra.mxu0 %v43
  %53 = vmatprep.subr.bf16.mxu0 0
  %54 = vmatpush1.bf16.msra.mxu0 %v44
  %55 = vmatprep.subr.bf16.mxu0 0
  %56 = vmatpush1.bf16.msra.mxu0 0
  %57 = vmatprep.subr.bf16.mxu0 0
  %58 = vmatpush1.bf16.msra.mxu0 0
  %59 = vmatprep.subr.bf16.mxu0 0
  %60 = vmatpush1.bf16.msra.mxu0 0
  %61 = vmatprep.subr.bf16.mxu0 0
  %62 = vmatpush1.bf16.msra.mxu0 0
  %63 = vmatprep.subr.bf16.mxu0 0
  %64 = vmatpush1.bf16.msra.mxu0 0
  %65 = vmatprep.subr.bf16.mxu0 0
  %66 = vmatpush1.bf16.msra.mxu0 0
  %67 = vmatprep.subr.bf16.mxu0 0
  %68 = vmatpush1.bf16.msra.mxu0 0
  %69 = vmatprep.subr.bf16.mxu0 0
  %70 = vmatpush1.bf16.msra.mxu0 0
  %71 = vmatprep.subr.bf16.mxu0 0
  %72 = vmatpush1.bf16.msra.mxu0 0
  %73 = vmatprep.subr.bf16.mxu0 0
  %74 = vmatpush1.bf16.msra.mxu0 0
  %75 = vmatprep.subr.bf16.mxu0 0
  %76 = vmatpush1.bf16.msra.mxu0 0
  %77 = vmatprep.subr.bf16.mxu0 0
  %78 = vmatpush1.bf16.msra.mxu0 0
  %79 = vmatprep.subr.bf16.mxu0 0
  %80 = vmatpush1.bf16.msra.mxu0 0
  %81 = vmatprep.subr.bf16.mxu0 0
  %82 = vmatpush1.bf16.msra.mxu0 0
  %83 = vmatprep.mubr.bf16.mxu0 0
  %84 = vmatmul.mubr.bf16.gmra.mrb[0].mxu0 %v49
  %v85 = vpop.f32.mrb[0].mxu0
  %v86 = vadd.f32 0.0, %v85
  %v87 = vpop.f32.mrb[0].mxu0
  %v88 = vpop.f32.mrb[0].mxu0
  %v89 = vadd.f32 0.0, %v88
  %v90 = vpop.f32.mrb[0].mxu0
  %91 = vdwg.mxu0
  %v92 = vadd.f32 %v22, %v86
  %v93 = vadd.f32 %v23, %v89
  %vm94 = vcmask 785408
  %95 = vst.msk [vmem:[#allocation2] sm:$0xff] %vm94, %v92
  %96 = vst.msk [vmem:[#allocation2 + $0x8] sm:$0xff] %vm94, %v93
  // Predicated region
  $region18: #{seq2seq_forward.60} parent=0 // pred_check
    %p97 = pneg %p15
  $region19: #{seq2seq_forward.60} parent=0 // pred_check_branch
    %99 = sbr.rel (%p97) target = $region21
  $region20: #{seq2seq_forward.60} parent=0 // pred_region
    %v100 = vld [vmem:[#allocation2] sm:$0xff]
    %v101 = vld [vmem:[#allocation2 + $0x8] sm:$0xff]
    %v102 = vld [vmem:[%s2] sm:$0x1]
    %v104 = vlaneseq
    %v105 = vshrl.u32 %v104, 7
    %v106 = vsub.s32 0, %v105
    %v107 = vrot.slane %v102, %v106
    %v109 = vadd.f32 %v100, %v107
    %v110 = vadd.f32 %v101, %v107
    %111 = vst.msk [vmem:[%s3] sm:$0xff] %vm94, %v109
    %112 = vst.msk [vmem:[%s3 + $0x8] sm:$0xff] %vm94, %v110
  $region21: #{seq2seq_forward.60} parent=0 // pred_fallthru
    _
  // Predicated region
  $region22: #{seq2seq_forward.60} parent=0 // pred_check
    _
  $region23: #{seq2seq_forward.60} parent=0 // pred_check_branch
    %114 = sbr.rel (0) target = $region25
  $region24: #{seq2seq_forward.60} parent=0 // pred_region
    _
  $region25: #{seq2seq_forward.60} parent=0 // pred_fallthru
    _
  // Predicated region
  $region26: #{seq2seq_forward.60} parent=0 // pred_check
    _
  $region27: #{seq2seq_forward.60} parent=0 // pred_check_branch
    %116 = sbr.rel (0) target = $region29
  $region28: #{seq2seq_forward.60} parent=0 // pred_region
    _
  $region29: #{seq2seq_forward.60} parent=0 // pred_fallthru
    _

// kernel: seq2seq_forward.61
$region0: #{seq2seq_forward.61}
  #allocation0 [shape = 'u32[]', space=smem, size = 0x4, offset = 0x4, fixed_abs, tag = 'smem constant byte address 0x4 - core index']
  #allocation1 [shape = 'u32[144,128]{1,0:T(1,128)}', space=vmem, size = 0x12000, scoped, tag = 'internal scratch']
  %s0 = inlined_call_operand.vmem [shape: bf16[2,4,8,8], index: 0, kind: input, shape index: {}]
  %s1 = inlined_call_operand.vmem [shape: bf16[2,4,8,8], index: 1, kind: input, shape index: {}]
  %s2 = inlined_call_operand.vmem [shape: bf16[2,4,8,8], index: 2, kind: input, shape index: {}]
  %s3 = inlined_call_operand.vmem [shape: f32[2,4,8,8], index: 3, kind: output, shape index: {}]
  %s4 = sld [smem:[#allocation0]]
  $region45: #{seq2seq_forward.61} parent=0
    _
  %s6 = ssub.s32 1, %s4
  %s7 = scalar_select 0, %s6, %s4
  loop: start=0, step=1, limit=4
  $region2: #{seq2seq_forward.61} parent=0 // loop_pre_header
    _
  $region3: #{seq2seq_forward.61} parent=0 // loop_header
    %s9 = sphi 0, %s13
    %p10 = scmp.ge.s32.totalorder %s9, 4
    %s19 = sphi 0, %s21
    %s22 = sphi 0, %s19
    %s23 = sphi 0, %s22
    %s39 = sphi 0, %s23
    %s45 = sphi 0, %s47
    %s48 = sphi 0, %s45
    %s49 = sphi 0, %s48
    %s65 = sphi 0, %s49
    %s71 = sphi 0, %s73
    %s74 = sphi 0, %s71
    %s75 = sphi 0, %s74
    %s91 = sphi 0, %s75
    %s97 = sphi 0, %s99
    %s100 = sphi 0, %s97
    %s101 = sphi 0, %s100
    %s117 = sphi 0, %s101
  $region4: #{seq2seq_forward.61} parent=0 // loop_header_branch
    %12 = sbr.rel (%p10) target = $region8
  $region5: #{seq2seq_forward.61} parent=0 // loop_body
    %s14 = ssub.s32 %s9, 1
    %s15 = ssub.s32 %s9, 2
    %s16 = sadd.s32 %s9, 1
    %s17 = ssub.s32 %s9, %s16
    %p18 = scmp.eq.s32.totalorder %s17, 0
    %s20 = sadd.s32 %s19, 1
    %s21 = scalar_select %p18, %s19, %s20
    %p24 = pneg %p18
    %p25 = scmp.eq.s32.totalorder %s9, 1
    %p26 = por %p24, %p25
    %p27 = scmp.ne.s32.totalorder %s19, %s22
    %p28 = scmp.eq.s32.totalorder %s9, 0
    %p29 = por %p27, %p28
    %p30 = scmp.ne.s32.totalorder %s19, %s22
    %p31 = scmp.eq.s32.totalorder %s14, 1
    %p32 = por %p30, %p31
    %p33 = scmp.ne.s32.totalorder %s22, %s23
    %p34 = scmp.eq.s32.totalorder %s14, 0
    %p35 = por %p33, %p34
    %p36 = scmp.ne.s32.totalorder %s22, %s23
    %p37 = scmp.eq.s32.totalorder %s15, 1
    %p38 = por %p36, %p37
    %p40 = scmp.ne.s32.totalorder %s23, %s39
    %p41 = scmp.eq.s32.totalorder %s15, 0
    %p42 = por %p40, %p41
    %s43 = ssub.s32 %s9, %s16
    %p44 = scmp.eq.s32.totalorder %s43, 0
    %s46 = sadd.s32 %s45, 1
    %s47 = scalar_select %p44, %s45, %s46
    %p50 = pneg %p44
    %p51 = scmp.eq.s32.totalorder %s9, 1
    %p52 = por %p50, %p51
    %p53 = scmp.ne.s32.totalorder %s45, %s48
    %p54 = scmp.eq.s32.totalorder %s9, 0
    %p55 = por %p53, %p54
    %p56 = scmp.ne.s32.totalorder %s45, %s48
    %p57 = scmp.eq.s32.totalorder %s14, 1
    %p58 = por %p56, %p57
    %p59 = scmp.ne.s32.totalorder %s48, %s49
    %p60 = scmp.eq.s32.totalorder %s14, 0
    %p61 = por %p59, %p60
    %p62 = scmp.ne.s32.totalorder %s48, %s49
    %p63 = scmp.eq.s32.totalorder %s15, 1
    %p64 = por %p62, %p63
    %p66 = scmp.ne.s32.totalorder %s49, %s65
    %p67 = scmp.eq.s32.totalorder %s15, 0
    %p68 = por %p66, %p67
    %s69 = ssub.s32 %s9, %s16
    %p70 = scmp.eq.s32.totalorder %s69, 0
    %s72 = sadd.s32 %s71, 1
    %s73 = scalar_select %p70, %s71, %s72
    %p76 = pneg %p70
    %p77 = scmp.eq.s32.totalorder %s9, 1
    %p78 = por %p76, %p77
    %p79 = scmp.ne.s32.totalorder %s71, %s74
    %p80 = scmp.eq.s32.totalorder %s9, 0
    %p81 = por %p79, %p80
    %p82 = scmp.ne.s32.totalorder %s71, %s74
    %p83 = scmp.eq.s32.totalorder %s14, 1
    %p84 = por %p82, %p83
    %p85 = scmp.ne.s32.totalorder %s74, %s75
    %p86 = scmp.eq.s32.totalorder %s14, 0
    %p87 = por %p85, %p86
    %p88 = scmp.ne.s32.totalorder %s74, %s75
    %p89 = scmp.eq.s32.totalorder %s15, 1
    %p90 = por %p88, %p89
    %p92 = scmp.ne.s32.totalorder %s75, %s91
    %p93 = scmp.eq.s32.totalorder %s15, 0
    %p94 = por %p92, %p93
    %s95 = ssub.s32 %s9, %s16
    %p96 = scmp.eq.s32.totalorder %s95, 0
    %s98 = sadd.s32 %s97, 1
    %s99 = scalar_select %p96, %s97, %s98
    %p102 = pneg %p96
    %p103 = scmp.eq.s32.totalorder %s9, 1
    %p104 = por %p102, %p103
    %p105 = scmp.ne.s32.totalorder %s97, %s100
    %p106 = scmp.eq.s32.totalorder %s9, 0
    %p107 = por %p105, %p106
    %p108 = scmp.ne.s32.totalorder %s97, %s100
    %p109 = scmp.eq.s32.totalorder %s14, 1
    %p110 = por %p108, %p109
    %p111 = scmp.ne.s32.totalorder %s100, %s101
    %p112 = scmp.eq.s32.totalorder %s14, 0
    %p113 = por %p111, %p112
    %p114 = scmp.ne.s32.totalorder %s100, %s101
    %p115 = scmp.eq.s32.totalorder %s15, 1
    %p116 = por %p114, %p115
    %p118 = scmp.ne.s32.totalorder %s101, %s117
    %p119 = scmp.eq.s32.totalorder %s15, 0
    %p120 = por %p118, %p119
    %p121 = scmp.le.s32.totalorder 1, %s9
    %p122 = scmp.lt.s32.totalorder %s9, 3
    %p123 = pnand %p121, %p122
    %p124 = pneg %p123
    // Predicated region
    $region9: #{seq2seq_forward.61} parent=5 // pred_check
      _
    $region10: #{seq2seq_forward.61} parent=5 // pred_check_branch
      %126 = sbr.rel (%p123) target = $region12
    $region11: #{seq2seq_forward.61} parent=5 // pred_region
      %s127 = ssub.s32 %s9, 1
    $region12: #{seq2seq_forward.61} parent=5 // pred_fallthru
      _
    %p128 = scmp.lt.s32.totalorder %s9, 2
    // Predicated region
    $region13: #{seq2seq_forward.61} parent=5 // pred_check
      %p129 = pneg %p128
    $region14: #{seq2seq_forward.61} parent=5 // pred_check_branch
      %131 = sbr.rel (%p129) target = $region16
    $region15: #{seq2seq_forward.61} parent=5 // pred_region
      // Predicated region
      $region17: #{seq2seq_forward.61} parent=15 // pred_check
        %p132 = pneg %p29
      $region18: #{seq2seq_forward.61} parent=15 // pred_check_branch
        %134 = sbr.rel (%p132) target = $region20
      $region19: #{seq2seq_forward.61} parent=15 // pred_region
        %p135 = scmp.lt.s32.totalorder %s9, 1
        %s136 = scalar_select %p135, %s9, 1
        %s137 = smul.addr %s136, 4
        %s138 = smul.addr %s137, 4
        %s139 = scalar_lea.vmem %s0, %s138
      $region20: #{seq2seq_forward.61} parent=15 // pred_fallthru
        _
      // Predicated region
      $region21: #{seq2seq_forward.61} parent=15 // pred_check
        %p140 = pneg %p55
      $region22: #{seq2seq_forward.61} parent=15 // pred_check_branch
        %142 = sbr.rel (%p140) target = $region24
      $region23: #{seq2seq_forward.61} parent=15 // pred_region
        %p143 = scmp.lt.s32.totalorder %s9, 1
        %s144 = scalar_select %p143, %s9, 1
        %s145 = smul.addr %s144, 4
        %s146 = smul.addr %s145, 4
        %s147 = scalar_lea.vmem %s1, %s146
      $region24: #{seq2seq_forward.61} parent=15 // pred_fallthru
        _
      // Predicated region
      $region25: #{seq2seq_forward.61} parent=15 // pred_check
        %p148 = pneg %p81
      $region26: #{seq2seq_forward.61} parent=15 // pred_check_branch
        %150 = sbr.rel (%p148) target = $region28
      $region27: #{seq2seq_forward.61} parent=15 // pred_region
        %p151 = scmp.lt.s32.totalorder %s9, 1
        %s152 = scalar_select %p151, %s9, 1
        %s153 = smul.addr %s152, 4
        %s154 = smul.addr %s153, 4
        %s155 = scalar_lea.vmem %s2, %s154
      $region28: #{seq2seq_forward.61} parent=15 // pred_fallthru
        _
    $region16: #{seq2seq_forward.61} parent=5 // pred_fallthru
      _
    %p156 = scmp.le.s32.totalorder 1, %s9
    %p157 = scmp.lt.s32.totalorder %s9, 3
    %p158 = pnand %p156, %p157
    %p159 = pneg %p158
    // Predicated region
    $region29: #{seq2seq_forward.61} parent=5 // pred_check
      _
    $region30: #{seq2seq_forward.61} parent=5 // pred_check_branch
      %161 = sbr.rel (%p158) target = $region32
    $region31: #{seq2seq_forward.61} parent=5 // pred_region
      %s162 = ssub.s32 %s9, 1
      %p163 = scmp.lt.s32.totalorder %s14, 1
      %s164 = scalar_select %p163, %s14, 1
      %s165 = smul.addr %s164, 4
      %s166 = smul.addr %s165, 4
      %s167 = scalar_lea.vmem %s0, %s166
      %p168 = pneg %p35
      %p169 = pneg %p32
      %p170 = scmp.lt.s32.totalorder %s14, 1
      %s171 = scalar_select %p170, %s14, 1
      %s172 = smul.addr %s171, 4
      %s173 = smul.addr %s172, 4
      %s174 = scalar_lea.vmem %s1, %s173
      %p175 = pneg %p61
      %p176 = pneg %p58
      %p177 = scmp.lt.s32.totalorder %s14, 1
      %s178 = scalar_select %p177, %s14, 1
      %s179 = smul.addr %s178, 4
      %s180 = smul.addr %s179, 4
      %s181 = scalar_lea.vmem %s2, %s180
      %p182 = pneg %p87
      %p183 = pneg %p84
      %p184 = pneg %p113
      %p185 = pneg %p110
      %p186 = scmp.lt.s32.totalorder %s14, 1
      %s187 = scalar_select %p186, %s14, 1
      %s188 = smul.addr %s187, 4
      %s189 = smul.addr %s188, 8
      %s190 = scalar_lea.vmem %s3, %s189
      %p191 = scmp.lt.s32.totalorder %s14, 1
      %s192 = scalar_select %p191, %s14, 1
      %s193 = smul.addr %s192, 4
      %s194 = smul.addr %s193, 4
      %s195 = scalar_lea.vmem %s0, %s194
      %p196 = scmp.lt.s32.totalorder %s14, 1
      %s197 = scalar_select %p196, %s14, 1
      %s198 = smul.addr %s197, 4
      %s199 = smul.addr %s198, 4
      %s200 = scalar_lea.vmem %s1, %s199
      %p201 = scmp.lt.s32.totalorder %s14, 1
      %s202 = scalar_select %p201, %s14, 1
      %s203 = smul.addr %s202, 4
      %s204 = smul.addr %s203, 4
      %s205 = scalar_lea.vmem %s2, %s204
      %p206 = scmp.lt.s32.totalorder %s14, 1
      %s207 = scalar_select %p206, %s14, 1
      %s208 = smul.addr %s207, 4
      %s209 = smul.addr %s208, 8
      %s210 = scalar_lea.vmem %s3, %s209
      %v212 = vld [vmem:[%s195] sm:$0xf]
      %v213 = vld [vmem:[%s195 + $0x4] sm:$0xf]
      %v214 = vld [vmem:[%s195 + $0x8] sm:$0xf]
      %v215 = vld [vmem:[%s195 + $0xc] sm:$0xf]
      %v216 = vld [vmem:[%s200] sm:$0xf]
      %v217 = vld [vmem:[%s200 + $0x4] sm:$0xf]
      %v218 = vld [vmem:[%s200 + $0x8] sm:$0xf]
      %v219 = vld [vmem:[%s200 + $0xc] sm:$0xf]
      %v220 = vld [vmem:[%s205] sm:$0xf]
      %v221 = vld [vmem:[%s205 + $0x4] sm:$0xf]
      %v222 = vld [vmem:[%s205 + $0x8] sm:$0xf]
      %v223 = vld [vmem:[%s205 + $0xc] sm:$0xf]
      %vm224 = vcmask 64512
      %v226 = vsel %vm224, %v212, 0
      %v229 = vsel %vm224, %v216, 0
      %231 = vmatprep.subr.bf16.mxu0 0
      %232 = vmatpush1.bf16.xpose.msra.mxu0 %v229
      %233 = vmatprep.subr.bf16.mxu0 0
      %234 = vmatpush1.bf16.xpose.msra.mxu0 0
      %235 = vmatprep.subr.bf16.mxu0 0
      %236 = vmatpush1.bf16.xpose.msra.mxu0 0
      %237 = vmatprep.subr.bf16.mxu0 0
      %238 = vmatpush1.bf16.xpose.msra.mxu0 0
      %239 = vmatprep.subr.bf16.mxu0 0
      %240 = vmatpush1.bf16.xpose.msra.mxu0 0
      %241 = vmatprep.subr.bf16.mxu0 0
      %242 = vmatpush1.bf16.xpose.msra.mxu0 0
      %243 = vmatprep.subr.bf16.mxu0 0
      %244 = vmatpush1.bf16.xpose.msra.mxu0 0
      %245 = vmatprep.subr.bf16.mxu0 0
      %246 = vmatpush1.bf16.xpose.msra.mxu0 0
      %247 = vmatprep.subr.bf16.mxu0 0
      %248 = vmatpush1.bf16.xpose.msra.mxu0 0
      %249 = vmatprep.subr.bf16.mxu0 0
      %250 = vmatpush1.bf16.xpose.msra.mxu0 0
      %251 = vmatprep.subr.bf16.mxu0 0
      %252 = vmatpush1.bf16.xpose.msra.mxu0 0
      %253 = vmatprep.subr.bf16.mxu0 0
      %254 = vmatpush1.bf16.xpose.msra.mxu0 0
      %255 = vmatprep.subr.bf16.mxu0 0
      %256 = vmatpush1.bf16.xpose.msra.mxu0 0
      %257 = vmatprep.subr.bf16.mxu0 0
      %258 = vmatpush1.bf16.xpose.msra.mxu0 0
      %259 = vmatprep.subr.bf16.mxu0 0
      %260 = vmatpush1.bf16.xpose.msra.mxu0 0
      %261 = vmatprep.subr.bf16.mxu0 0
      %262 = vmatpush1.bf16.xpose.msra.mxu0 0
      %263 = vmatprep.mubr.bf16.mxu0 0
      %264 = vmatmul.mubr.bf16.gmra.mrb[0].mxu0 %v226
      %v265 = vpop.f32.mrb[0].mxu0
      %v266 = vadd.f32 0.0, %v265
      %v267 = vpop.f32.mrb[0].mxu0
      %v268 = vpop.f32.mrb[0].mxu0
      %v269 = vpop.f32.mrb[0].mxu0
      %270 = vdwg.mxu0
      %v272 = vsel %vm224, %v213, 0
      %v275 = vsel %vm224, %v217, 0
      %277 = vmatprep.subr.bf16.mxu0 0
      %278 = vmatpush1.bf16.xpose.msra.mxu0 %v275
      %279 = vmatprep.subr.bf16.mxu0 0
      %280 = vmatpush1.bf16.xpose.msra.mxu0 0
      %281 = vmatprep.subr.bf16.mxu0 0
      %282 = vmatpush1.bf16.xpose.msra.mxu0 0
      %283 = vmatprep.subr.bf16.mxu0 0
      %284 = vmatpush1.bf16.xpose.msra.mxu0 0
      %285 = vmatprep.subr.bf16.mxu0 0
      %286 = vmatpush1.bf16.xpose.msra.mxu0 0
      %287 = vmatprep.subr.bf16.mxu0 0
      %288 = vmatpush1.bf16.xpose.msra.mxu0 0
      %289 = vmatprep.subr.bf16.mxu0 0
      %290 = vmatpush1.bf16.xpose.msra.mxu0 0
      %291 = vmatprep.subr.bf16.mxu0 0
      %292 = vmatpush1.bf16.xpose.msra.mxu0 0
      %293 = vmatprep.subr.bf16.mxu0 0
      %294 = vmatpush1.bf16.xpose.msra.mxu0 0
      %295 = vmatprep.subr.bf16.mxu0 0
      %296 = vmatpush1.bf16.xpose.msra.mxu0 0
      %297 = vmatprep.subr.bf16.mxu0 0
      %298 = vmatpush1.bf16.xpose.msra.mxu0 0
      %299 = vmatprep.subr.bf16.mxu0 0
      %300 = vmatpush1.bf16.xpose.msra.mxu0 0
      %301 = vmatprep.subr.bf16.mxu0 0
      %302 = vmatpush1.bf16.xpose.msra.mxu0 0
      %303 = vmatprep.subr.bf16.mxu0 0
      %304 = vmatpush1.bf16.xpose.msra.mxu0 0
      %305 = vmatprep.subr.bf16.mxu0 0
      %306 = vmatpush1.bf16.xpose.msra.mxu0 0
      %307 = vmatprep.subr.bf16.mxu0 0
      %308 = vmatpush1.bf16.xpose.msra.mxu0 0
      %309 = vmatprep.mubr.bf16.mxu0 0
      %310 = vmatmul.mubr.bf16.gmra.mrb[0].mxu0 %v272
      %v311 = vpop.f32.mrb[0].mxu0
      %v312 = vadd.f32 0.0, %v311
      %v313 = vpop.f32.mrb[0].mxu0
      %v314 = vpop.f32.mrb[0].mxu0
      %v315 = vpop.f32.mrb[0].mxu0
      %316 = vdwg.mxu0
      %v318 = vsel %vm224, %v214, 0
      %v321 = vsel %vm224, %v218, 0
      %323 = vmatprep.subr.bf16.mxu0 0
      %324 = vmatpush1.bf16.xpose.msra.mxu0 %v321
      %325 = vmatprep.subr.bf16.mxu0 0
      %326 = vmatpush1.bf16.xpose.msra.mxu0 0
      %327 = vmatprep.subr.bf16.mxu0 0
      %328 = vmatpush1.bf16.xpose.msra.mxu0 0
      %329 = vmatprep.subr.bf16.mxu0 0
      %330 = vmatpush1.bf16.xpose.msra.mxu0 0
      %331 = vmatprep.subr.bf16.mxu0 0
      %332 = vmatpush1.bf16.xpose.msra.mxu0 0
      %333 = vmatprep.subr.bf16.mxu0 0
      %334 = vmatpush1.bf16.xpose.msra.mxu0 0
      %335 = vmatprep.subr.bf16.mxu0 0
      %336 = vmatpush1.bf16.xpose.msra.mxu0 0
      %337 = vmatprep.subr.bf16.mxu0 0
      %338 = vmatpush1.bf16.xpose.msra.mxu0 0
      %339 = vmatprep.subr.bf16.mxu0 0
      %340 = vmatpush1.bf16.xpose.msra.mxu0 0
      %341 = vmatprep.subr.bf16.mxu0 0
      %342 = vmatpush1.bf16.xpose.msra.mxu0 0
      %343 = vmatprep.subr.bf16.mxu0 0
      %344 = vmatpush1.bf16.xpose.msra.mxu0 0
      %345 = vmatprep.subr.bf16.mxu0 0
      %346 = vmatpush1.bf16.xpose.msra.mxu0 0
      %347 = vmatprep.subr.bf16.mxu0 0
      %348 = vmatpush1.bf16.xpose.msra.mxu0 0
      %349 = vmatprep.subr.bf16.mxu0 0
      %350 = vmatpush1.bf16.xpose.msra.mxu0 0
      %351 = vmatprep.subr.bf16.mxu0 0
      %352 = vmatpush1.bf16.xpose.msra.mxu0 0
      %353 = vmatprep.subr.bf16.mxu0 0
      %354 = vmatpush1.bf16.xpose.msra.mxu0 0
      %355 = vmatprep.mubr.bf16.mxu0 0
      %356 = vmatmul.mubr.bf16.gmra.mrb[0].mxu0 %v318
      %v357 = vpop.f32.mrb[0].mxu0
      %v358 = vadd.f32 0.0, %v357
      %v359 = vpop.f32.mrb[0].mxu0
      %v360 = vpop.f32.mrb[0].mxu0
      %v361 = vpop.f32.mrb[0].mxu0
      %362 = vdwg.mxu0
      %v364 = vsel %vm224, %v215, 0
      %v367 = vsel %vm224, %v219, 0
      %369 = vmatprep.subr.bf16.mxu0 0
      %370 = vmatpush1.bf16.xpose.msra.mxu0 %v367
      %371 = vmatprep.subr.bf16.mxu0 0
      %372 = vmatpush1.bf16.xpose.msra.mxu0 0
      %373 = vmatprep.subr.bf16.mxu0 0
      %374 = vmatpush1.bf16.xpose.msra.mxu0 0
      %375 = vmatprep.subr.bf16.mxu0 0
      %376 = vmatpush1.bf16.xpose.msra.mxu0 0
      %377 = vmatprep.subr.bf16.mxu0 0
      %378 = vmatpush1.bf16.xpose.msra.mxu0 0
      %379 = vmatprep.subr.bf16.mxu0 0
      %380 = vmatpush1.bf16.xpose.msra.mxu0 0
      %381 = vmatprep.subr.bf16.mxu0 0
      %382 = vmatpush1.bf16.xpose.msra.mxu0 0
      %383 = vmatprep.subr.bf16.mxu0 0
      %384 = vmatpush1.bf16.xpose.msra.mxu0 0
      %385 = vmatprep.subr.bf16.mxu0 0
      %386 = vmatpush1.bf16.xpose.msra.mxu0 0
      %387 = vmatprep.subr.bf16.mxu0 0
      %388 = vmatpush1.bf16.xpose.msra.mxu0 0
      %389 = vmatprep.subr.bf16.mxu0 0
      %390 = vmatpush1.bf16.xpose.msra.mxu0 0
      %391 = vmatprep.subr.bf16.mxu0 0
      %392 = vmatpush1.bf16.xpose.msra.mxu0 0
      %393 = vmatprep.subr.bf16.mxu0 0
      %394 = vmatpush1.bf16.xpose.msra.mxu0 0
      %395 = vmatprep.subr.bf16.mxu0 0
      %396 = vmatpush1.bf16.xpose.msra.mxu0 0
      %397 = vmatprep.subr.bf16.mxu0 0
      %398 = vmatpush1.bf16.xpose.msra.mxu0 0
      %399 = vmatprep.subr.bf16.mxu0 0
      %400 = vmatpush1.bf16.xpose.msra.mxu0 0
      %401 = vmatprep.mubr.bf16.mxu0 0
      %402 = vmatmul.mubr.bf16.gmra.mrb[0].mxu0 %v364
      %v403 = vpop.f32.mrb[0].mxu0
      %v404 = vadd.f32 0.0, %v403
      %v405 = vpop.f32.mrb[0].mxu0
      %v406 = vpop.f32.mrb[0].mxu0
      %v407 = vpop.f32.mrb[0].mxu0
      %408 = vdwg.mxu0
      %v409 = vmul.f32 %v266, 0.35355338
      %v410 = vmul.f32 %v312, 0.35355338
      %v411 = vmul.f32 %v358, 0.35355338
      %v412 = vmul.f32 %v404, 0.35355338
      %v413 = vlaneseq
      %v414 = vshrl.u32 %v413, 7
      %v415 = vlaneseq
      %v416 = vand.u32 %v415, 127
      %vm417 = vcmp.le.s32.totalorder %v416, %v414
      %v418 = vsel %vm417, %v409, -1e+30
      %v419 = vsel %vm417, %v410, -1e+30
      %v420 = vsel %vm417, %v411, -1e+30
      %v421 = vsel %vm417, %v412, -1e+30
      %v422 = vsel %vm224, %v418, -inf
      %423 = vmax.xlane.f32.xlu0 %v422
      %v424 = vpop.xlane.xlu0 %423
      %v425 = vsel %vm224, %v419, -inf
      %426 = vmax.xlane.f32.xlu0 %v425
      %v427 = vpop.xlane.xlu0 %426
      %v428 = vsel %vm224, %v420, -inf
      %429 = vmax.xlane.f32.xlu0 %v428
      %v430 = vpop.xlane.xlu0 %429
      %v431 = vsel %vm224, %v421, -inf
      %432 = vmax.xlane.f32.xlu0 %v431
      %v433 = vpop.xlane.xlu0 %432
      %v434 = vsub.f32 %v418, %v424
      %v435 = vsub.f32 %v419, %v427
      %v436 = vsub.f32 %v420, %v430
      %v437 = vsub.f32 %v421, %v433
      %v438 = vmul.f32 %v434, 1.442695
      %v439 = vpow.pop %v438
      %v440 = vmul.f32 %v435, 1.442695
      %v441 = vpow.pop %v440
      %v442 = vmul.f32 %v436, 1.442695
      %v443 = vpow.pop %v442
      %v444 = vmul.f32 %v437, 1.442695
      %v445 = vpow.pop %v444
      %v446 = vsel %vm224, %v439, 0.0
      %447 = vadd.xlane.f32.xlu0 %v446
      %v448 = vpop.xlane.xlu0 %447
      %v449 = vsel %vm224, %v441, 0.0
      %450 = vadd.xlane.f32.xlu0 %v449
      %v451 = vpop.xlane.xlu0 %450
      %v452 = vsel %vm224, %v443, 0.0
      %453 = vadd.xlane.f32.xlu0 %v452
      %v454 = vpop.xlane.xlu0 %453
      %v455 = vsel %vm224, %v445, 0.0
      %456 = vadd.xlane.f32.xlu0 %v455
      %v457 = vpop.xlane.xlu0 %456
      %v458 = vrcp.pop %v448
      %v459 = vrcp.pop %v451
      %v460 = vrcp.pop %v454
      %v461 = vrcp.pop %v457
      %v462 = vmul.f32 %v439, %v458
      %v463 = vmul.f32 %v441, %v459
      %v464 = vmul.f32 %v443, %v460
      %v465 = vmul.f32 %v445, %v461
      %v466 = vpack.c.bf16 %v462, %v462
      %v467 = vpack.c.bf16 %v463, %v463
      %v468 = vpack.c.bf16 %v464, %v464
      %v469 = vpack.c.bf16 %v465, %v465
      %v471 = vsel %vm224, %v466, 0
      %vm473 = vcmask 1043456
      %v475 = vsel %vm473, %v220, 0
      %477 = vmatprep.subr.bf16.mxu0 0
      %478 = vmatpush1.bf16.msra.mxu0 %v475
      %479 = vmatprep.subr.bf16.mxu0 0
      %480 = vmatpush1.bf16.msra.mxu0 0
      %481 = vmatprep.subr.bf16.mxu0 0
      %482 = vmatpush1.bf16.msra.mxu0 0
      %483 = vmatprep.subr.bf16.mxu0 0
      %484 = vmatpush1.bf16.msra.mxu0 0
      %485 = vmatprep.subr.bf16.mxu0 0
      %486 = vmatpush1.bf16.msra.mxu0 0
      %487 = vmatprep.subr.bf16.mxu0 0
      %488 = vmatpush1.bf16.msra.mxu0 0
      %489 = vmatprep.subr.bf16.mxu0 0
      %490 = vmatpush1.bf16.msra.mxu0 0
      %491 = vmatprep.subr.bf16.mxu0 0
      %492 = vmatpush1.bf16.msra.mxu0 0
      %493 = vmatprep.subr.bf16.mxu0 0
      %494 = vmatpush1.bf16.msra.mxu0 0
      %495 = vmatprep.subr.bf16.mxu0 0
      %496 = vmatpush1.bf16.msra.mxu0 0
      %497 = vmatprep.subr.bf16.mxu0 0
      %498 = vmatpush1.bf16.msra.mxu0 0
      %499 = vmatprep.subr.bf16.mxu0 0
      %500 = vmatpush1.bf16.msra.mxu0 0
      %501 = vmatprep.subr.bf16.mxu0 0
      %502 = vmatpush1.bf16.msra.mxu0 0
      %503 = vmatprep.subr.bf16.mxu0 0
      %504 = vmatpush1.bf16.msra.mxu0 0
      %505 = vmatprep.subr.bf16.mxu0 0
      %506 = vmatpush1.bf16.msra.mxu0 0
      %507 = vmatprep.subr.bf16.mxu0 0
      %508 = vmatpush1.bf16.msra.mxu0 0
      %509 = vmatprep.mubr.bf16.mxu0 0
      %510 = vmatmul.mubr.bf16.gmra.mrb[0].mxu0 %v471
      %v511 = vpop.f32.mrb[0].mxu0
      %v512 = vadd.f32 0.0, %v511
      %v513 = vpop.f32.mrb[0].mxu0
      %v514 = vpop.f32.mrb[0].mxu0
      %v515 = vpop.f32.mrb[0].mxu0
      %516 = vdwg.mxu0
      %v518 = vsel %vm224, %v467, 0
      %v521 = vsel %vm473, %v221, 0
      %523 = vmatprep.subr.bf16.mxu0 0
      %524 = vmatpush1.bf16.msra.mxu0 %v521
      %525 = vmatprep.subr.bf16.mxu0 0
      %526 = vmatpush1.bf16.msra.mxu0 0
      %527 = vmatprep.subr.bf16.mxu0 0
      %528 = vmatpush1.bf16.msra.mxu0 0
      %529 = vmatprep.subr.bf16.mxu0 0
      %530 = vmatpush1.bf16.msra.mxu0 0
      %531 = vmatprep.subr.bf16.mxu0 0
      %532 = vmatpush1.bf16.msra.mxu0 0
      %533 = vmatprep.subr.bf16.mxu0 0
      %534 = vmatpush1.bf16.msra.mxu0 0
      %535 = vmatprep.subr.bf16.mxu0 0
      %536 = vmatpush1.bf16.msra.mxu0 0
      %537 = vmatprep.subr.bf16.mxu0 0
      %538 = vmatpush1.bf16.msra.mxu0 0
      %539 = vmatprep.subr.bf16.mxu0 0
      %540 = vmatpush1.bf16.msra.mxu0 0
      %541 = vmatprep.subr.bf16.mxu0 0
      %542 = vmatpush1.bf16.msra.mxu0 0
      %543 = vmatprep.subr.bf16.mxu0 0
      %544 = vmatpush1.bf16.msra.mxu0 0
      %545 = vmatprep.subr.bf16.mxu0 0
      %546 = vmatpush1.bf16.msra.mxu0 0
      %547 = vmatprep.subr.bf16.mxu0 0
      %548 = vmatpush1.bf16.msra.mxu0 0
      %549 = vmatprep.subr.bf16.mxu0 0
      %550 = vmatpush1.bf16.msra.mxu0 0
      %551 = vmatprep.subr.bf16.mxu0 0
      %552 = vmatpush1.bf16.msra.mxu0 0
      %553 = vmatprep.subr.bf16.mxu0 0
      %554 = vmatpush1.bf16.msra.mxu0 0
      %555 = vmatprep.mubr.bf16.mxu0 0
      %556 = vmatmul.mubr.bf16.gmra.mrb[0].mxu0 %v518
      %v557 = vpop.f32.mrb[0].mxu0
      %v558 = vadd.f32 0.0, %v557
      %v559 = vpop.f32.mrb[0].mxu0
      %v560 = vpop.f32.mrb[0].mxu0
      %v561 = vpop.f32.mrb[0].mxu0
      %562 = vdwg.mxu0
      %v564 = vsel %vm224, %v468, 0
      %v567 = vsel %vm473, %v222, 0
      %569 = vmatprep.subr.bf16.mxu0 0
      %570 = vmatpush1.bf16.msra.mxu0 %v567
      %571 = vmatprep.subr.bf16.mxu0 0
      %572 = vmatpush1.bf16.msra.mxu0 0
      %573 = vmatprep.subr.bf16.mxu0 0
      %574 = vmatpush1.bf16.msra.mxu0 0
      %575 = vmatprep.subr.bf16.mxu0 0
      %576 = vmatpush1.bf16.msra.mxu0 0
      %577 = vmatprep.subr.bf16.mxu0 0
      %578 = vmatpush1.bf16.msra.mxu0 0
      %579 = vmatprep.subr.bf16.mxu0 0
      %580 = vmatpush1.bf16.msra.mxu0 0
      %581 = vmatprep.subr.bf16.mxu0 0
      %582 = vmatpush1.bf16.msra.mxu0 0
      %583 = vmatprep.subr.bf16.mxu0 0
      %584 = vmatpush1.bf16.msra.mxu0 0
      %585 = vmatprep.subr.bf16.mxu0 0
      %586 = vmatpush1.bf16.msra.mxu0 0
      %587 = vmatprep.subr.bf16.mxu0 0
      %588 = vmatpush1.bf16.msra.mxu0 0
      %589 = vmatprep.subr.bf16.mxu0 0
      %590 = vmatpush1.bf16.msra.mxu0 0
      %591 = vmatprep.subr.bf16.mxu0 0
      %592 = vmatpush1.bf16.msra.mxu0 0
      %593 = vmatprep.subr.bf16.mxu0 0
      %594 = vmatpush1.bf16.msra.mxu0 0
      %595 = vmatprep.subr.bf16.mxu0 0
      %596 = vmatpush1.bf16.msra.mxu0 0
      %597 = vmatprep.subr.bf16.mxu0 0
      %598 = vmatpush1.bf16.msra.mxu0 0
      %599 = vmatprep.subr.bf16.mxu0 0
      %600 = vmatpush1.bf16.msra.mxu0 0
      %601 = vmatprep.mubr.bf16.mxu0 0
      %602 = vmatmul.mubr.bf16.gmra.mrb[0].mxu0 %v564
      %v603 = vpop.f32.mrb[0].mxu0
      %v604 = vadd.f32 0.0, %v603
      %v605 = vpop.f32.mrb[0].mxu0
      %v606 = vpop.f32.mrb[0].mxu0
      %v607 = vpop.f32.mrb[0].mxu0
      %608 = vdwg.mxu0
      %v610 = vsel %vm224, %v469, 0
      %v613 = vsel %vm473, %v223, 0
      %615 = vmatprep.subr.bf16.mxu0 0
      %616 = vmatpush1.bf16.msra.mxu0 %v613
      %617 = vmatprep.subr.bf16.mxu0 0
      %618 = vmatpush1.bf16.msra.mxu0 0
      %619 = vmatprep.subr.bf16.mxu0 0
      %620 = vmatpush1.bf16.msra.mxu0 0
      %621 = vmatprep.subr.bf16.mxu0 0
      %622 = vmatpush1.bf16.msra.mxu0 0
      %623 = vmatprep.subr.bf16.mxu0 0
      %624 = vmatpush1.bf16.msra.mxu0 0
      %625 = vmatprep.subr.bf16.mxu0 0
      %626 = vmatpush1.bf16.msra.mxu0 0
      %627 = vmatprep.subr.bf16.mxu0 0
      %628 = vmatpush1.bf16.msra.mxu0 0
      %629 = vmatprep.subr.bf16.mxu0 0
      %630 = vmatpush1.bf16.msra.mxu0 0
      %631 = vmatprep.subr.bf16.mxu0 0
      %632 = vmatpush1.bf16.msra.mxu0 0
      %633 = vmatprep.subr.bf16.mxu0 0
      %634 = vmatpush1.bf16.msra.mxu0 0
      %635 = vmatprep.subr.bf16.mxu0 0
      %636 = vmatpush1.bf16.msra.mxu0 0
      %637 = vmatprep.subr.bf16.mxu0 0
      %638 = vmatpush1.bf16.msra.mxu0 0
      %639 = vmatprep.subr.bf16.mxu0 0
      %640 = vmatpush1.bf16.msra.mxu0 0
      %641 = vmatprep.subr.bf16.mxu0 0
      %642 = vmatpush1.bf16.msra.mxu0 0
      %643 = vmatprep.subr.bf16.mxu0 0
      %644 = vmatpush1.bf16.msra.mxu0 0
      %645 = vmatprep.subr.bf16.mxu0 0
      %646 = vmatpush1.bf16.msra.mxu0 0
      %647 = vmatprep.mubr.bf16.mxu0 0
      %648 = vmatmul.mubr.bf16.gmra.mrb[0].mxu0 %v610
      %v649 = vpop.f32.mrb[0].mxu0
      %v650 = vadd.f32 0.0, %v649
      %v651 = vpop.f32.mrb[0].mxu0
      %v652 = vpop.f32.mrb[0].mxu0
      %v653 = vpop.f32.mrb[0].mxu0
      %654 = vdwg.mxu0
      %655 = vst.msk [vmem:[%s210] sm:$0xff] %vm224, %v512
      %656 = vst.msk [vmem:[%s210 + $0x8] sm:$0xff] %vm224, %v558
      %657 = vst.msk [vmem:[%s210 + $0x10] sm:$0xff] %vm224, %v604
      %658 = vst.msk [vmem:[%s210 + $0x18] sm:$0xff] %vm224, %v650
      %p659 = scmp.lt.s32.totalorder %s14, 1
      %s660 = scalar_select %p659, %s14, 1
      %s661 = smul.addr %s660, 4
      %s662 = smul.addr %s661, 8
      %s663 = scalar_lea.vmem %s3, %s662
      // Predicated region
      $region33: #{seq2seq_forward.61} parent=31 // pred_check
        %p664 = pneg %p110
      $region34: #{seq2seq_forward.61} parent=31 // pred_check_branch
        %666 = sbr.rel (%p664) target = $region36
      $region35: #{seq2seq_forward.61} parent=31 // pred_region
        _
      $region36: #{seq2seq_forward.61} parent=31 // pred_fallthru
        _
    $region32: #{seq2seq_forward.61} parent=5 // pred_fallthru
      _
    %p667 = scmp.le.s32.totalorder 2, %s9
    // Predicated region
    $region37: #{seq2seq_forward.61} parent=5 // pred_check
      %p668 = pneg %p667
    $region38: #{seq2seq_forward.61} parent=5 // pred_check_branch
      %670 = sbr.rel (%p668) target = $region40
    $region39: #{seq2seq_forward.61} parent=5 // pred_region
      %s671 = ssub.s32 %s9, 2
      // Predicated region
      $region41: #{seq2seq_forward.61} parent=39 // pred_check
        %p672 = pneg %p116
      $region42: #{seq2seq_forward.61} parent=39 // pred_check_branch
        %674 = sbr.rel (%p672) target = $region44
      $region43: #{seq2seq_forward.61} parent=39 // pred_region
        %p675 = scmp.lt.s32.totalorder %s15, 1
        %s676 = scalar_select %p675, %s15, 1
        %s677 = smul.addr %s676, 4
        %s678 = smul.addr %s677, 8
        %s679 = scalar_lea.vmem %s3, %s678
      $region44: #{seq2seq_forward.61} parent=39 // pred_fallthru
        _
    $region40: #{seq2seq_forward.61} parent=5 // pred_fallthru
      _
  $region6: #{seq2seq_forward.61} parent=0 // loop_footer
    %s13 = sadd.s32 1, %s9
  $region7: #{seq2seq_forward.61} parent=0 // loop_footer_branch
    %8 = sbr.rel target = $region3
  $region8: #{seq2seq_forward.61} parent=0 // loop_exit
    _

// kernel: seq2seq_forward.62
$region0: #{seq2seq_forward.62}
  #allocation0 [shape = 'u32[]', space=smem, size = 0x4, offset = 0x4, fixed_abs, tag = 'smem constant byte address 0x4 - core index']
  #allocation1 [shape = 'u32[144,128]{1,0:T(1,128)}', space=vmem, size = 0x12000, scoped, tag = 'internal scratch']
  #allocation2 [shape = 'f32[16,32]{1,0:T(8,128)}', space=vmem, size = 0x2000, scoped, tag = 'scratch operand']
  %s0 = inlined_call_operand.vmem [shape: bf16[16,32], index: 0, kind: input, shape index: {}]
  %s1 = inlined_call_operand.vmem [shape: bf16[32,32], index: 1, kind: input, shape index: {}]
  %s2 = inlined_call_operand.vmem [shape: f32[1,32], index: 2, kind: input, shape index: {}]
  %s3 = inlined_call_operand.vmem [shape: f32[16,32], index: 3, kind: output, shape index: {}]
  %s4 = sld [smem:[#allocation0]]
  $region30: #{seq2seq_forward.62} parent=0
    _
  %s6 = ssub.s32 1, %s4
  %s7 = scalar_select 0, %s6, %s4
  // Predicated region
  $region2: #{seq2seq_forward.62} parent=0 // pred_check
    _
  $region3: #{seq2seq_forward.62} parent=0 // pred_check_branch
    %9 = sbr.rel (0) target = $region5
  $region4: #{seq2seq_forward.62} parent=0 // pred_region
    _
  $region5: #{seq2seq_forward.62} parent=0 // pred_fallthru
    _
  // Predicated region
  $region6: #{seq2seq_forward.62} parent=0 // pred_check
    _
  $region7: #{seq2seq_forward.62} parent=0 // pred_check_branch
    %11 = sbr.rel (0) target = $region9
  $region8: #{seq2seq_forward.62} parent=0 // pred_region
    _
  $region9: #{seq2seq_forward.62} parent=0 // pred_fallthru
    _
  // Predicated region
  $region10: #{seq2seq_forward.62} parent=0 // pred_check
    _
  $region11: #{seq2seq_forward.62} parent=0 // pred_check_branch
    %13 = sbr.rel (0) target = $region13
  $region12: #{seq2seq_forward.62} parent=0 // pred_region
    _
  $region13: #{seq2seq_forward.62} parent=0 // pred_fallthru
    _
  %p15 = scmp.eq.s32.totalorder 0, 0
  // Predicated region
  $region14: #{seq2seq_forward.62} parent=0 // pred_check
    %p16 = pneg %p15
  $region15: #{seq2seq_forward.62} parent=0 // pred_check_branch
    %18 = sbr.rel (%p16) target = $region17
  $region16: #{seq2seq_forward.62} parent=0 // pred_region
    %vm19 = vcmask 261120
    %20 = vst.msk [vmem:[#allocation2] sm:$0xff] %vm19, 0.0
    %21 = vst.msk [vmem:[#allocation2 + $0x8] sm:$0xff] %vm19, 0.0
  $region17: #{seq2seq_forward.62} parent=0 // pred_fallthru
    _
  %v22 = vld [vmem:[#allocation2] sm:$0xff]
  %v23 = vld [vmem:[#allocation2 + $0x8] sm:$0xff]
  %v24 = vld [vmem:[%s0] sm:$0xf]
  %v25 = vld [vmem:[%s0 + $0x4] sm:$0xf]
  %v26 = vld [vmem:[%s1] sm:$0xf]
  %v27 = vld [vmem:[%s1 + $0x4] sm:$0xf]
  %v28 = vld [vmem:[%s1 + $0x8] sm:$0xf]
  %v29 = vld [vmem:[%s1 + $0xc] sm:$0xf]
  %v32 = vunpack.c.l.b16 %v24
  %v33 = vunpack.c.l.b16 %v25
  %v34 = vpack.c.b16 %v33, %v32
  %v39 = vunpack.c.l.b16 %v26
  %v40 = vunpack.c.l.b16 %v27
  %v41 = vunpack.c.l.b16 %v28
  %v42 = vunpack.c.l.b16 %v29
  %v43 = vpack.c.b16 %v40, %v39
  %v44 = vpack.c.b16 %v42, %v41
  %vm47 = vcmask 261120
  %v49 = vsel %vm47, %v34, 0
  %51 = vmatprep.subr.bf16.mxu0 0
  %52 = vmatpush1.bf16.msra.mxu0 %v43
  %53 = vmatprep.subr.bf16.mxu0 0
  %54 = vmatpush1.bf16.msra.mxu0 %v44
  %55 = vmatprep.subr.bf16.mxu0 0
  %56 = vmatpush1.bf16.msra.mxu0 0
  %57 = vmatprep.subr.bf16.mxu0 0
  %58 = vmatpush1.bf16.msra.mxu0 0
  %59 = vmatprep.subr.bf16.mxu0 0
  %60 = vmatpush1.bf16.msra.mxu0 0
  %61 = vmatprep.subr.bf16.mxu0 0
  %62 = vmatpush1.bf16.msra.mxu0 0
  %63 = vmatprep.subr.bf16.mxu0 0
  %64 = vmatpush1.bf16.msra.mxu0 0
  %65 = vmatprep.subr.bf16.mxu0 0
  %66 = vmatpush1.bf16.msra.mxu0 0
  %67 = vmatprep.subr.bf16.mxu0 0
  %68 = vmatpush1.bf16.msra.mxu0 0
  %69 = vmatprep.subr.bf16.mxu0 0
  %70 = vmatpush1.bf16.msra.mxu0 0
  %71 = vmatprep.subr.bf16.mxu0 0
  %72 = vmatpush1.bf16.msra.mxu0 0
  %73 = vmatprep.subr.bf16.mxu0 0
  %74 = vmatpush1.bf16.msra.mxu0 0
  %75 = vmatprep.subr.bf16.mxu0 0
  %76 = vmatpush1.bf16.msra.mxu0 0
  %77 = vmatprep.subr.bf16.mxu0 0
  %78 = vmatpush1.bf16.msra.mxu0 0
  %79 = vmatprep.subr.bf16.mxu0 0
  %80 = vmatpush1.bf16.msra.mxu0 0
  %81 = vmatprep.subr.bf16.mxu0 0
  %82 = vmatpush1.bf16.msra.mxu0 0
  %83 = vmatprep.mubr.bf16.mxu0 0
  %84 = vmatmul.mubr.bf16.gmra.mrb[0].mxu0 %v49
  %v85 = vpop.f32.mrb[0].mxu0
  %v86 = vadd.f32 0.0, %v85
  %v87 = vpop.f32.mrb[0].mxu0
  %v88 = vpop.f32.mrb[0].mxu0
  %v89 = vadd.f32 0.0, %v88
  %v90 = vpop.f32.mrb[0].mxu0
  %91 = vdwg.mxu0
  %v92 = vadd.f32 %v22, %v86
  %v93 = vadd.f32 %v23, %v89
  %94 = vst.msk [vmem:[#allocation2] sm:$0xff] %vm47, %v92
  %95 = vst.msk [vmem:[#allocation2 + $0x8] sm:$0xff] %vm47, %v93
  // Predicated region
  $region18: #{seq2seq_forward.62} parent=0 // pred_check
    %p96 = pneg %p15
  $region19: #{seq2seq_forward.62} parent=0 // pred_check_branch
    %98 = sbr.rel (%p96) target = $region21
  $region20: #{seq2seq_forward.62} parent=0 // pred_region
    %v99 = vld [vmem:[#allocation2] sm:$0xff]
    %v100 = vld [vmem:[#allocation2 + $0x8] sm:$0xff]
    %v101 = vld [vmem:[%s2] sm:$0x1]
    %v103 = vlaneseq
    %v104 = vshrl.u32 %v103, 7
    %v105 = vsub.s32 0, %v104
    %v106 = vrot.slane %v101, %v105
    %v108 = vadd.f32 %v99, %v106
    %v109 = vadd.f32 %v100, %v106
    %110 = vst.msk [vmem:[%s3] sm:$0xff] %vm47, %v108
    %111 = vst.msk [vmem:[%s3 + $0x8] sm:$0xff] %vm47, %v109
  $region21: #{seq2seq_forward.62} parent=0 // pred_fallthru
    _
  // Predicated region
  $region22: #{seq2seq_forward.62} parent=0 // pred_check
    _
  $region23: #{seq2seq_forward.62} parent=0 // pred_check_branch
    %113 = sbr.rel (0) target = $region25
  $region24: #{seq2seq_forward.62} parent=0 // pred_region
    _
  $region25: #{seq2seq_forward.62} parent=0 // pred_fallthru
    _
  // Predicated region
  $region26: #{seq2seq_forward.62} parent=0 // pred_check
    _
  $region27: #{seq2seq_forward.62} parent=0 // pred_check_branch
    %115 = sbr.rel (0) target = $region29
  $region28: #{seq2seq_forward.62} parent=0 // pred_region
    _
  $region29: #{seq2seq_forward.62} parent=0 // pred_fallthru
    _

// kernel: seq2seq_forward.63
$region0: #{seq2seq_forward.63}
  #allocation0 [shape = 'u32[]', space=smem, size = 0x4, offset = 0x4, fixed_abs, tag = 'smem constant byte address 0x4 - core index']
  #allocation1 [shape = 'u32[144,128]{1,0:T(1,128)}', space=vmem, size = 0x12000, scoped, tag = 'internal scratch']
  %s0 = inlined_call_operand.vmem [shape: f32[16,32], index: 0, kind: input, shape index: {}]
  %s1 = inlined_call_operand.vmem [shape: f32[16,32], index: 1, kind: input, shape index: {}]
  %s2 = inlined_call_operand.vmem [shape: f32[1,32], index: 2, kind: input, shape index: {}]
  %s3 = inlined_call_operand.vmem [shape: f32[1,32], index: 3, kind: input, shape index: {}]
  %s4 = inlined_call_operand.vmem [shape: f32[16,32], index: 4, kind: output, shape index: {}]
  %s5 = sld [smem:[#allocation0]]
  $region26: #{seq2seq_forward.63} parent=0
    _
  %s7 = ssub.s32 1, %s5
  %s8 = scalar_select 0, %s7, %s5
  // Predicated region
  $region2: #{seq2seq_forward.63} parent=0 // pred_check
    _
  $region3: #{seq2seq_forward.63} parent=0 // pred_check_branch
    %10 = sbr.rel (0) target = $region5
  $region4: #{seq2seq_forward.63} parent=0 // pred_region
    _
  $region5: #{seq2seq_forward.63} parent=0 // pred_fallthru
    _
  // Predicated region
  $region6: #{seq2seq_forward.63} parent=0 // pred_check
    _
  $region7: #{seq2seq_forward.63} parent=0 // pred_check_branch
    %12 = sbr.rel (0) target = $region9
  $region8: #{seq2seq_forward.63} parent=0 // pred_region
    _
  $region9: #{seq2seq_forward.63} parent=0 // pred_fallthru
    _
  // Predicated region
  $region10: #{seq2seq_forward.63} parent=0 // pred_check
    _
  $region11: #{seq2seq_forward.63} parent=0 // pred_check_branch
    %14 = sbr.rel (0) target = $region13
  $region12: #{seq2seq_forward.63} parent=0 // pred_region
    _
  $region13: #{seq2seq_forward.63} parent=0 // pred_fallthru
    _
  // Predicated region
  $region14: #{seq2seq_forward.63} parent=0 // pred_check
    _
  $region15: #{seq2seq_forward.63} parent=0 // pred_check_branch
    %16 = sbr.rel (0) target = $region17
  $region16: #{seq2seq_forward.63} parent=0 // pred_region
    _
  $region17: #{seq2seq_forward.63} parent=0 // pred_fallthru
    _
  %v17 = vld [vmem:[%s0] sm:$0xff]
  %v18 = vld [vmem:[%s0 + $0x8] sm:$0xff]
  %v19 = vld [vmem:[%s1] sm:$0xff]
  %v20 = vld [vmem:[%s1 + $0x8] sm:$0xff]
  %v21 = vadd.f32 %v17, %v19
  %v22 = vadd.f32 %v18, %v20
  %v23 = vld [vmem:[%s2] sm:$0x1]
  %v24 = vld [vmem:[%s3] sm:$0x1]
  %vm25 = vcmask 261120
  %v26 = vsel %vm25, %v21, 0.0
  %27 = vadd.xlane.f32.xlu0 %v26
  %v28 = vpop.xlane.xlu0 %27
  %v29 = vsel %vm25, %v22, 0.0
  %30 = vadd.xlane.f32.xlu0 %v29
  %v31 = vpop.xlane.xlu0 %30
  %v32 = vrcp.pop 32.0
  %v33 = vmul.f32 %v28, %v32
  %v34 = vmul.f32 %v31, %v32
  %v35 = vsub.f32 %v21, %v33
  %v36 = vsub.f32 %v22, %v34
  %v37 = vmul.f32 %v35, %v35
  %v38 = vmul.f32 %v36, %v36
  %v39 = vsel %vm25, %v37, 0.0
  %40 = vadd.xlane.f32.xlu0 %v39
  %v41 = vpop.xlane.xlu0 %40
  %v42 = vsel %vm25, %v38, 0.0
  %43 = vadd.xlane.f32.xlu0 %v42
  %v44 = vpop.xlane.xlu0 %43
  %v45 = vmul.f32 %v41, %v32
  %v46 = vmul.f32 %v44, %v32
  %v47 = vadd.f32 %v45, 1e-05
  %v48 = vadd.f32 %v46, 1e-05
  %v49 = vrsqrt.pop %v47
  %v50 = vrsqrt.pop %v48
  %v51 = vmul.f32 %v35, %v49
  %v52 = vmul.f32 %v36, %v50
  %v54 = vlaneseq
  %v55 = vshrl.u32 %v54, 7
  %v56 = vsub.s32 0, %v55
  %v57 = vrot.slane %v23, %v56
  %v59 = vmul.f32 %v51, %v57
  %v60 = vmul.f32 %v52, %v57
  %v62 = vlaneseq
  %v63 = vshrl.u32 %v62, 7
  %v64 = vsub.s32 0, %v63
  %v65 = vrot.slane %v24, %v64
  %v67 = vadd.f32 %v59, %v65
  %v68 = vadd.f32 %v60, %v65
  %69 = vst.msk [vmem:[%s4] sm:$0xff] %vm25, %v67
  %70 = vst.msk [vmem:[%s4 + $0x8] sm:$0xff] %vm25, %v68
  // Predicated region
  $region18: #{seq2seq_forward.63} parent=0 // pred_check
    _
  $region19: #{seq2seq_forward.63} parent=0 // pred_check_branch
    %72 = sbr.rel (0) target = $region21
  $region20: #{seq2seq_forward.63} parent=0 // pred_region
    _
  $region21: #{seq2seq_forward.63} parent=0 // pred_fallthru
    _
  // Predicated region
  $region22: #{seq2seq_forward.63} parent=0 // pred_check
    _
  $region23: #{seq2seq_forward.63} parent=0 // pred_check_branch
    %74 = sbr.rel (0) target = $region25
  $region24: #{seq2seq_forward.63} parent=0 // pred_region
    _
  $region25: #{seq2seq_forward.63} parent=0 // pred_fallthru
    _

// kernel: seq2seq_forward.49
$region0: #{seq2seq_forward.49}
  #allocation0 [shape = 'u32[]', space=smem, size = 0x4, offset = 0x4, fixed_abs, tag = 'smem constant byte address 0x4 - core index']
  #allocation1 [shape = 'u32[144,128]{1,0:T(1,128)}', space=vmem, size = 0x12000, scoped, tag = 'internal scratch']
  #allocation2 [shape = 'f32[16,64]{1,0:T(8,128)}', space=vmem, size = 0x2000, scoped, tag = 'scratch operand']
  %s0 = inlined_call_operand.vmem [shape: bf16[16,32], index: 0, kind: input, shape index: {}]
  %s1 = inlined_call_operand.vmem [shape: bf16[32,64], index: 1, kind: input, shape index: {}]
  %s2 = inlined_call_operand.vmem [shape: f32[1,64], index: 2, kind: input, shape index: {}]
  %s3 = inlined_call_operand.vmem [shape: f32[16,64], index: 3, kind: output, shape index: {}]
  %s4 = sld [smem:[#allocation0]]
  $region30: #{seq2seq_forward.49} parent=0
    _
  %s6 = ssub.s32 1, %s4
  %s7 = scalar_select 0, %s6, %s4
  // Predicated region
  $region2: #{seq2seq_forward.49} parent=0 // pred_check
    _
  $region3: #{seq2seq_forward.49} parent=0 // pred_check_branch
    %9 = sbr.rel (0) target = $region5
  $region4: #{seq2seq_forward.49} parent=0 // pred_region
    _
  $region5: #{seq2seq_forward.49} parent=0 // pred_fallthru
    _
  // Predicated region
  $region6: #{seq2seq_forward.49} parent=0 // pred_check
    _
  $region7: #{seq2seq_forward.49} parent=0 // pred_check_branch
    %11 = sbr.rel (0) target = $region9
  $region8: #{seq2seq_forward.49} parent=0 // pred_region
    _
  $region9: #{seq2seq_forward.49} parent=0 // pred_fallthru
    _
  // Predicated region
  $region10: #{seq2seq_forward.49} parent=0 // pred_check
    _
  $region11: #{seq2seq_forward.49} parent=0 // pred_check_branch
    %13 = sbr.rel (0) target = $region13
  $region12: #{seq2seq_forward.49} parent=0 // pred_region
    _
  $region13: #{seq2seq_forward.49} parent=0 // pred_fallthru
    _
  %p15 = scmp.eq.s32.totalorder 0, 0
  // Predicated region
  $region14: #{seq2seq_forward.49} parent=0 // pred_check
    %p16 = pneg %p15
  $region15: #{seq2seq_forward.49} parent=0 // pred_check_branch
    %18 = sbr.rel (%p16) target = $region17
  $region16: #{seq2seq_forward.49} parent=0 // pred_region
    %vm19 = vcmask 523264
    %20 = vst.msk [vmem:[#allocation2] sm:$0xff] %vm19, 0.0
    %21 = vst.msk [vmem:[#allocation2 + $0x8] sm:$0xff] %vm19, 0.0
  $region17: #{seq2seq_forward.49} parent=0 // pred_fallthru
    _
  %v22 = vld [vmem:[#allocation2] sm:$0xff]
  %v23 = vld [vmem:[#allocation2 + $0x8] sm:$0xff]
  %v24 = vld [vmem:[%s0] sm:$0xf]
  %v25 = vld [vmem:[%s0 + $0x4] sm:$0xf]
  %v26 = vld [vmem:[%s1] sm:$0xf]
  %v27 = vld [vmem:[%s1 + $0x4] sm:$0xf]
  %v28 = vld [vmem:[%s1 + $0x8] sm:$0xf]
  %v29 = vld [vmem:[%s1 + $0xc] sm:$0xf]
  %v32 = vunpack.c.l.b16 %v24
  %v33 = vunpack.c.l.b16 %v25
  %v34 = vpack.c.b16 %v33, %v32
  %v39 = vunpack.c.l.b16 %v26
  %v40 = vunpack.c.l.b16 %v27
  %v41 = vunpack.c.l.b16 %v28
  %v42 = vunpack.c.l.b16 %v29
  %v43 = vpack.c.b16 %v40, %v39
  %v44 = vpack.c.b16 %v42, %v41
  %vm47 = vcmask 261120
  %v49 = vsel %vm47, %v34, 0
  %51 = vmatprep.subr.bf16.mxu0 0
  %52 = vmatpush1.bf16.msra.mxu0 %v43
  %53 = vmatprep.subr.bf16.mxu0 0
  %54 = vmatpush1.bf16.msra.mxu0 %v44
  %55 = vmatprep.subr.bf16.mxu0 0
  %56 = vmatpush1.bf16.msra.mxu0 0
  %57 = vmatprep.subr.bf16.mxu0 0
  %58 = vmatpush1.bf16.msra.mxu0 0
  %59 = vmatprep.subr.bf16.mxu0 0
  %60 = vmatpush1.bf16.msra.mxu0 0
  %61 = vmatprep.subr.bf16.mxu0 0
  %62 = vmatpush1.bf16.msra.mxu0 0
  %63 = vmatprep.subr.bf16.mxu0 0
  %64 = vmatpush1.bf16.msra.mxu0 0
  %65 = vmatprep.subr.bf16.mxu0 0
  %66 = vmatpush1.bf16.msra.mxu0 0
  %67 = vmatprep.subr.bf16.mxu0 0
  %68 = vmatpush1.bf16.msra.mxu0 0
  %69 = vmatprep.subr.bf16.mxu0 0
  %70 = vmatpush1.bf16.msra.mxu0 0
  %71 = vmatprep.subr.bf16.mxu0 0
  %72 = vmatpush1.bf16.msra.mxu0 0
  %73 = vmatprep.subr.bf16.mxu0 0
  %74 = vmatpush1.bf16.msra.mxu0 0
  %75 = vmatprep.subr.bf16.mxu0 0
  %76 = vmatpush1.bf16.msra.mxu0 0
  %77 = vmatprep.subr.bf16.mxu0 0
  %78 = vmatpush1.bf16.msra.mxu0 0
  %79 = vmatprep.subr.bf16.mxu0 0
  %80 = vmatpush1.bf16.msra.mxu0 0
  %81 = vmatprep.subr.bf16.mxu0 0
  %82 = vmatpush1.bf16.msra.mxu0 0
  %83 = vmatprep.mubr.bf16.mxu0 0
  %84 = vmatmul.mubr.bf16.gmra.mrb[0].mxu0 %v49
  %v85 = vpop.f32.mrb[0].mxu0
  %v86 = vadd.f32 0.0, %v85
  %v87 = vpop.f32.mrb[0].mxu0
  %v88 = vpop.f32.mrb[0].mxu0
  %v89 = vadd.f32 0.0, %v88
  %v90 = vpop.f32.mrb[0].mxu0
  %91 = vdwg.mxu0
  %v92 = vadd.f32 %v22, %v86
  %v93 = vadd.f32 %v23, %v89
  %vm94 = vcmask 523264
  %95 = vst.msk [vmem:[#allocation2] sm:$0xff] %vm94, %v92
  %96 = vst.msk [vmem:[#allocation2 + $0x8] sm:$0xff] %vm94, %v93
  // Predicated region
  $region18: #{seq2seq_forward.49} parent=0 // pred_check
    %p97 = pneg %p15
  $region19: #{seq2seq_forward.49} parent=0 // pred_check_branch
    %99 = sbr.rel (%p97) target = $region21
  $region20: #{seq2seq_forward.49} parent=0 // pred_region
    %v100 = vld [vmem:[#allocation2] sm:$0xff]
    %v101 = vld [vmem:[#allocation2 + $0x8] sm:$0xff]
    %v102 = vld [vmem:[%s2] sm:$0x1]
    %v104 = vlaneseq
    %v105 = vshrl.u32 %v104, 7
    %v106 = vsub.s32 0, %v105
    %v107 = vrot.slane %v102, %v106
    %v109 = vadd.f32 %v100, %v107
    %v110 = vadd.f32 %v101, %v107
    %v111 = vmax.f32 %v109, 0.0
    %v112 = vmax.f32 %v110, 0.0
    %113 = vst.msk [vmem:[%s3] sm:$0xff] %vm94, %v111
    %114 = vst.msk [vmem:[%s3 + $0x8] sm:$0xff] %vm94, %v112
  $region21: #{seq2seq_forward.49} parent=0 // pred_fallthru
    _
  // Predicated region
  $region22: #{seq2seq_forward.49} parent=0 // pred_check
    _
  $region23: #{seq2seq_forward.49} parent=0 // pred_check_branch
    %116 = sbr.rel (0) target = $region25
  $region24: #{seq2seq_forward.49} parent=0 // pred_region
    _
  $region25: #{seq2seq_forward.49} parent=0 // pred_fallthru
    _
  // Predicated region
  $region26: #{seq2seq_forward.49} parent=0 // pred_check
    _
  $region27: #{seq2seq_forward.49} parent=0 // pred_check_branch
    %118 = sbr.rel (0) target = $region29
  $region28: #{seq2seq_forward.49} parent=0 // pred_region
    _
  $region29: #{seq2seq_forward.49} parent=0 // pred_fallthru
    _

// kernel: seq2seq_forward.59
$region0: #{seq2seq_forward.59}
  #allocation0 [shape = 'u32[]', space=smem, size = 0x4, offset = 0x4, fixed_abs, tag = 'smem constant byte address 0x4 - core index']
  #allocation1 [shape = 'u32[144,128]{1,0:T(1,128)}', space=vmem, size = 0x12000, scoped, tag = 'internal scratch']
  %s0 = inlined_call_operand.vmem [shape: f32[16,32], index: 0, kind: input, shape index: {}]
  %s1 = inlined_call_operand.vmem [shape: f32[1,32], index: 1, kind: input, shape index: {}]
  %s2 = inlined_call_operand.vmem [shape: f32[1,32], index: 2, kind: input, shape index: {}]
  %s3 = inlined_call_operand.vmem [shape: f32[16,32], index: 3, kind: output, shape index: {}]
  %s4 = sld [smem:[#allocation0]]
  $region22: #{seq2seq_forward.59} parent=0
    _
  %s6 = ssub.s32 1, %s4
  %s7 = scalar_select 0, %s6, %s4
  // Predicated region
  $region2: #{seq2seq_forward.59} parent=0 // pred_check
    _
  $region3: #{seq2seq_forward.59} parent=0 // pred_check_branch
    %9 = sbr.rel (0) target = $region5
  $region4: #{seq2seq_forward.59} parent=0 // pred_region
    _
  $region5: #{seq2seq_forward.59} parent=0 // pred_fallthru
    _
  // Predicated region
  $region6: #{seq2seq_forward.59} parent=0 // pred_check
    _
  $region7: #{seq2seq_forward.59} parent=0 // pred_check_branch
    %11 = sbr.rel (0) target = $region9
  $region8: #{seq2seq_forward.59} parent=0 // pred_region
    _
  $region9: #{seq2seq_forward.59} parent=0 // pred_fallthru
    _
  // Predicated region
  $region10: #{seq2seq_forward.59} parent=0 // pred_check
    _
  $region11: #{seq2seq_forward.59} parent=0 // pred_check_branch
    %13 = sbr.rel (0) target = $region13
  $region12: #{seq2seq_forward.59} parent=0 // pred_region
    _
  $region13: #{seq2seq_forward.59} parent=0 // pred_fallthru
    _
  %v14 = vld [vmem:[%s0] sm:$0xff]
  %v15 = vld [vmem:[%s0 + $0x8] sm:$0xff]
  %v16 = vld [vmem:[%s1] sm:$0x1]
  %v17 = vld [vmem:[%s2] sm:$0x1]
  %vm18 = vcmask 261120
  %v19 = vsel %vm18, %v14, 0.0
  %20 = vadd.xlane.f32.xlu0 %v19
  %v21 = vpop.xlane.xlu0 %20
  %v22 = vsel %vm18, %v15, 0.0
  %23 = vadd.xlane.f32.xlu0 %v22
  %v24 = vpop.xlane.xlu0 %23
  %v25 = vrcp.pop 32.0
  %v26 = vmul.f32 %v21, %v25
  %v27 = vmul.f32 %v24, %v25
  %v28 = vsub.f32 %v14, %v26
  %v29 = vsub.f32 %v15, %v27
  %v30 = vmul.f32 %v28, %v28
  %v31 = vmul.f32 %v29, %v29
  %v32 = vsel %vm18, %v30, 0.0
  %33 = vadd.xlane.f32.xlu0 %v32
  %v34 = vpop.xlane.xlu0 %33
  %v35 = vsel %vm18, %v31, 0.0
  %36 = vadd.xlane.f32.xlu0 %v35
  %v37 = vpop.xlane.xlu0 %36
  %v38 = vmul.f32 %v34, %v25
  %v39 = vmul.f32 %v37, %v25
  %v40 = vadd.f32 %v38, 1e-05
  %v41 = vadd.f32 %v39, 1e-05
  %v42 = vrsqrt.pop %v40
  %v43 = vrsqrt.pop %v41
  %v44 = vmul.f32 %v28, %v42
  %v45 = vmul.f32 %v29, %v43
  %v47 = vlaneseq
  %v48 = vshrl.u32 %v47, 7
  %v49 = vsub.s32 0, %v48
  %v50 = vrot.slane %v16, %v49
  %v52 = vmul.f32 %v44, %v50
  %v53 = vmul.f32 %v45, %v50
  %v55 = vlaneseq
  %v56 = vshrl.u32 %v55, 7
  %v57 = vsub.s32 0, %v56
  %v58 = vrot.slane %v17, %v57
  %v60 = vadd.f32 %v52, %v58
  %v61 = vadd.f32 %v53, %v58
  %62 = vst.msk [vmem:[%s3] sm:$0xff] %vm18, %v60
  %63 = vst.msk [vmem:[%s3 + $0x8] sm:$0xff] %vm18, %v61
  // Predicated region
  $region14: #{seq2seq_forward.59} parent=0 // pred_check
    _
  $region15: #{seq2seq_forward.59} parent=0 // pred_check_branch
    %65 = sbr.rel (0) target = $region17
  $region16: #{seq2seq_forward.59} parent=0 // pred_region
    _
  $region17: #{seq2seq_forward.59} parent=0 // pred_fallthru
    _
  // Predicated region
  $region18: #{seq2seq_forward.59} parent=0 // pred_check
    _
  $region19: #{seq2seq_forward.59} parent=0 // pred_check_branch
    %67 = sbr.rel (0) target = $region21
  $region20: #{seq2seq_forward.59} parent=0 // pred_region
    _
  $region21: #{seq2seq_forward.59} parent=0 // pred_fallthru
    _

// kernel: seq2seq_forward.50
$region0: #{seq2seq_forward.50}
  #allocation0 [shape = 'u32[]', space=smem, size = 0x4, offset = 0x4, fixed_abs, tag = 'smem constant byte address 0x4 - core index']
  #allocation1 [shape = 'u32[144,128]{1,0:T(1,128)}', space=vmem, size = 0x12000, scoped, tag = 'internal scratch']
  #allocation2 [shape = 'f32[16,32]{1,0:T(8,128)}', space=vmem, size = 0x2000, scoped, tag = 'scratch operand']
  %s0 = inlined_call_operand.vmem [shape: bf16[16,64], index: 0, kind: input, shape index: {}]
  %s1 = inlined_call_operand.vmem [shape: bf16[64,32], index: 1, kind: input, shape index: {}]
  %s2 = inlined_call_operand.vmem [shape: f32[1,32], index: 2, kind: input, shape index: {}]
  %s3 = inlined_call_operand.vmem [shape: f32[16,32], index: 3, kind: output, shape index: {}]
  %s4 = sld [smem:[#allocation0]]
  $region30: #{seq2seq_forward.50} parent=0
    _
  %s6 = ssub.s32 1, %s4
  %s7 = scalar_select 0, %s6, %s4
  // Predicated region
  $region2: #{seq2seq_forward.50} parent=0 // pred_check
    _
  $region3: #{seq2seq_forward.50} parent=0 // pred_check_branch
    %9 = sbr.rel (0) target = $region5
  $region4: #{seq2seq_forward.50} parent=0 // pred_region
    _
  $region5: #{seq2seq_forward.50} parent=0 // pred_fallthru
    _
  // Predicated region
  $region6: #{seq2seq_forward.50} parent=0 // pred_check
    _
  $region7: #{seq2seq_forward.50} parent=0 // pred_check_branch
    %11 = sbr.rel (0) target = $region9
  $region8: #{seq2seq_forward.50} parent=0 // pred_region
    _
  $region9: #{seq2seq_forward.50} parent=0 // pred_fallthru
    _
  // Predicated region
  $region10: #{seq2seq_forward.50} parent=0 // pred_check
    _
  $region11: #{seq2seq_forward.50} parent=0 // pred_check_branch
    %13 = sbr.rel (0) target = $region13
  $region12: #{seq2seq_forward.50} parent=0 // pred_region
    _
  $region13: #{seq2seq_forward.50} parent=0 // pred_fallthru
    _
  %p15 = scmp.eq.s32.totalorder 0, 0
  // Predicated region
  $region14: #{seq2seq_forward.50} parent=0 // pred_check
    %p16 = pneg %p15
  $region15: #{seq2seq_forward.50} parent=0 // pred_check_branch
    %18 = sbr.rel (%p16) target = $region17
  $region16: #{seq2seq_forward.50} parent=0 // pred_region
    %vm19 = vcmask 261120
    %20 = vst.msk [vmem:[#allocation2] sm:$0xff] %vm19, 0.0
    %21 = vst.msk [vmem:[#allocation2 + $0x8] sm:$0xff] %vm19, 0.0
  $region17: #{seq2seq_forward.50} parent=0 // pred_fallthru
    _
  %v22 = vld [vmem:[#allocation2] sm:$0xff]
  %v23 = vld [vmem:[#allocation2 + $0x8] sm:$0xff]
  %v24 = vld [vmem:[%s0] sm:$0xf]
  %v25 = vld [vmem:[%s0 + $0x4] sm:$0xf]
  %v26 = vld [vmem:[%s1] sm:$0xf]
  %v27 = vld [vmem:[%s1 + $0x4] sm:$0xf]
  %v28 = vld [vmem:[%s1 + $0x8] sm:$0xf]
  %v29 = vld [vmem:[%s1 + $0xc] sm:$0xf]
  %v30 = vld [vmem:[%s1 + $0x10] sm:$0xf]
  %v31 = vld [vmem:[%s1 + $0x14] sm:$0xf]
  %v32 = vld [vmem:[%s1 + $0x18] sm:$0xf]
  %v33 = vld [vmem:[%s1 + $0x1c] sm:$0xf]
  %v36 = vunpack.c.l.b16 %v24
  %v37 = vunpack.c.l.b16 %v25
  %v38 = vpack.c.b16 %v37, %v36
  %v47 = vunpack.c.l.b16 %v26
  %v48 = vunpack.c.l.b16 %v27
  %v49 = vunpack.c.l.b16 %v28
  %v50 = vunpack.c.l.b16 %v29
  %v51 = vunpack.c.l.b16 %v30
  %v52 = vunpack.c.l.b16 %v31
  %v53 = vunpack.c.l.b16 %v32
  %v54 = vunpack.c.l.b16 %v33
  %v55 = vpack.c.b16 %v48, %v47
  %v56 = vpack.c.b16 %v50, %v49
  %v57 = vpack.c.b16 %v52, %v51
  %v58 = vpack.c.b16 %v54, %v53
  %vm63 = vcmask 523264
  %v65 = vsel %vm63, %v38, 0
  %67 = vmatprep.subr.bf16.mxu0 0
  %68 = vmatpush1.bf16.msra.mxu0 %v55
  %69 = vmatprep.subr.bf16.mxu0 0
  %70 = vmatpush1.bf16.msra.mxu0 %v56
  %71 = vmatprep.subr.bf16.mxu0 0
  %72 = vmatpush1.bf16.msra.mxu0 %v57
  %73 = vmatprep.subr.bf16.mxu0 0
  %74 = vmatpush1.bf16.msra.mxu0 %v58
  %75 = vmatprep.subr.bf16.mxu0 0
  %76 = vmatpush1.bf16.msra.mxu0 0
  %77 = vmatprep.subr.bf16.mxu0 0
  %78 = vmatpush1.bf16.msra.mxu0 0
  %79 = vmatprep.subr.bf16.mxu0 0
  %80 = vmatpush1.bf16.msra.mxu0 0
  %81 = vmatprep.subr.bf16.mxu0 0
  %82 = vmatpush1.bf16.msra.mxu0 0
  %83 = vmatprep.subr.bf16.mxu0 0
  %84 = vmatpush1.bf16.msra.mxu0 0
  %85 = vmatprep.subr.bf16.mxu0 0
  %86 = vmatpush1.bf16.msra.mxu0 0
  %87 = vmatprep.subr.bf16.mxu0 0
  %88 = vmatpush1.bf16.msra.mxu0 0
  %89 = vmatprep.subr.bf16.mxu0 0
  %90 = vmatpush1.bf16.msra.mxu0 0
  %91 = vmatprep.subr.bf16.mxu0 0
  %92 = vmatpush1.bf16.msra.mxu0 0
  %93 = vmatprep.subr.bf16.mxu0 0
  %94 = vmatpush1.bf16.msra.mxu0 0
  %95 = vmatprep.subr.bf16.mxu0 0
  %96 = vmatpush1.bf16.msra.mxu0 0
  %97 = vmatprep.subr.bf16.mxu0 0
  %98 = vmatpush1.bf16.msra.mxu0 0
  %99 = vmatprep.mubr.bf16.mxu0 0
  %100 = vmatmul.mubr.bf16.gmra.mrb[0].mxu0 %v65
  %v101 = vpop.f32.mrb[0].mxu0
  %v102 = vadd.f32 0.0, %v101
  %v103 = vpop.f32.mrb[0].mxu0
  %v104 = vpop.f32.mrb[0].mxu0
  %v105 = vadd.f32 0.0, %v104
  %v106 = vpop.f32.mrb[0].mxu0
  %107 = vdwg.mxu0
  %v108 = vadd.f32 %v22, %v102
  %v109 = vadd.f32 %v23, %v105
  %vm110 = vcmask 261120
  %111 = vst.msk [vmem:[#allocation2] sm:$0xff] %vm110, %v108
  %112 = vst.msk [vmem:[#allocation2 + $0x8] sm:$0xff] %vm110, %v109
  // Predicated region
  $region18: #{seq2seq_forward.50} parent=0 // pred_check
    %p113 = pneg %p15
  $region19: #{seq2seq_forward.50} parent=0 // pred_check_branch
    %115 = sbr.rel (%p113) target = $region21
  $region20: #{seq2seq_forward.50} parent=0 // pred_region
    %v116 = vld [vmem:[#allocation2] sm:$0xff]
    %v117 = vld [vmem:[#allocation2 + $0x8] sm:$0xff]
    %v118 = vld [vmem:[%s2] sm:$0x1]
    %v120 = vlaneseq
    %v121 = vshrl.u32 %v120, 7
    %v122 = vsub.s32 0, %v121
    %v123 = vrot.slane %v118, %v122
    %v125 = vadd.f32 %v116, %v123
    %v126 = vadd.f32 %v117, %v123
    %127 = vst.msk [vmem:[%s3] sm:$0xff] %vm110, %v125
    %128 = vst.msk [vmem:[%s3 + $0x8] sm:$0xff] %vm110, %v126
  $region21: #{seq2seq_forward.50} parent=0 // pred_fallthru
    _
  // Predicated region
  $region22: #{seq2seq_forward.50} parent=0 // pred_check
    _
  $region23: #{seq2seq_forward.50} parent=0 // pred_check_branch
    %130 = sbr.rel (0) target = $region25
  $region24: #{seq2seq_forward.50} parent=0 // pred_region
    _
  $region25: #{seq2seq_forward.50} parent=0 // pred_fallthru
    _
  // Predicated region
  $region26: #{seq2seq_forward.50} parent=0 // pred_check
    _
  $region27: #{seq2seq_forward.50} parent=0 // pred_check_branch
    %132 = sbr.rel (0) target = $region29
  $region28: #{seq2seq_forward.50} parent=0 // pred_region
    _
  $region29: #{seq2seq_forward.50} parent=0 // pred_fallthru
    _

// kernel: seq2seq_forward.65
$region0: #{seq2seq_forward.65}
  #allocation0 [shape = 'u32[]', space=smem, size = 0x4, offset = 0x4, fixed_abs, tag = 'smem constant byte address 0x4 - core index']
  #allocation1 [shape = 'u32[144,128]{1,0:T(1,128)}', space=vmem, size = 0x12000, scoped, tag = 'internal scratch']
  #allocation2 [shape = 'f32[16,64]{1,0:T(8,128)}', space=vmem, size = 0x2000, scoped, tag = 'scratch operand']
  %s0 = inlined_call_operand.vmem [shape: bf16[16,32], index: 0, kind: input, shape index: {}]
  %s1 = inlined_call_operand.vmem [shape: bf16[32,64], index: 1, kind: input, shape index: {}]
  %s2 = inlined_call_operand.vmem [shape: f32[1,64], index: 2, kind: input, shape index: {}]
  %s3 = inlined_call_operand.vmem [shape: f32[16,64], index: 3, kind: output, shape index: {}]
  %s4 = sld [smem:[#allocation0]]
  $region30: #{seq2seq_forward.65} parent=0
    _
  %s6 = ssub.s32 1, %s4
  %s7 = scalar_select 0, %s6, %s4
  // Predicated region
  $region2: #{seq2seq_forward.65} parent=0 // pred_check
    _
  $region3: #{seq2seq_forward.65} parent=0 // pred_check_branch
    %9 = sbr.rel (0) target = $region5
  $region4: #{seq2seq_forward.65} parent=0 // pred_region
    _
  $region5: #{seq2seq_forward.65} parent=0 // pred_fallthru
    _
  // Predicated region
  $region6: #{seq2seq_forward.65} parent=0 // pred_check
    _
  $region7: #{seq2seq_forward.65} parent=0 // pred_check_branch
    %11 = sbr.rel (0) target = $region9
  $region8: #{seq2seq_forward.65} parent=0 // pred_region
    _
  $region9: #{seq2seq_forward.65} parent=0 // pred_fallthru
    _
  // Predicated region
  $region10: #{seq2seq_forward.65} parent=0 // pred_check
    _
  $region11: #{seq2seq_forward.65} parent=0 // pred_check_branch
    %13 = sbr.rel (0) target = $region13
  $region12: #{seq2seq_forward.65} parent=0 // pred_region
    _
  $region13: #{seq2seq_forward.65} parent=0 // pred_fallthru
    _
  %p15 = scmp.eq.s32.totalorder 0, 0
  // Predicated region
  $region14: #{seq2seq_forward.65} parent=0 // pred_check
    %p16 = pneg %p15
  $region15: #{seq2seq_forward.65} parent=0 // pred_check_branch
    %18 = sbr.rel (%p16) target = $region17
  $region16: #{seq2seq_forward.65} parent=0 // pred_region
    %vm19 = vcmask 523264
    %20 = vst.msk [vmem:[#allocation2] sm:$0xff] %vm19, 0.0
    %21 = vst.msk [vmem:[#allocation2 + $0x8] sm:$0xff] %vm19, 0.0
  $region17: #{seq2seq_forward.65} parent=0 // pred_fallthru
    _
  %v22 = vld [vmem:[#allocation2] sm:$0xff]
  %v23 = vld [vmem:[#allocation2 + $0x8] sm:$0xff]
  %v24 = vld [vmem:[%s0] sm:$0xf]
  %v25 = vld [vmem:[%s0 + $0x4] sm:$0xf]
  %v26 = vld [vmem:[%s1] sm:$0xf]
  %v27 = vld [vmem:[%s1 + $0x4] sm:$0xf]
  %v28 = vld [vmem:[%s1 + $0x8] sm:$0xf]
  %v29 = vld [vmem:[%s1 + $0xc] sm:$0xf]
  %v32 = vunpack.c.l.b16 %v24
  %v33 = vunpack.c.l.b16 %v25
  %v34 = vpack.c.b16 %v33, %v32
  %v39 = vunpack.c.l.b16 %v26
  %v40 = vunpack.c.l.b16 %v27
  %v41 = vunpack.c.l.b16 %v28
  %v42 = vunpack.c.l.b16 %v29
  %v43 = vpack.c.b16 %v40, %v39
  %v44 = vpack.c.b16 %v42, %v41
  %vm47 = vcmask 261120
  %v49 = vsel %vm47, %v34, 0
  %51 = vmatprep.subr.bf16.mxu0 0
  %52 = vmatpush1.bf16.msra.mxu0 %v43
  %53 = vmatprep.subr.bf16.mxu0 0
  %54 = vmatpush1.bf16.msra.mxu0 %v44
  %55 = vmatprep.subr.bf16.mxu0 0
  %56 = vmatpush1.bf16.msra.mxu0 0
  %57 = vmatprep.subr.bf16.mxu0 0
  %58 = vmatpush1.bf16.msra.mxu0 0
  %59 = vmatprep.subr.bf16.mxu0 0
  %60 = vmatpush1.bf16.msra.mxu0 0
  %61 = vmatprep.subr.bf16.mxu0 0
  %62 = vmatpush1.bf16.msra.mxu0 0
  %63 = vmatprep.subr.bf16.mxu0 0
  %64 = vmatpush1.bf16.msra.mxu0 0
  %65 = vmatprep.subr.bf16.mxu0 0
  %66 = vmatpush1.bf16.msra.mxu0 0
  %67 = vmatprep.subr.bf16.mxu0 0
  %68 = vmatpush1.bf16.msra.mxu0 0
  %69 = vmatprep.subr.bf16.mxu0 0
  %70 = vmatpush1.bf16.msra.mxu0 0
  %71 = vmatprep.subr.bf16.mxu0 0
  %72 = vmatpush1.bf16.msra.mxu0 0
  %73 = vmatprep.subr.bf16.mxu0 0
  %74 = vmatpush1.bf16.msra.mxu0 0
  %75 = vmatprep.subr.bf16.mxu0 0
  %76 = vmatpush1.bf16.msra.mxu0 0
  %77 = vmatprep.subr.bf16.mxu0 0
  %78 = vmatpush1.bf16.msra.mxu0 0
  %79 = vmatprep.subr.bf16.mxu0 0
  %80 = vmatpush1.bf16.msra.mxu0 0
  %81 = vmatprep.subr.bf16.mxu0 0
  %82 = vmatpush1.bf16.msra.mxu0 0
  %83 = vmatprep.mubr.bf16.mxu0 0
  %84 = vmatmul.mubr.bf16.gmra.mrb[0].mxu0 %v49
  %v85 = vpop.f32.mrb[0].mxu0
  %v86 = vadd.f32 0.0, %v85
  %v87 = vpop.f32.mrb[0].mxu0
  %v88 = vpop.f32.mrb[0].mxu0
  %v89 = vadd.f32 0.0, %v88
  %v90 = vpop.f32.mrb[0].mxu0
  %91 = vdwg.mxu0
  %v92 = vadd.f32 %v22, %v86
  %v93 = vadd.f32 %v23, %v89
  %vm94 = vcmask 523264
  %95 = vst.msk [vmem:[#allocation2] sm:$0xff] %vm94, %v92
  %96 = vst.msk [vmem:[#allocation2 + $0x8] sm:$0xff] %vm94, %v93
  // Predicated region
  $region18: #{seq2seq_forward.65} parent=0 // pred_check
    %p97 = pneg %p15
  $region19: #{seq2seq_forward.65} parent=0 // pred_check_branch
    %99 = sbr.rel (%p97) target = $region21
  $region20: #{seq2seq_forward.65} parent=0 // pred_region
    %v100 = vld [vmem:[#allocation2] sm:$0xff]
    %v101 = vld [vmem:[#allocation2 + $0x8] sm:$0xff]
    %v102 = vld [vmem:[%s2] sm:$0x1]
    %v104 = vlaneseq
    %v105 = vshrl.u32 %v104, 7
    %v106 = vsub.s32 0, %v105
    %v107 = vrot.slane %v102, %v106
    %v109 = vadd.f32 %v100, %v107
    %v110 = vadd.f32 %v101, %v107
    %111 = vst.msk [vmem:[%s3] sm:$0xff] %vm94, %v109
    %112 = vst.msk [vmem:[%s3 + $0x8] sm:$0xff] %vm94, %v110
  $region21: #{seq2seq_forward.65} parent=0 // pred_fallthru
    _
  // Predicated region
  $region22: #{seq2seq_forward.65} parent=0 // pred_check
    _
  $region23: #{seq2seq_forward.65} parent=0 // pred_check_branch
    %114 = sbr.rel (0) target = $region25
  $region24: #{seq2seq_forward.65} parent=0 // pred_region
    _
  $region25: #{seq2seq_forward.65} parent=0 // pred_fallthru
    _
  // Predicated region
  $region26: #{seq2seq_forward.65} parent=0 // pred_check
    _
  $region27: #{seq2seq_forward.65} parent=0 // pred_check_branch
    %116 = sbr.rel (0) target = $region29
  $region28: #{seq2seq_forward.65} parent=0 // pred_region
    _
  $region29: #{seq2seq_forward.65} parent=0 // pred_fallthru
    _

// kernel: seq2seq_forward.66
$region0: #{seq2seq_forward.66}
  #allocation0 [shape = 'u32[]', space=smem, size = 0x4, offset = 0x4, fixed_abs, tag = 'smem constant byte address 0x4 - core index']
  #allocation1 [shape = 'u32[144,128]{1,0:T(1,128)}', space=vmem, size = 0x12000, scoped, tag = 'internal scratch']
  %s0 = inlined_call_operand.vmem [shape: bf16[2,4,8,8], index: 0, kind: input, shape index: {}]
  %s1 = inlined_call_operand.vmem [shape: bf16[2,4,8,8], index: 1, kind: input, shape index: {}]
  %s2 = inlined_call_operand.vmem [shape: bf16[2,4,8,8], index: 2, kind: input, shape index: {}]
  %s3 = inlined_call_operand.vmem [shape: f32[2,4,8,8], index: 3, kind: output, shape index: {}]
  %s4 = sld [smem:[#allocation0]]
  $region45: #{seq2seq_forward.66} parent=0
    _
  %s6 = ssub.s32 1, %s4
  %s7 = scalar_select 0, %s6, %s4
  loop: start=0, step=1, limit=4
  $region2: #{seq2seq_forward.66} parent=0 // loop_pre_header
    _
  $region3: #{seq2seq_forward.66} parent=0 // loop_header
    %s9 = sphi 0, %s13
    %p10 = scmp.ge.s32.totalorder %s9, 4
    %s19 = sphi 0, %s21
    %s22 = sphi 0, %s19
    %s23 = sphi 0, %s22
    %s39 = sphi 0, %s23
    %s45 = sphi 0, %s47
    %s48 = sphi 0, %s45
    %s49 = sphi 0, %s48
    %s65 = sphi 0, %s49
    %s71 = sphi 0, %s73
    %s74 = sphi 0, %s71
    %s75 = sphi 0, %s74
    %s91 = sphi 0, %s75
    %s97 = sphi 0, %s99
    %s100 = sphi 0, %s97
    %s101 = sphi 0, %s100
    %s117 = sphi 0, %s101
  $region4: #{seq2seq_forward.66} parent=0 // loop_header_branch
    %12 = sbr.rel (%p10) target = $region8
  $region5: #{seq2seq_forward.66} parent=0 // loop_body
    %s14 = ssub.s32 %s9, 1
    %s15 = ssub.s32 %s9, 2
    %s16 = sadd.s32 %s9, 1
    %s17 = ssub.s32 %s9, %s16
    %p18 = scmp.eq.s32.totalorder %s17, 0
    %s20 = sadd.s32 %s19, 1
    %s21 = scalar_select %p18, %s19, %s20
    %p24 = pneg %p18
    %p25 = scmp.eq.s32.totalorder %s9, 1
    %p26 = por %p24, %p25
    %p27 = scmp.ne.s32.totalorder %s19, %s22
    %p28 = scmp.eq.s32.totalorder %s9, 0
    %p29 = por %p27, %p28
    %p30 = scmp.ne.s32.totalorder %s19, %s22
    %p31 = scmp.eq.s32.totalorder %s14, 1
    %p32 = por %p30, %p31
    %p33 = scmp.ne.s32.totalorder %s22, %s23
    %p34 = scmp.eq.s32.totalorder %s14, 0
    %p35 = por %p33, %p34
    %p36 = scmp.ne.s32.totalorder %s22, %s23
    %p37 = scmp.eq.s32.totalorder %s15, 1
    %p38 = por %p36, %p37
    %p40 = scmp.ne.s32.totalorder %s23, %s39
    %p41 = scmp.eq.s32.totalorder %s15, 0
    %p42 = por %p40, %p41
    %s43 = ssub.s32 %s9, %s16
    %p44 = scmp.eq.s32.totalorder %s43, 0
    %s46 = sadd.s32 %s45, 1
    %s47 = scalar_select %p44, %s45, %s46
    %p50 = pneg %p44
    %p51 = scmp.eq.s32.totalorder %s9, 1
    %p52 = por %p50, %p51
    %p53 = scmp.ne.s32.totalorder %s45, %s48
    %p54 = scmp.eq.s32.totalorder %s9, 0
    %p55 = por %p53, %p54
    %p56 = scmp.ne.s32.totalorder %s45, %s48
    %p57 = scmp.eq.s32.totalorder %s14, 1
    %p58 = por %p56, %p57
    %p59 = scmp.ne.s32.totalorder %s48, %s49
    %p60 = scmp.eq.s32.totalorder %s14, 0
    %p61 = por %p59, %p60
    %p62 = scmp.ne.s32.totalorder %s48, %s49
    %p63 = scmp.eq.s32.totalorder %s15, 1
    %p64 = por %p62, %p63
    %p66 = scmp.ne.s32.totalorder %s49, %s65
    %p67 = scmp.eq.s32.totalorder %s15, 0
    %p68 = por %p66, %p67
    %s69 = ssub.s32 %s9, %s16
    %p70 = scmp.eq.s32.totalorder %s69, 0
    %s72 = sadd.s32 %s71, 1
    %s73 = scalar_select %p70, %s71, %s72
    %p76 = pneg %p70
    %p77 = scmp.eq.s32.totalorder %s9, 1
    %p78 = por %p76, %p77
    %p79 = scmp.ne.s32.totalorder %s71, %s74
    %p80 = scmp.eq.s32.totalorder %s9, 0
    %p81 = por %p79, %p80
    %p82 = scmp.ne.s32.totalorder %s71, %s74
    %p83 = scmp.eq.s32.totalorder %s14, 1
    %p84 = por %p82, %p83
    %p85 = scmp.ne.s32.totalorder %s74, %s75
    %p86 = scmp.eq.s32.totalorder %s14, 0
    %p87 = por %p85, %p86
    %p88 = scmp.ne.s32.totalorder %s74, %s75
    %p89 = scmp.eq.s32.totalorder %s15, 1
    %p90 = por %p88, %p89
    %p92 = scmp.ne.s32.totalorder %s75, %s91
    %p93 = scmp.eq.s32.totalorder %s15, 0
    %p94 = por %p92, %p93
    %s95 = ssub.s32 %s9, %s16
    %p96 = scmp.eq.s32.totalorder %s95, 0
    %s98 = sadd.s32 %s97, 1
    %s99 = scalar_select %p96, %s97, %s98
    %p102 = pneg %p96
    %p103 = scmp.eq.s32.totalorder %s9, 1
    %p104 = por %p102, %p103
    %p105 = scmp.ne.s32.totalorder %s97, %s100
    %p106 = scmp.eq.s32.totalorder %s9, 0
    %p107 = por %p105, %p106
    %p108 = scmp.ne.s32.totalorder %s97, %s100
    %p109 = scmp.eq.s32.totalorder %s14, 1
    %p110 = por %p108, %p109
    %p111 = scmp.ne.s32.totalorder %s100, %s101
    %p112 = scmp.eq.s32.totalorder %s14, 0
    %p113 = por %p111, %p112
    %p114 = scmp.ne.s32.totalorder %s100, %s101
    %p115 = scmp.eq.s32.totalorder %s15, 1
    %p116 = por %p114, %p115
    %p118 = scmp.ne.s32.totalorder %s101, %s117
    %p119 = scmp.eq.s32.totalorder %s15, 0
    %p120 = por %p118, %p119
    %p121 = scmp.le.s32.totalorder 1, %s9
    %p122 = scmp.lt.s32.totalorder %s9, 3
    %p123 = pnand %p121, %p122
    %p124 = pneg %p123
    // Predicated region
    $region9: #{seq2seq_forward.66} parent=5 // pred_check
      _
    $region10: #{seq2seq_forward.66} parent=5 // pred_check_branch
      %126 = sbr.rel (%p123) target = $region12
    $region11: #{seq2seq_forward.66} parent=5 // pred_region
      %s127 = ssub.s32 %s9, 1
    $region12: #{seq2seq_forward.66} parent=5 // pred_fallthru
      _
    %p128 = scmp.lt.s32.totalorder %s9, 2
    // Predicated region
    $region13: #{seq2seq_forward.66} parent=5 // pred_check
      %p129 = pneg %p128
    $region14: #{seq2seq_forward.66} parent=5 // pred_check_branch
      %131 = sbr.rel (%p129) target = $region16
    $region15: #{seq2seq_forward.66} parent=5 // pred_region
      // Predicated region
      $region17: #{seq2seq_forward.66} parent=15 // pred_check
        %p132 = pneg %p29
      $region18: #{seq2seq_forward.66} parent=15 // pred_check_branch
        %134 = sbr.rel (%p132) target = $region20
      $region19: #{seq2seq_forward.66} parent=15 // pred_region
        %p135 = scmp.lt.s32.totalorder %s9, 1
        %s136 = scalar_select %p135, %s9, 1
        %s137 = smul.addr %s136, 4
        %s138 = smul.addr %s137, 4
        %s139 = scalar_lea.vmem %s0, %s138
      $region20: #{seq2seq_forward.66} parent=15 // pred_fallthru
        _
      // Predicated region
      $region21: #{seq2seq_forward.66} parent=15 // pred_check
        %p140 = pneg %p55
      $region22: #{seq2seq_forward.66} parent=15 // pred_check_branch
        %142 = sbr.rel (%p140) target = $region24
      $region23: #{seq2seq_forward.66} parent=15 // pred_region
        %p143 = scmp.lt.s32.totalorder %s9, 1
        %s144 = scalar_select %p143, %s9, 1
        %s145 = smul.addr %s144, 4
        %s146 = smul.addr %s145, 4
        %s147 = scalar_lea.vmem %s1, %s146
      $region24: #{seq2seq_forward.66} parent=15 // pred_fallthru
        _
      // Predicated region
      $region25: #{seq2seq_forward.66} parent=15 // pred_check
        %p148 = pneg %p81
      $region26: #{seq2seq_forward.66} parent=15 // pred_check_branch
        %150 = sbr.rel (%p148) target = $region28
      $region27: #{seq2seq_forward.66} parent=15 // pred_region
        %p151 = scmp.lt.s32.totalorder %s9, 1
        %s152 = scalar_select %p151, %s9, 1
        %s153 = smul.addr %s152, 4
        %s154 = smul.addr %s153, 4
        %s155 = scalar_lea.vmem %s2, %s154
      $region28: #{seq2seq_forward.66} parent=15 // pred_fallthru
        _
    $region16: #{seq2seq_forward.66} parent=5 // pred_fallthru
      _
    %p156 = scmp.le.s32.totalorder 1, %s9
    %p157 = scmp.lt.s32.totalorder %s9, 3
    %p158 = pnand %p156, %p157
    %p159 = pneg %p158
    // Predicated region
    $region29: #{seq2seq_forward.66} parent=5 // pred_check
      _
    $region30: #{seq2seq_forward.66} parent=5 // pred_check_branch
      %161 = sbr.rel (%p158) target = $region32
    $region31: #{seq2seq_forward.66} parent=5 // pred_region
      %s162 = ssub.s32 %s9, 1
      %p163 = scmp.lt.s32.totalorder %s14, 1
      %s164 = scalar_select %p163, %s14, 1
      %s165 = smul.addr %s164, 4
      %s166 = smul.addr %s165, 4
      %s167 = scalar_lea.vmem %s0, %s166
      %p168 = pneg %p35
      %p169 = pneg %p32
      %p170 = scmp.lt.s32.totalorder %s14, 1
      %s171 = scalar_select %p170, %s14, 1
      %s172 = smul.addr %s171, 4
      %s173 = smul.addr %s172, 4
      %s174 = scalar_lea.vmem %s1, %s173
      %p175 = pneg %p61
      %p176 = pneg %p58
      %p177 = scmp.lt.s32.totalorder %s14, 1
      %s178 = scalar_select %p177, %s14, 1
      %s179 = smul.addr %s178, 4
      %s180 = smul.addr %s179, 4
      %s181 = scalar_lea.vmem %s2, %s180
      %p182 = pneg %p87
      %p183 = pneg %p84
      %p184 = pneg %p113
      %p185 = pneg %p110
      %p186 = scmp.lt.s32.totalorder %s14, 1
      %s187 = scalar_select %p186, %s14, 1
      %s188 = smul.addr %s187, 4
      %s189 = smul.addr %s188, 8
      %s190 = scalar_lea.vmem %s3, %s189
      %p191 = scmp.lt.s32.totalorder %s14, 1
      %s192 = scalar_select %p191, %s14, 1
      %s193 = smul.addr %s192, 4
      %s194 = smul.addr %s193, 4
      %s195 = scalar_lea.vmem %s0, %s194
      %p196 = scmp.lt.s32.totalorder %s14, 1
      %s197 = scalar_select %p196, %s14, 1
      %s198 = smul.addr %s197, 4
      %s199 = smul.addr %s198, 4
      %s200 = scalar_lea.vmem %s1, %s199
      %p201 = scmp.lt.s32.totalorder %s14, 1
      %s202 = scalar_select %p201, %s14, 1
      %s203 = smul.addr %s202, 4
      %s204 = smul.addr %s203, 4
      %s205 = scalar_lea.vmem %s2, %s204
      %p206 = scmp.lt.s32.totalorder %s14, 1
      %s207 = scalar_select %p206, %s14, 1
      %s208 = smul.addr %s207, 4
      %s209 = smul.addr %s208, 8
      %s210 = scalar_lea.vmem %s3, %s209
      %v212 = vld [vmem:[%s195] sm:$0xf]
      %v213 = vld [vmem:[%s195 + $0x4] sm:$0xf]
      %v214 = vld [vmem:[%s195 + $0x8] sm:$0xf]
      %v215 = vld [vmem:[%s195 + $0xc] sm:$0xf]
      %v216 = vld [vmem:[%s200] sm:$0xf]
      %v217 = vld [vmem:[%s200 + $0x4] sm:$0xf]
      %v218 = vld [vmem:[%s200 + $0x8] sm:$0xf]
      %v219 = vld [vmem:[%s200 + $0xc] sm:$0xf]
      %v220 = vld [vmem:[%s205] sm:$0xf]
      %v221 = vld [vmem:[%s205 + $0x4] sm:$0xf]
      %v222 = vld [vmem:[%s205 + $0x8] sm:$0xf]
      %v223 = vld [vmem:[%s205 + $0xc] sm:$0xf]
      %vm224 = vcmask 64512
      %v226 = vsel %vm224, %v212, 0
      %v229 = vsel %vm224, %v216, 0
      %231 = vmatprep.subr.bf16.mxu0 0
      %232 = vmatpush1.bf16.xpose.msra.mxu0 %v229
      %233 = vmatprep.subr.bf16.mxu0 0
      %234 = vmatpush1.bf16.xpose.msra.mxu0 0
      %235 = vmatprep.subr.bf16.mxu0 0
      %236 = vmatpush1.bf16.xpose.msra.mxu0 0
      %237 = vmatprep.subr.bf16.mxu0 0
      %238 = vmatpush1.bf16.xpose.msra.mxu0 0
      %239 = vmatprep.subr.bf16.mxu0 0
      %240 = vmatpush1.bf16.xpose.msra.mxu0 0
      %241 = vmatprep.subr.bf16.mxu0 0
      %242 = vmatpush1.bf16.xpose.msra.mxu0 0
      %243 = vmatprep.subr.bf16.mxu0 0
      %244 = vmatpush1.bf16.xpose.msra.mxu0 0
      %245 = vmatprep.subr.bf16.mxu0 0
      %246 = vmatpush1.bf16.xpose.msra.mxu0 0
      %247 = vmatprep.subr.bf16.mxu0 0
      %248 = vmatpush1.bf16.xpose.msra.mxu0 0
      %249 = vmatprep.subr.bf16.mxu0 0
      %250 = vmatpush1.bf16.xpose.msra.mxu0 0
      %251 = vmatprep.subr.bf16.mxu0 0
      %252 = vmatpush1.bf16.xpose.msra.mxu0 0
      %253 = vmatprep.subr.bf16.mxu0 0
      %254 = vmatpush1.bf16.xpose.msra.mxu0 0
      %255 = vmatprep.subr.bf16.mxu0 0
      %256 = vmatpush1.bf16.xpose.msra.mxu0 0
      %257 = vmatprep.subr.bf16.mxu0 0
      %258 = vmatpush1.bf16.xpose.msra.mxu0 0
      %259 = vmatprep.subr.bf16.mxu0 0
      %260 = vmatpush1.bf16.xpose.msra.mxu0 0
      %261 = vmatprep.subr.bf16.mxu0 0
      %262 = vmatpush1.bf16.xpose.msra.mxu0 0
      %263 = vmatprep.mubr.bf16.mxu0 0
      %264 = vmatmul.mubr.bf16.gmra.mrb[0].mxu0 %v226
      %v265 = vpop.f32.mrb[0].mxu0
      %v266 = vadd.f32 0.0, %v265
      %v267 = vpop.f32.mrb[0].mxu0
      %v268 = vpop.f32.mrb[0].mxu0
      %v269 = vpop.f32.mrb[0].mxu0
      %270 = vdwg.mxu0
      %v272 = vsel %vm224, %v213, 0
      %v275 = vsel %vm224, %v217, 0
      %277 = vmatprep.subr.bf16.mxu0 0
      %278 = vmatpush1.bf16.xpose.msra.mxu0 %v275
      %279 = vmatprep.subr.bf16.mxu0 0
      %280 = vmatpush1.bf16.xpose.msra.mxu0 0
      %281 = vmatprep.subr.bf16.mxu0 0
      %282 = vmatpush1.bf16.xpose.msra.mxu0 0
      %283 = vmatprep.subr.bf16.mxu0 0
      %284 = vmatpush1.bf16.xpose.msra.mxu0 0
      %285 = vmatprep.subr.bf16.mxu0 0
      %286 = vmatpush1.bf16.xpose.msra.mxu0 0
      %287 = vmatprep.subr.bf16.mxu0 0
      %288 = vmatpush1.bf16.xpose.msra.mxu0 0
      %289 = vmatprep.subr.bf16.mxu0 0
      %290 = vmatpush1.bf16.xpose.msra.mxu0 0
      %291 = vmatprep.subr.bf16.mxu0 0
      %292 = vmatpush1.bf16.xpose.msra.mxu0 0
      %293 = vmatprep.subr.bf16.mxu0 0
      %294 = vmatpush1.bf16.xpose.msra.mxu0 0
      %295 = vmatprep.subr.bf16.mxu0 0
      %296 = vmatpush1.bf16.xpose.msra.mxu0 0
      %297 = vmatprep.subr.bf16.mxu0 0
      %298 = vmatpush1.bf16.xpose.msra.mxu0 0
      %299 = vmatprep.subr.bf16.mxu0 0
      %300 = vmatpush1.bf16.xpose.msra.mxu0 0
      %301 = vmatprep.subr.bf16.mxu0 0
      %302 = vmatpush1.bf16.xpose.msra.mxu0 0
      %303 = vmatprep.subr.bf16.mxu0 0
      %304 = vmatpush1.bf16.xpose.msra.mxu0 0
      %305 = vmatprep.subr.bf16.mxu0 0
      %306 = vmatpush1.bf16.xpose.msra.mxu0 0
      %307 = vmatprep.subr.bf16.mxu0 0
      %308 = vmatpush1.bf16.xpose.msra.mxu0 0
      %309 = vmatprep.mubr.bf16.mxu0 0
      %310 = vmatmul.mubr.bf16.gmra.mrb[0].mxu0 %v272
      %v311 = vpop.f32.mrb[0].mxu0
      %v312 = vadd.f32 0.0, %v311
      %v313 = vpop.f32.mrb[0].mxu0
      %v314 = vpop.f32.mrb[0].mxu0
      %v315 = vpop.f32.mrb[0].mxu0
      %316 = vdwg.mxu0
      %v318 = vsel %vm224, %v214, 0
      %v321 = vsel %vm224, %v218, 0
      %323 = vmatprep.subr.bf16.mxu0 0
      %324 = vmatpush1.bf16.xpose.msra.mxu0 %v321
      %325 = vmatprep.subr.bf16.mxu0 0
      %326 = vmatpush1.bf16.xpose.msra.mxu0 0
      %327 = vmatprep.subr.bf16.mxu0 0
      %328 = vmatpush1.bf16.xpose.msra.mxu0 0
      %329 = vmatprep.subr.bf16.mxu0 0
      %330 = vmatpush1.bf16.xpose.msra.mxu0 0
      %331 = vmatprep.subr.bf16.mxu0 0
      %332 = vmatpush1.bf16.xpose.msra.mxu0 0
      %333 = vmatprep.subr.bf16.mxu0 0
      %334 = vmatpush1.bf16.xpose.msra.mxu0 0
      %335 = vmatprep.subr.bf16.mxu0 0
      %336 = vmatpush1.bf16.xpose.msra.mxu0 0
      %337 = vmatprep.subr.bf16.mxu0 0
      %338 = vmatpush1.bf16.xpose.msra.mxu0 0
      %339 = vmatprep.subr.bf16.mxu0 0
      %340 = vmatpush1.bf16.xpose.msra.mxu0 0
      %341 = vmatprep.subr.bf16.mxu0 0
      %342 = vmatpush1.bf16.xpose.msra.mxu0 0
      %343 = vmatprep.subr.bf16.mxu0 0
      %344 = vmatpush1.bf16.xpose.msra.mxu0 0
      %345 = vmatprep.subr.bf16.mxu0 0
      %346 = vmatpush1.bf16.xpose.msra.mxu0 0
      %347 = vmatprep.subr.bf16.mxu0 0
      %348 = vmatpush1.bf16.xpose.msra.mxu0 0
      %349 = vmatprep.subr.bf16.mxu0 0
      %350 = vmatpush1.bf16.xpose.msra.mxu0 0
      %351 = vmatprep.subr.bf16.mxu0 0
      %352 = vmatpush1.bf16.xpose.msra.mxu0 0
      %353 = vmatprep.subr.bf16.mxu0 0
      %354 = vmatpush1.bf16.xpose.msra.mxu0 0
      %355 = vmatprep.mubr.bf16.mxu0 0
      %356 = vmatmul.mubr.bf16.gmra.mrb[0].mxu0 %v318
      %v357 = vpop.f32.mrb[0].mxu0
      %v358 = vadd.f32 0.0, %v357
      %v359 = vpop.f32.mrb[0].mxu0
      %v360 = vpop.f32.mrb[0].mxu0
      %v361 = vpop.f32.mrb[0].mxu0
      %362 = vdwg.mxu0
      %v364 = vsel %vm224, %v215, 0
      %v367 = vsel %vm224, %v219, 0
      %369 = vmatprep.subr.bf16.mxu0 0
      %370 = vmatpush1.bf16.xpose.msra.mxu0 %v367
      %371 = vmatprep.subr.bf16.mxu0 0
      %372 = vmatpush1.bf16.xpose.msra.mxu0 0
      %373 = vmatprep.subr.bf16.mxu0 0
      %374 = vmatpush1.bf16.xpose.msra.mxu0 0
      %375 = vmatprep.subr.bf16.mxu0 0
      %376 = vmatpush1.bf16.xpose.msra.mxu0 0
      %377 = vmatprep.subr.bf16.mxu0 0
      %378 = vmatpush1.bf16.xpose.msra.mxu0 0
      %379 = vmatprep.subr.bf16.mxu0 0
      %380 = vmatpush1.bf16.xpose.msra.mxu0 0
      %381 = vmatprep.subr.bf16.mxu0 0
      %382 = vmatpush1.bf16.xpose.msra.mxu0 0
      %383 = vmatprep.subr.bf16.mxu0 0
      %384 = vmatpush1.bf16.xpose.msra.mxu0 0
      %385 = vmatprep.subr.bf16.mxu0 0
      %386 = vmatpush1.bf16.xpose.msra.mxu0 0
      %387 = vmatprep.subr.bf16.mxu0 0
      %388 = vmatpush1.bf16.xpose.msra.mxu0 0
      %389 = vmatprep.subr.bf16.mxu0 0
      %390 = vmatpush1.bf16.xpose.msra.mxu0 0
      %391 = vmatprep.subr.bf16.mxu0 0
      %392 = vmatpush1.bf16.xpose.msra.mxu0 0
      %393 = vmatprep.subr.bf16.mxu0 0
      %394 = vmatpush1.bf16.xpose.msra.mxu0 0
      %395 = vmatprep.subr.bf16.mxu0 0
      %396 = vmatpush1.bf16.xpose.msra.mxu0 0
      %397 = vmatprep.subr.bf16.mxu0 0
      %398 = vmatpush1.bf16.xpose.msra.mxu0 0
      %399 = vmatprep.subr.bf16.mxu0 0
      %400 = vmatpush1.bf16.xpose.msra.mxu0 0
      %401 = vmatprep.mubr.bf16.mxu0 0
      %402 = vmatmul.mubr.bf16.gmra.mrb[0].mxu0 %v364
      %v403 = vpop.f32.mrb[0].mxu0
      %v404 = vadd.f32 0.0, %v403
      %v405 = vpop.f32.mrb[0].mxu0
      %v406 = vpop.f32.mrb[0].mxu0
      %v407 = vpop.f32.mrb[0].mxu0
      %408 = vdwg.mxu0
      %v409 = vmul.f32 %v266, 0.35355338
      %v410 = vmul.f32 %v312, 0.35355338
      %v411 = vmul.f32 %v358, 0.35355338
      %v412 = vmul.f32 %v404, 0.35355338
      %v413 = vsel %vm224, %v409, -inf
      %414 = vmax.xlane.f32.xlu0 %v413
      %v415 = vpop.xlane.xlu0 %414
      %v416 = vsel %vm224, %v410, -inf
      %417 = vmax.xlane.f32.xlu0 %v416
      %v418 = vpop.xlane.xlu0 %417
      %v419 = vsel %vm224, %v411, -inf
      %420 = vmax.xlane.f32.xlu0 %v419
      %v421 = vpop.xlane.xlu0 %420
      %v422 = vsel %vm224, %v412, -inf
      %423 = vmax.xlane.f32.xlu0 %v422
      %v424 = vpop.xlane.xlu0 %423
      %v425 = vsub.f32 %v409, %v415
      %v426 = vsub.f32 %v410, %v418
      %v427 = vsub.f32 %v411, %v421
      %v428 = vsub.f32 %v412, %v424
      %v429 = vmul.f32 %v425, 1.442695
      %v430 = vpow.pop %v429
      %v431 = vmul.f32 %v426, 1.442695
      %v432 = vpow.pop %v431
      %v433 = vmul.f32 %v427, 1.442695
      %v434 = vpow.pop %v433
      %v435 = vmul.f32 %v428, 1.442695
      %v436 = vpow.pop %v435
      %v437 = vsel %vm224, %v430, 0.0
      %438 = vadd.xlane.f32.xlu0 %v437
      %v439 = vpop.xlane.xlu0 %438
      %v440 = vsel %vm224, %v432, 0.0
      %441 = vadd.xlane.f32.xlu0 %v440
      %v442 = vpop.xlane.xlu0 %441
      %v443 = vsel %vm224, %v434, 0.0
      %444 = vadd.xlane.f32.xlu0 %v443
      %v445 = vpop.xlane.xlu0 %444
      %v446 = vsel %vm224, %v436, 0.0
      %447 = vadd.xlane.f32.xlu0 %v446
      %v448 = vpop.xlane.xlu0 %447
      %v449 = vrcp.pop %v439
      %v450 = vrcp.pop %v442
      %v451 = vrcp.pop %v445
      %v452 = vrcp.pop %v448
      %v453 = vmul.f32 %v430, %v449
      %v454 = vmul.f32 %v432, %v450
      %v455 = vmul.f32 %v434, %v451
      %v456 = vmul.f32 %v436, %v452
      %v457 = vpack.c.bf16 %v453, %v453
      %v458 = vpack.c.bf16 %v454, %v454
      %v459 = vpack.c.bf16 %v455, %v455
      %v460 = vpack.c.bf16 %v456, %v456
      %v462 = vsel %vm224, %v457, 0
      %vm464 = vcmask 1043456
      %v466 = vsel %vm464, %v220, 0
      %468 = vmatprep.subr.bf16.mxu0 0
      %469 = vmatpush1.bf16.msra.mxu0 %v466
      %470 = vmatprep.subr.bf16.mxu0 0
      %471 = vmatpush1.bf16.msra.mxu0 0
      %472 = vmatprep.subr.bf16.mxu0 0
      %473 = vmatpush1.bf16.msra.mxu0 0
      %474 = vmatprep.subr.bf16.mxu0 0
      %475 = vmatpush1.bf16.msra.mxu0 0
      %476 = vmatprep.subr.bf16.mxu0 0
      %477 = vmatpush1.bf16.msra.mxu0 0
      %478 = vmatprep.subr.bf16.mxu0 0
      %479 = vmatpush1.bf16.msra.mxu0 0
      %480 = vmatprep.subr.bf16.mxu0 0
      %481 = vmatpush1.bf16.msra.mxu0 0
      %482 = vmatprep.subr.bf16.mxu0 0
      %483 = vmatpush1.bf16.msra.mxu0 0
      %484 = vmatprep.subr.bf16.mxu0 0
      %485 = vmatpush1.bf16.msra.mxu0 0
      %486 = vmatprep.subr.bf16.mxu0 0
      %487 = vmatpush1.bf16.msra.mxu0 0
      %488 = vmatprep.subr.bf16.mxu0 0
      %489 = vmatpush1.bf16.msra.mxu0 0
      %490 = vmatprep.subr.bf16.mxu0 0
      %491 = vmatpush1.bf16.msra.mxu0 0
      %492 = vmatprep.subr.bf16.mxu0 0
      %493 = vmatpush1.bf16.msra.mxu0 0
      %494 = vmatprep.subr.bf16.mxu0 0
      %495 = vmatpush1.bf16.msra.mxu0 0
      %496 = vmatprep.subr.bf16.mxu0 0
      %497 = vmatpush1.bf16.msra.mxu0 0
      %498 = vmatprep.subr.bf16.mxu0 0
      %499 = vmatpush1.bf16.msra.mxu0 0
      %500 = vmatprep.mubr.bf16.mxu0 0
      %501 = vmatmul.mubr.bf16.gmra.mrb[0].mxu0 %v462
      %v502 = vpop.f32.mrb[0].mxu0
      %v503 = vadd.f32 0.0, %v502
      %v504 = vpop.f32.mrb[0].mxu0
      %v505 = vpop.f32.mrb[0].mxu0
      %v506 = vpop.f32.mrb[0].mxu0
      %507 = vdwg.mxu0
      %v509 = vsel %vm224, %v458, 0
      %v512 = vsel %vm464, %v221, 0
      %514 = vmatprep.subr.bf16.mxu0 0
      %515 = vmatpush1.bf16.msra.mxu0 %v512
      %516 = vmatprep.subr.bf16.mxu0 0
      %517 = vmatpush1.bf16.msra.mxu0 0
      %518 = vmatprep.subr.bf16.mxu0 0
      %519 = vmatpush1.bf16.msra.mxu0 0
      %520 = vmatprep.subr.bf16.mxu0 0
      %521 = vmatpush1.bf16.msra.mxu0 0
      %522 = vmatprep.subr.bf16.mxu0 0
      %523 = vmatpush1.bf16.msra.mxu0 0
      %524 = vmatprep.subr.bf16.mxu0 0
      %525 = vmatpush1.bf16.msra.mxu0 0
      %526 = vmatprep.subr.bf16.mxu0 0
      %527 = vmatpush1.bf16.msra.mxu0 0
      %528 = vmatprep.subr.bf16.mxu0 0
      %529 = vmatpush1.bf16.msra.mxu0 0
      %530 = vmatprep.subr.bf16.mxu0 0
      %531 = vmatpush1.bf16.msra.mxu0 0
      %532 = vmatprep.subr.bf16.mxu0 0
      %533 = vmatpush1.bf16.msra.mxu0 0
      %534 = vmatprep.subr.bf16.mxu0 0
      %535 = vmatpush1.bf16.msra.mxu0 0
      %536 = vmatprep.subr.bf16.mxu0 0
      %537 = vmatpush1.bf16.msra.mxu0 0
      %538 = vmatprep.subr.bf16.mxu0 0
      %539 = vmatpush1.bf16.msra.mxu0 0
      %540 = vmatprep.subr.bf16.mxu0 0
      %541 = vmatpush1.bf16.msra.mxu0 0
      %542 = vmatprep.subr.bf16.mxu0 0
      %543 = vmatpush1.bf16.msra.mxu0 0
      %544 = vmatprep.subr.bf16.mxu0 0
      %545 = vmatpush1.bf16.msra.mxu0 0
      %546 = vmatprep.mubr.bf16.mxu0 0
      %547 = vmatmul.mubr.bf16.gmra.mrb[0].mxu0 %v509
      %v548 = vpop.f32.mrb[0].mxu0
      %v549 = vadd.f32 0.0, %v548
      %v550 = vpop.f32.mrb[0].mxu0
      %v551 = vpop.f32.mrb[0].mxu0
      %v552 = vpop.f32.mrb[0].mxu0
      %553 = vdwg.mxu0
      %v555 = vsel %vm224, %v459, 0
      %v558 = vsel %vm464, %v222, 0
      %560 = vmatprep.subr.bf16.mxu0 0
      %561 = vmatpush1.bf16.msra.mxu0 %v558
      %562 = vmatprep.subr.bf16.mxu0 0
      %563 = vmatpush1.bf16.msra.mxu0 0
      %564 = vmatprep.subr.bf16.mxu0 0
      %565 = vmatpush1.bf16.msra.mxu0 0
      %566 = vmatprep.subr.bf16.mxu0 0
      %567 = vmatpush1.bf16.msra.mxu0 0
      %568 = vmatprep.subr.bf16.mxu0 0
      %569 = vmatpush1.bf16.msra.mxu0 0
      %570 = vmatprep.subr.bf16.mxu0 0
      %571 = vmatpush1.bf16.msra.mxu0 0
      %572 = vmatprep.subr.bf16.mxu0 0
      %573 = vmatpush1.bf16.msra.mxu0 0
      %574 = vmatprep.subr.bf16.mxu0 0
      %575 = vmatpush1.bf16.msra.mxu0 0
      %576 = vmatprep.subr.bf16.mxu0 0
      %577 = vmatpush1.bf16.msra.mxu0 0
      %578 = vmatprep.subr.bf16.mxu0 0
      %579 = vmatpush1.bf16.msra.mxu0 0
      %580 = vmatprep.subr.bf16.mxu0 0
      %581 = vmatpush1.bf16.msra.mxu0 0
      %582 = vmatprep.subr.bf16.mxu0 0
      %583 = vmatpush1.bf16.msra.mxu0 0
      %584 = vmatprep.subr.bf16.mxu0 0
      %585 = vmatpush1.bf16.msra.mxu0 0
      %586 = vmatprep.subr.bf16.mxu0 0
      %587 = vmatpush1.bf16.msra.mxu0 0
      %588 = vmatprep.subr.bf16.mxu0 0
      %589 = vmatpush1.bf16.msra.mxu0 0
      %590 = vmatprep.subr.bf16.mxu0 0
      %591 = vmatpush1.bf16.msra.mxu0 0
      %592 = vmatprep.mubr.bf16.mxu0 0
      %593 = vmatmul.mubr.bf16.gmra.mrb[0].mxu0 %v555
      %v594 = vpop.f32.mrb[0].mxu0
      %v595 = vadd.f32 0.0, %v594
      %v596 = vpop.f32.mrb[0].mxu0
      %v597 = vpop.f32.mrb[0].mxu0
      %v598 = vpop.f32.mrb[0].mxu0
      %599 = vdwg.mxu0
      %v601 = vsel %vm224, %v460, 0
      %v604 = vsel %vm464, %v223, 0
      %606 = vmatprep.subr.bf16.mxu0 0
      %607 = vmatpush1.bf16.msra.mxu0 %v604
      %608 = vmatprep.subr.bf16.mxu0 0
      %609 = vmatpush1.bf16.msra.mxu0 0
      %610 = vmatprep.subr.bf16.mxu0 0
      %611 = vmatpush1.bf16.msra.mxu0 0
      %612 = vmatprep.subr.bf16.mxu0 0
      %613 = vmatpush1.bf16.msra.mxu0 0
      %614 = vmatprep.subr.bf16.mxu0 0
      %615 = vmatpush1.bf16.msra.mxu0 0
      %616 = vmatprep.subr.bf16.mxu0 0
      %617 = vmatpush1.bf16.msra.mxu0 0
      %618 = vmatprep.subr.bf16.mxu0 0
      %619 = vmatpush1.bf16.msra.mxu0 0
      %620 = vmatprep.subr.bf16.mxu0 0
      %621 = vmatpush1.bf16.msra.mxu0 0
      %622 = vmatprep.subr.bf16.mxu0 0
      %623 = vmatpush1.bf16.msra.mxu0 0
      %624 = vmatprep.subr.bf16.mxu0 0
      %625 = vmatpush1.bf16.msra.mxu0 0
      %626 = vmatprep.subr.bf16.mxu0 0
      %627 = vmatpush1.bf16.msra.mxu0 0
      %628 = vmatprep.subr.bf16.mxu0 0
      %629 = vmatpush1.bf16.msra.mxu0 0
      %630 = vmatprep.subr.bf16.mxu0 0
      %631 = vmatpush1.bf16.msra.mxu0 0
      %632 = vmatprep.subr.bf16.mxu0 0
      %633 = vmatpush1.bf16.msra.mxu0 0
      %634 = vmatprep.subr.bf16.mxu0 0
      %635 = vmatpush1.bf16.msra.mxu0 0
      %636 = vmatprep.subr.bf16.mxu0 0
      %637 = vmatpush1.bf16.msra.mxu0 0
      %638 = vmatprep.mubr.bf16.mxu0 0
      %639 = vmatmul.mubr.bf16.gmra.mrb[0].mxu0 %v601
      %v640 = vpop.f32.mrb[0].mxu0
      %v641 = vadd.f32 0.0, %v640
      %v642 = vpop.f32.mrb[0].mxu0
      %v643 = vpop.f32.mrb[0].mxu0
      %v644 = vpop.f32.mrb[0].mxu0
      %645 = vdwg.mxu0
      %646 = vst.msk [vmem:[%s210] sm:$0xff] %vm224, %v503
      %647 = vst.msk [vmem:[%s210 + $0x8] sm:$0xff] %vm224, %v549
      %648 = vst.msk [vmem:[%s210 + $0x10] sm:$0xff] %vm224, %v595
      %649 = vst.msk [vmem:[%s210 + $0x18] sm:$0xff] %vm224, %v641
      %p650 = scmp.lt.s32.totalorder %s14, 1
      %s651 = scalar_select %p650, %s14, 1
      %s652 = smul.addr %s651, 4
      %s653 = smul.addr %s652, 8
      %s654 = scalar_lea.vmem %s3, %s653
      // Predicated region
      $region33: #{seq2seq_forward.66} parent=31 // pred_check
        %p655 = pneg %p110
      $region34: #{seq2seq_forward.66} parent=31 // pred_check_branch
        %657 = sbr.rel (%p655) target = $region36
      $region35: #{seq2seq_forward.66} parent=31 // pred_region
        _
      $region36: #{seq2seq_forward.66} parent=31 // pred_fallthru
        _
    $region32: #{seq2seq_forward.66} parent=5 // pred_fallthru
      _
    %p658 = scmp.le.s32.totalorder 2, %s9
    // Predicated region
    $region37: #{seq2seq_forward.66} parent=5 // pred_check
      %p659 = pneg %p658
    $region38: #{seq2seq_forward.66} parent=5 // pred_check_branch
      %661 = sbr.rel (%p659) target = $region40
    $region39: #{seq2seq_forward.66} parent=5 // pred_region
      %s662 = ssub.s32 %s9, 2
      // Predicated region
      $region41: #{seq2seq_forward.66} parent=39 // pred_check
        %p663 = pneg %p116
      $region42: #{seq2seq_forward.66} parent=39 // pred_check_branch
        %665 = sbr.rel (%p663) target = $region44
      $region43: #{seq2seq_forward.66} parent=39 // pred_region
        %p666 = scmp.lt.s32.totalorder %s15, 1
        %s667 = scalar_select %p666, %s15, 1
        %s668 = smul.addr %s667, 4
        %s669 = smul.addr %s668, 8
        %s670 = scalar_lea.vmem %s3, %s669
      $region44: #{seq2seq_forward.66} parent=39 // pred_fallthru
        _
    $region40: #{seq2seq_forward.66} parent=5 // pred_fallthru
      _
  $region6: #{seq2seq_forward.66} parent=0 // loop_footer
    %s13 = sadd.s32 1, %s9
  $region7: #{seq2seq_forward.66} parent=0 // loop_footer_branch
    %8 = sbr.rel target = $region3
  $region8: #{seq2seq_forward.66} parent=0 // loop_exit
    _

</llo_original>
